<compile_context>
chip_gen: v7x
topology: tpu7x:2x2x1
jax: 0.10.0
libtpu: 0.0.40
codegen_flags: <defaults>
</compile_context>

<pallas_src>
import functools

import jax
import jax.numpy as jnp
from jax.experimental import pallas as pl
from jax.experimental.pallas import tpu as pltpu

EPS = 1e-5
NEG_SLOPE = 0.01


# --------------------------------- kernel -----------------------------------

def _fused_kernel(x_ref, wred_ref, w1_ref, vec_ref, w2_ref, w3_ref, out_ref,
                  *, n_stages, out_size, apply_softmax):
    """All ReductionNet stages in one invocation (statically unrolled loop)."""

    def leaky(v):
        return jnp.where(v > 0, v, NEG_SLOPE * v)

    def batchnorm(v, gamma, beta):
        # train-mode BatchNorm1d, single statistics pass (biased variance),
        # gamma folded into the rsqrt scale.
        mean = jnp.mean(v, axis=0, keepdims=True)
        mean_sq = jnp.mean(v * v, axis=0, keepdims=True)
        var = mean_sq - mean * mean
        scale = gamma * jax.lax.rsqrt(var + EPS)
        return v * scale + (beta - mean * scale)

    xr = x_ref[...]                                   # (B, D) carried activation
    for s in range(n_stages):                         # static unroll; tiny trip count
        if s > 0:                                     # stage 0 reduction == identity
            xr = jnp.dot(xr, wred_ref[s - 1],
                         preferred_element_type=jnp.float32)

        vecs = vec_ref[s]                             # (8, H) packed small params
        b1, g1, be1 = vecs[0:1, :], vecs[1:2, :], vecs[2:3, :]
        b2, g2, be2 = vecs[3:4, :], vecs[4:5, :], vecs[5:6, :]
        b3 = vecs[6:7, :out_size]

        # Linear -> LeakyReLU -> BatchNorm (x2), then Linear (+ Softmax)
        h = jnp.dot(xr, w1_ref[s], preferred_element_type=jnp.float32) + b1
        h = batchnorm(leaky(h), g1, be1)

        h = jnp.dot(h, w2_ref[s], preferred_element_type=jnp.float32) + b2
        h = batchnorm(leaky(h), g2, be2)

        o = jnp.dot(h, w3_ref[s], preferred_element_type=jnp.float32) + b3
        if apply_softmax:                             # nn.Softmax(dim=1) (out_size > 1)
            m = jnp.max(o, axis=1, keepdims=True)
            e = jnp.exp(o - m)
            denom = jnp.sum(e, axis=1, keepdims=True)
            r = pl.reciprocal(denom, approx=True)     # EUP slot
            r = r * (2.0 - denom * r)                 # 1 Newton step -> f32 exact
            o = e * r
        out_ref[s] = o                                # VMEM store; one HBM writeback at end


# --------------------------------- wrapper ----------------------------------

def reduction_net_forward(x, stacked_params, out_size):
    """ReductionNet.forward: returns a list of per-stage outputs (len == D)."""
    wred, w1, vecs, w2, w3 = stacked_params
    D = w1.shape[0]
    B = x.shape[0]
    kernel = functools.partial(_fused_kernel, n_stages=D, out_size=out_size,
                               apply_softmax=out_size > 1)

    vmem_spec = pl.BlockSpec(memory_space=pltpu.MemorySpace.VMEM)
    out = pl.pallas_call(
        kernel,
        out_shape=jax.ShapeDtypeStruct((D, B, out_size), jnp.float32),
        in_specs=[vmem_spec] * 6,
        out_specs=vmem_spec,
    )(x, wred, w1, vecs, w2, w3)
    return [out[s] for s in range(D)]


# ----------------------------- parameter setup ------------------------------

def _init_stage_params(key, d_in, hidden, out_size):
    k1, k2, k3 = jax.random.split(key, 3)
    w1 = jax.random.normal(k1, (d_in, hidden), jnp.float32) * (2.0 / d_in) ** 0.5
    w2 = jax.random.normal(k2, (hidden, hidden), jnp.float32) * (2.0 / hidden) ** 0.5
    w3 = jax.random.normal(k3, (hidden, out_size), jnp.float32) * (2.0 / hidden) ** 0.5
    zeros_h = jnp.zeros((1, hidden), jnp.float32)
    ones_h = jnp.ones((1, hidden), jnp.float32)
    return (w1, zeros_h, ones_h, zeros_h,              # W1, b1, gamma1, beta1
            w2, zeros_h, ones_h, zeros_h,              # W2, b2, gamma2, beta2
            w3, jnp.zeros((1, out_size), jnp.float32)) # W3, b3


def init_reduction_net(key, input_dim, out_size, hidden_dim):
    """input_dim == first_dim branch: first reduction is the identity (eye buffer)."""
    D = input_dim
    wred_t_list, stage_params = [], []
    for i in range(D):
        d_in = D - i
        if i == 0:
            wred_t = jnp.eye(D, dtype=jnp.float32)                 # identity buffer
        else:
            key, k = jax.random.split(key)
            # torch w_i has shape (D-i, D-i+1); stored transposed as (in, out)
            wred_t = (jax.random.normal(k, (d_in + 1, d_in), jnp.float32)
                      * (1.0 / (d_in + 1)) ** 0.5)
        key, k = jax.random.split(key)
        wred_t_list.append(wred_t)
        stage_params.append(_init_stage_params(k, d_in, hidden_dim, out_size))
    return wred_t_list, stage_params


def stack_and_pad(wred_t_list, stage_params, input_dim, hidden_dim, out_size):
    """Zero-pad per-stage shapes to uniform sizes and stack along a stage axis.

    * wred is stacked WITHOUT the stage-0 identity slot: shape (D-1, D, D).
    * The seven small per-stage vectors (b1, g1, be1, b2, g2, be2, b3) are
      packed into one (D, 8, H) array (row 7 is padding) -> a single DMA.
    Zero padding is numerically inert: padded carry columns are exactly 0 and
    hit zero rows of the next stage's wred / W1.
    """
    D, H = input_dim, hidden_dim
    assert out_size <= H, "b3 packing assumes out_size <= hidden_dim"
    n_red = max(D - 1, 1)
    wred = jnp.zeros((n_red, D, D), jnp.float32)
    w1 = jnp.zeros((D, D, H), jnp.float32)
    vecs = jnp.zeros((D, 8, H), jnp.float32)
    for s, (wt, p) in enumerate(zip(wred_t_list, stage_params)):
        if s >= 1:
            wred = wred.at[s - 1, :wt.shape[0], :wt.shape[1]].set(wt)
        w1 = w1.at[s, :p[0].shape[0], :].set(p[0])
        vecs = vecs.at[s, 0, :].set(p[1][0])           # b1
        vecs = vecs.at[s, 1, :].set(p[2][0])           # gamma1
        vecs = vecs.at[s, 2, :].set(p[3][0])           # beta1
        vecs = vecs.at[s, 3, :].set(p[5][0])           # b2
        vecs = vecs.at[s, 4, :].set(p[6][0])           # gamma2
        vecs = vecs.at[s, 5, :].set(p[7][0])           # beta2
        vecs = vecs.at[s, 6, :out_size].set(p[9][0])   # b3 (padded to H)
    w2 = jnp.stack([p[4] for p in stage_params], axis=0)   # (D, H, H)
    w3 = jnp.stack([p[8] for p in stage_params], axis=0)   # (D, H, OUT)
    return (wred, w1, vecs, w2, w3)


# ------------------------------ pure-JAX reference ---------------------------

def _ref_stage(x, wred_t, p, out_size):
    w1, b1, g1, be1, w2, b2, g2, be2, w3, b3 = p
    xr = x @ wred_t

    def leaky(v):
        return jnp.where(v > 0, v, NEG_SLOPE * v)

    def bn(v, g, b):
        mean = jnp.mean(v, axis=0, keepdims=True)
        var = jnp.mean((v - mean) ** 2, axis=0, keepdims=True)
        return (v - mean) / jnp.sqrt(var + EPS) * g + b

    h = bn(leaky(xr @ w1 + b1), g1, be1)
    h = bn(leaky(h @ w2 + b2), g2, be2)
    o = h @ w3 + b3
    if out_size > 1:
        o = jax.nn.softmax(o, axis=1)
    return xr, o


def _ref_forward(x, wred_t_list, stage_params, out_size):
    outs = []
    cur = x
    for wred_t, p in zip(wred_t_list, stage_params):
        cur, o = _ref_stage(cur, wred_t, p, out_size)
        outs.append(o)
    return outs


# ----------------------------------- main ------------------------------------

if __name__ == "__main__":
    B, D, HIDDEN, OUT = 4, 6, 32, 3   # input_dim == first_dim == 6

    key = jax.random.PRNGKey(0)
    key, kx, kp = jax.random.split(key, 3)
    x = jax.random.normal(kx, (B, D), jnp.float32)

    wred_t_list, stage_params = init_reduction_net(kp, D, OUT, HIDDEN)
    stacked = stack_and_pad(wred_t_list, stage_params, D, HIDDEN, OUT)

    outs = reduction_net_forward(x, stacked, OUT)
    outs = jax.block_until_ready(outs)

    refs = _ref_forward(x, wred_t_list, stage_params, OUT)
    for o, r in zip(outs, refs):
        assert o.shape == (B, OUT)
        assert jnp.allclose(o, r, atol=2e-4, rtol=2e-4), "mismatch vs reference"

    print("KERNEL_OK")
</pallas_src>

<mosaic_0001>
module attributes {stable_mosaic.version = 11 : i64} {
  func.func @_fused_kernel(%arg0: memref<4x6xf32, #tpu.memory_space<vmem>>, %arg1: memref<5x6x6xf32, #tpu.memory_space<vmem>>, %arg2: memref<6x6x32xf32, #tpu.memory_space<vmem>>, %arg3: memref<6x8x32xf32, #tpu.memory_space<vmem>>, %arg4: memref<6x32x32xf32, #tpu.memory_space<vmem>>, %arg5: memref<6x32x3xf32, #tpu.memory_space<vmem>>, %arg6: memref<6x4x3xf32, #tpu.memory_space<vmem>>) attributes {dimension_semantics = [], scalar_prefetch = 0 : i64, scratch_operands = 0 : i64, tpu.core_type = #tpu.core_type<tc>} {
    %c0 = arith.constant 0 : index
    %c0_0 = arith.constant 0 : index
    %0 = vector.load %arg0[%c0, %c0_0] : memref<4x6xf32, #tpu.memory_space<vmem>>, vector<4x6xf32>
    %c0_1 = arith.constant 0 : index
    %c0_2 = arith.constant 0 : index
    %c0_3 = arith.constant 0 : index
    %1 = vector.load %arg3[%c0_1, %c0_2, %c0_3] : memref<6x8x32xf32, #tpu.memory_space<vmem>>, vector<1x8x32xf32>
    %2 = vector.shape_cast %1 : vector<1x8x32xf32> to vector<8x32xf32>
    %3 = vector.extract_strided_slice %2 {offsets = [0, 0], sizes = [1, 32], strides = [1, 1]} : vector<8x32xf32> to vector<1x32xf32>
    %4 = vector.extract_strided_slice %2 {offsets = [1, 0], sizes = [1, 32], strides = [1, 1]} : vector<8x32xf32> to vector<1x32xf32>
    %5 = vector.extract_strided_slice %2 {offsets = [2, 0], sizes = [1, 32], strides = [1, 1]} : vector<8x32xf32> to vector<1x32xf32>
    %6 = vector.extract_strided_slice %2 {offsets = [3, 0], sizes = [1, 32], strides = [1, 1]} : vector<8x32xf32> to vector<1x32xf32>
    %7 = vector.extract_strided_slice %2 {offsets = [4, 0], sizes = [1, 32], strides = [1, 1]} : vector<8x32xf32> to vector<1x32xf32>
    %8 = vector.extract_strided_slice %2 {offsets = [5, 0], sizes = [1, 32], strides = [1, 1]} : vector<8x32xf32> to vector<1x32xf32>
    %9 = vector.extract_strided_slice %2 {offsets = [6, 0], sizes = [1, 3], strides = [1, 1]} : vector<8x32xf32> to vector<1x3xf32>
    %c0_4 = arith.constant 0 : index
    %c0_5 = arith.constant 0 : index
    %c0_6 = arith.constant 0 : index
    %10 = vector.load %arg2[%c0_4, %c0_5, %c0_6] : memref<6x6x32xf32, #tpu.memory_space<vmem>>, vector<1x6x32xf32>
    %11 = vector.shape_cast %10 : vector<1x6x32xf32> to vector<6x32xf32>
    %cst = arith.constant dense<0.000000e+00> : vector<4x32xf32>
    %12 = tpu.matmul %0, %11, %cst {dimension_numbers = #tpu.dot_dimension_numbers<[1], [0], [0], [1], [0, 0, 1, 1], [], []>} : vector<4x6xf32>, vector<6x32xf32>, vector<4x32xf32> -> vector<4x32xf32>
    %13 = vector.broadcast %3 : vector<1x32xf32> to vector<4x32xf32>
    %14 = arith.addf %12, %13 : vector<4x32xf32>
    %cst_7 = arith.constant 0.000000e+00 : f32
    %15 = vector.broadcast %cst_7 : f32 to vector<4x32xf32>
    %16 = arith.cmpf ogt, %14, %15 : vector<4x32xf32>
    %cst_8 = arith.constant 0.00999999977 : f32
    %17 = vector.broadcast %cst_8 : f32 to vector<4x32xf32>
    %18 = arith.mulf %17, %14 : vector<4x32xf32>
    %19 = arith.select %16, %14, %18 : vector<4x32xi1>, vector<4x32xf32>
    %cst_9 = arith.constant dense<0.000000e+00> : vector<32xf32>
    %20 = vector.multi_reduction <add>, %19, %cst_9 [0] : vector<4x32xf32> to vector<32xf32>
    %21 = vector.shape_cast %20 : vector<32xf32> to vector<1x32xf32>
    %cst_10 = arith.constant 4.000000e+00 : f32
    %22 = vector.broadcast %cst_10 : f32 to vector<1x32xf32>
    %23 = arith.divf %21, %22 : vector<1x32xf32>
    %24 = arith.mulf %19, %19 : vector<4x32xf32>
    %cst_11 = arith.constant dense<0.000000e+00> : vector<32xf32>
    %25 = vector.multi_reduction <add>, %24, %cst_11 [0] : vector<4x32xf32> to vector<32xf32>
    %26 = vector.shape_cast %25 : vector<32xf32> to vector<1x32xf32>
    %cst_12 = arith.constant 4.000000e+00 : f32
    %27 = vector.broadcast %cst_12 : f32 to vector<1x32xf32>
    %28 = arith.divf %26, %27 : vector<1x32xf32>
    %29 = arith.mulf %23, %23 : vector<1x32xf32>
    %30 = arith.subf %28, %29 : vector<1x32xf32>
    %cst_13 = arith.constant 9.99999974E-6 : f32
    %31 = vector.broadcast %cst_13 : f32 to vector<1x32xf32>
    %32 = arith.addf %30, %31 : vector<1x32xf32>
    %33 = math.rsqrt %32 : vector<1x32xf32>
    %34 = arith.mulf %4, %33 : vector<1x32xf32>
    %35 = vector.broadcast %34 : vector<1x32xf32> to vector<4x32xf32>
    %36 = arith.mulf %19, %35 : vector<4x32xf32>
    %37 = arith.mulf %23, %34 : vector<1x32xf32>
    %38 = arith.subf %5, %37 : vector<1x32xf32>
    %39 = vector.broadcast %38 : vector<1x32xf32> to vector<4x32xf32>
    %40 = arith.addf %36, %39 : vector<4x32xf32>
    %c0_14 = arith.constant 0 : index
    %c0_15 = arith.constant 0 : index
    %c0_16 = arith.constant 0 : index
    %41 = vector.load %arg4[%c0_14, %c0_15, %c0_16] : memref<6x32x32xf32, #tpu.memory_space<vmem>>, vector<1x32x32xf32>
    %42 = vector.shape_cast %41 : vector<1x32x32xf32> to vector<32x32xf32>
    %cst_17 = arith.constant dense<0.000000e+00> : vector<4x32xf32>
    %43 = tpu.matmul %40, %42, %cst_17 {dimension_numbers = #tpu.dot_dimension_numbers<[1], [0], [0], [1], [0, 0, 1, 1], [], []>} : vector<4x32xf32>, vector<32x32xf32>, vector<4x32xf32> -> vector<4x32xf32>
    %44 = vector.broadcast %6 : vector<1x32xf32> to vector<4x32xf32>
    %45 = arith.addf %43, %44 : vector<4x32xf32>
    %cst_18 = arith.constant 0.000000e+00 : f32
    %46 = vector.broadcast %cst_18 : f32 to vector<4x32xf32>
    %47 = arith.cmpf ogt, %45, %46 : vector<4x32xf32>
    %cst_19 = arith.constant 0.00999999977 : f32
    %48 = vector.broadcast %cst_19 : f32 to vector<4x32xf32>
    %49 = arith.mulf %48, %45 : vector<4x32xf32>
    %50 = arith.select %47, %45, %49 : vector<4x32xi1>, vector<4x32xf32>
    %cst_20 = arith.constant dense<0.000000e+00> : vector<32xf32>
    %51 = vector.multi_reduction <add>, %50, %cst_20 [0] : vector<4x32xf32> to vector<32xf32>
    %52 = vector.shape_cast %51 : vector<32xf32> to vector<1x32xf32>
    %cst_21 = arith.constant 4.000000e+00 : f32
    %53 = vector.broadcast %cst_21 : f32 to vector<1x32xf32>
    %54 = arith.divf %52, %53 : vector<1x32xf32>
    %55 = arith.mulf %50, %50 : vector<4x32xf32>
    %cst_22 = arith.constant dense<0.000000e+00> : vector<32xf32>
    %56 = vector.multi_reduction <add>, %55, %cst_22 [0] : vector<4x32xf32> to vector<32xf32>
    %57 = vector.shape_cast %56 : vector<32xf32> to vector<1x32xf32>
    %cst_23 = arith.constant 4.000000e+00 : f32
    %58 = vector.broadcast %cst_23 : f32 to vector<1x32xf32>
    %59 = arith.divf %57, %58 : vector<1x32xf32>
    %60 = arith.mulf %54, %54 : vector<1x32xf32>
    %61 = arith.subf %59, %60 : vector<1x32xf32>
    %cst_24 = arith.constant 9.99999974E-6 : f32
    %62 = vector.broadcast %cst_24 : f32 to vector<1x32xf32>
    %63 = arith.addf %61, %62 : vector<1x32xf32>
    %64 = math.rsqrt %63 : vector<1x32xf32>
    %65 = arith.mulf %7, %64 : vector<1x32xf32>
    %66 = vector.broadcast %65 : vector<1x32xf32> to vector<4x32xf32>
    %67 = arith.mulf %50, %66 : vector<4x32xf32>
    %68 = arith.mulf %54, %65 : vector<1x32xf32>
    %69 = arith.subf %8, %68 : vector<1x32xf32>
    %70 = vector.broadcast %69 : vector<1x32xf32> to vector<4x32xf32>
    %71 = arith.addf %67, %70 : vector<4x32xf32>
    %c0_25 = arith.constant 0 : index
    %c0_26 = arith.constant 0 : index
    %c0_27 = arith.constant 0 : index
    %72 = vector.load %arg5[%c0_25, %c0_26, %c0_27] : memref<6x32x3xf32, #tpu.memory_space<vmem>>, vector<1x32x3xf32>
    %73 = vector.shape_cast %72 : vector<1x32x3xf32> to vector<32x3xf32>
    %cst_28 = arith.constant dense<0.000000e+00> : vector<4x3xf32>
    %74 = tpu.matmul %71, %73, %cst_28 {dimension_numbers = #tpu.dot_dimension_numbers<[1], [0], [0], [1], [0, 0, 1, 1], [], []>} : vector<4x32xf32>, vector<32x3xf32>, vector<4x3xf32> -> vector<4x3xf32>
    %75 = vector.broadcast %9 : vector<1x3xf32> to vector<4x3xf32>
    %76 = arith.addf %74, %75 : vector<4x3xf32>
    %cst_29 = arith.constant dense<0xFF800000> : vector<4xf32>
    %77 = vector.multi_reduction <maximumf>, %76, %cst_29 [1] : vector<4x3xf32> to vector<4xf32>
    %78 = vector.shape_cast %77 : vector<4xf32> to vector<4x1xf32>
    %79 = vector.broadcast %78 : vector<4x1xf32> to vector<4x3xf32>
    %80 = arith.subf %76, %79 : vector<4x3xf32>
    %81 = math.exp %80 : vector<4x3xf32>
    %cst_30 = arith.constant dense<0.000000e+00> : vector<4xf32>
    %82 = vector.multi_reduction <add>, %81, %cst_30 [1] : vector<4x3xf32> to vector<4xf32>
    %83 = vector.shape_cast %82 : vector<4xf32> to vector<4x1xf32>
    %84 = tpu.reciprocal %83 {approx = true} : vector<4x1xf32> -> vector<4x1xf32>
    %85 = arith.mulf %83, %84 : vector<4x1xf32>
    %cst_31 = arith.constant 2.000000e+00 : f32
    %86 = vector.broadcast %cst_31 : f32 to vector<4x1xf32>
    %87 = arith.subf %86, %85 : vector<4x1xf32>
    %88 = arith.mulf %84, %87 : vector<4x1xf32>
    %89 = vector.broadcast %88 : vector<4x1xf32> to vector<4x3xf32>
    %90 = arith.mulf %81, %89 : vector<4x3xf32>
    %c0_32 = arith.constant 0 : index
    %c0_33 = arith.constant 0 : index
    %c0_34 = arith.constant 0 : index
    %91 = vector.load %arg6[%c0_32, %c0_33, %c0_34] : memref<6x4x3xf32, #tpu.memory_space<vmem>>, vector<1x4x3xf32>
    %92 = vector.shape_cast %91 : vector<1x4x3xf32> to vector<4x3xf32>
    %93 = vector.shape_cast %90 : vector<4x3xf32> to vector<1x4x3xf32>
    tpu.vector_store %arg6[%c0_32, %c0_33, %c0_34], %93 {strides = array<i32>} : memref<6x4x3xf32, #tpu.memory_space<vmem>>, vector<1x4x3xf32>,
    %c0_35 = arith.constant 0 : index
    %c0_36 = arith.constant 0 : index
    %c0_37 = arith.constant 0 : index
    %94 = vector.load %arg1[%c0_35, %c0_36, %c0_37] : memref<5x6x6xf32, #tpu.memory_space<vmem>>, vector<1x6x6xf32>
    %95 = vector.shape_cast %94 : vector<1x6x6xf32> to vector<6x6xf32>
    %cst_38 = arith.constant dense<0.000000e+00> : vector<4x6xf32>
    %96 = tpu.matmul %0, %95, %cst_38 {dimension_numbers = #tpu.dot_dimension_numbers<[1], [0], [0], [1], [0, 0, 1, 1], [], []>} : vector<4x6xf32>, vector<6x6xf32>, vector<4x6xf32> -> vector<4x6xf32>
    %c1 = arith.constant 1 : index
    %c0_39 = arith.constant 0 : index
    %c0_40 = arith.constant 0 : index
    %97 = vector.load %arg3[%c1, %c0_39, %c0_40] : memref<6x8x32xf32, #tpu.memory_space<vmem>>, vector<1x8x32xf32>
    %98 = vector.shape_cast %97 : vector<1x8x32xf32> to vector<8x32xf32>
    %99 = vector.extract_strided_slice %98 {offsets = [0, 0], sizes = [1, 32], strides = [1, 1]} : vector<8x32xf32> to vector<1x32xf32>
    %100 = vector.extract_strided_slice %98 {offsets = [1, 0], sizes = [1, 32], strides = [1, 1]} : vector<8x32xf32> to vector<1x32xf32>
    %101 = vector.extract_strided_slice %98 {offsets = [2, 0], sizes = [1, 32], strides = [1, 1]} : vector<8x32xf32> to vector<1x32xf32>
    %102 = vector.extract_strided_slice %98 {offsets = [3, 0], sizes = [1, 32], strides = [1, 1]} : vector<8x32xf32> to vector<1x32xf32>
    %103 = vector.extract_strided_slice %98 {offsets = [4, 0], sizes = [1, 32], strides = [1, 1]} : vector<8x32xf32> to vector<1x32xf32>
    %104 = vector.extract_strided_slice %98 {offsets = [5, 0], sizes = [1, 32], strides = [1, 1]} : vector<8x32xf32> to vector<1x32xf32>
    %105 = vector.extract_strided_slice %98 {offsets = [6, 0], sizes = [1, 3], strides = [1, 1]} : vector<8x32xf32> to vector<1x3xf32>
    %c1_41 = arith.constant 1 : index
    %c0_42 = arith.constant 0 : index
    %c0_43 = arith.constant 0 : index
    %106 = vector.load %arg2[%c1_41, %c0_42, %c0_43] : memref<6x6x32xf32, #tpu.memory_space<vmem>>, vector<1x6x32xf32>
    %107 = vector.shape_cast %106 : vector<1x6x32xf32> to vector<6x32xf32>
    %cst_44 = arith.constant dense<0.000000e+00> : vector<4x32xf32>
    %108 = tpu.matmul %96, %107, %cst_44 {dimension_numbers = #tpu.dot_dimension_numbers<[1], [0], [0], [1], [0, 0, 1, 1], [], []>} : vector<4x6xf32>, vector<6x32xf32>, vector<4x32xf32> -> vector<4x32xf32>
    %109 = vector.broadcast %99 : vector<1x32xf32> to vector<4x32xf32>
    %110 = arith.addf %108, %109 : vector<4x32xf32>
    %cst_45 = arith.constant 0.000000e+00 : f32
    %111 = vector.broadcast %cst_45 : f32 to vector<4x32xf32>
    %112 = arith.cmpf ogt, %110, %111 : vector<4x32xf32>
    %cst_46 = arith.constant 0.00999999977 : f32
    %113 = vector.broadcast %cst_46 : f32 to vector<4x32xf32>
    %114 = arith.mulf %113, %110 : vector<4x32xf32>
    %115 = arith.select %112, %110, %114 : vector<4x32xi1>, vector<4x32xf32>
    %cst_47 = arith.constant dense<0.000000e+00> : vector<32xf32>
    %116 = vector.multi_reduction <add>, %115, %cst_47 [0] : vector<4x32xf32> to vector<32xf32>
    %117 = vector.shape_cast %116 : vector<32xf32> to vector<1x32xf32>
    %cst_48 = arith.constant 4.000000e+00 : f32
    %118 = vector.broadcast %cst_48 : f32 to vector<1x32xf32>
    %119 = arith.divf %117, %118 : vector<1x32xf32>
    %120 = arith.mulf %115, %115 : vector<4x32xf32>
    %cst_49 = arith.constant dense<0.000000e+00> : vector<32xf32>
    %121 = vector.multi_reduction <add>, %120, %cst_49 [0] : vector<4x32xf32> to vector<32xf32>
    %122 = vector.shape_cast %121 : vector<32xf32> to vector<1x32xf32>
    %cst_50 = arith.constant 4.000000e+00 : f32
    %123 = vector.broadcast %cst_50 : f32 to vector<1x32xf32>
    %124 = arith.divf %122, %123 : vector<1x32xf32>
    %125 = arith.mulf %119, %119 : vector<1x32xf32>
    %126 = arith.subf %124, %125 : vector<1x32xf32>
    %cst_51 = arith.constant 9.99999974E-6 : f32
    %127 = vector.broadcast %cst_51 : f32 to vector<1x32xf32>
    %128 = arith.addf %126, %127 : vector<1x32xf32>
    %129 = math.rsqrt %128 : vector<1x32xf32>
    %130 = arith.mulf %100, %129 : vector<1x32xf32>
    %131 = vector.broadcast %130 : vector<1x32xf32> to vector<4x32xf32>
    %132 = arith.mulf %115, %131 : vector<4x32xf32>
    %133 = arith.mulf %119, %130 : vector<1x32xf32>
    %134 = arith.subf %101, %133 : vector<1x32xf32>
    %135 = vector.broadcast %134 : vector<1x32xf32> to vector<4x32xf32>
    %136 = arith.addf %132, %135 : vector<4x32xf32>
    %c1_52 = arith.constant 1 : index
    %c0_53 = arith.constant 0 : index
    %c0_54 = arith.constant 0 : index
    %137 = vector.load %arg4[%c1_52, %c0_53, %c0_54] : memref<6x32x32xf32, #tpu.memory_space<vmem>>, vector<1x32x32xf32>
    %138 = vector.shape_cast %137 : vector<1x32x32xf32> to vector<32x32xf32>
    %cst_55 = arith.constant dense<0.000000e+00> : vector<4x32xf32>
    %139 = tpu.matmul %136, %138, %cst_55 {dimension_numbers = #tpu.dot_dimension_numbers<[1], [0], [0], [1], [0, 0, 1, 1], [], []>} : vector<4x32xf32>, vector<32x32xf32>, vector<4x32xf32> -> vector<4x32xf32>
    %140 = vector.broadcast %102 : vector<1x32xf32> to vector<4x32xf32>
    %141 = arith.addf %139, %140 : vector<4x32xf32>
    %cst_56 = arith.constant 0.000000e+00 : f32
    %142 = vector.broadcast %cst_56 : f32 to vector<4x32xf32>
    %143 = arith.cmpf ogt, %141, %142 : vector<4x32xf32>
    %cst_57 = arith.constant 0.00999999977 : f32
    %144 = vector.broadcast %cst_57 : f32 to vector<4x32xf32>
    %145 = arith.mulf %144, %141 : vector<4x32xf32>
    %146 = arith.select %143, %141, %145 : vector<4x32xi1>, vector<4x32xf32>
    %cst_58 = arith.constant dense<0.000000e+00> : vector<32xf32>
    %147 = vector.multi_reduction <add>, %146, %cst_58 [0] : vector<4x32xf32> to vector<32xf32>
    %148 = vector.shape_cast %147 : vector<32xf32> to vector<1x32xf32>
    %cst_59 = arith.constant 4.000000e+00 : f32
    %149 = vector.broadcast %cst_59 : f32 to vector<1x32xf32>
    %150 = arith.divf %148, %149 : vector<1x32xf32>
    %151 = arith.mulf %146, %146 : vector<4x32xf32>
    %cst_60 = arith.constant dense<0.000000e+00> : vector<32xf32>
    %152 = vector.multi_reduction <add>, %151, %cst_60 [0] : vector<4x32xf32> to vector<32xf32>
    %153 = vector.shape_cast %152 : vector<32xf32> to vector<1x32xf32>
    %cst_61 = arith.constant 4.000000e+00 : f32
    %154 = vector.broadcast %cst_61 : f32 to vector<1x32xf32>
    %155 = arith.divf %153, %154 : vector<1x32xf32>
    %156 = arith.mulf %150, %150 : vector<1x32xf32>
    %157 = arith.subf %155, %156 : vector<1x32xf32>
    %cst_62 = arith.constant 9.99999974E-6 : f32
    %158 = vector.broadcast %cst_62 : f32 to vector<1x32xf32>
    %159 = arith.addf %157, %158 : vector<1x32xf32>
    %160 = math.rsqrt %159 : vector<1x32xf32>
    %161 = arith.mulf %103, %160 : vector<1x32xf32>
    %162 = vector.broadcast %161 : vector<1x32xf32> to vector<4x32xf32>
    %163 = arith.mulf %146, %162 : vector<4x32xf32>
    %164 = arith.mulf %150, %161 : vector<1x32xf32>
    %165 = arith.subf %104, %164 : vector<1x32xf32>
    %166 = vector.broadcast %165 : vector<1x32xf32> to vector<4x32xf32>
    %167 = arith.addf %163, %166 : vector<4x32xf32>
    %c1_63 = arith.constant 1 : index
    %c0_64 = arith.constant 0 : index
    %c0_65 = arith.constant 0 : index
    %168 = vector.load %arg5[%c1_63, %c0_64, %c0_65] : memref<6x32x3xf32, #tpu.memory_space<vmem>>, vector<1x32x3xf32>
    %169 = vector.shape_cast %168 : vector<1x32x3xf32> to vector<32x3xf32>
    %cst_66 = arith.constant dense<0.000000e+00> : vector<4x3xf32>
    %170 = tpu.matmul %167, %169, %cst_66 {dimension_numbers = #tpu.dot_dimension_numbers<[1], [0], [0], [1], [0, 0, 1, 1], [], []>} : vector<4x32xf32>, vector<32x3xf32>, vector<4x3xf32> -> vector<4x3xf32>
    %171 = vector.broadcast %105 : vector<1x3xf32> to vector<4x3xf32>
    %172 = arith.addf %170, %171 : vector<4x3xf32>
    %cst_67 = arith.constant dense<0xFF800000> : vector<4xf32>
    %173 = vector.multi_reduction <maximumf>, %172, %cst_67 [1] : vector<4x3xf32> to vector<4xf32>
    %174 = vector.shape_cast %173 : vector<4xf32> to vector<4x1xf32>
    %175 = vector.broadcast %174 : vector<4x1xf32> to vector<4x3xf32>
    %176 = arith.subf %172, %175 : vector<4x3xf32>
    %177 = math.exp %176 : vector<4x3xf32>
    %cst_68 = arith.constant dense<0.000000e+00> : vector<4xf32>
    %178 = vector.multi_reduction <add>, %177, %cst_68 [1] : vector<4x3xf32> to vector<4xf32>
    %179 = vector.shape_cast %178 : vector<4xf32> to vector<4x1xf32>
    %180 = tpu.reciprocal %179 {approx = true} : vector<4x1xf32> -> vector<4x1xf32>
    %181 = arith.mulf %179, %180 : vector<4x1xf32>
    %cst_69 = arith.constant 2.000000e+00 : f32
    %182 = vector.broadcast %cst_69 : f32 to vector<4x1xf32>
    %183 = arith.subf %182, %181 : vector<4x1xf32>
    %184 = arith.mulf %180, %183 : vector<4x1xf32>
    %185 = vector.broadcast %184 : vector<4x1xf32> to vector<4x3xf32>
    %186 = arith.mulf %177, %185 : vector<4x3xf32>
    %c1_70 = arith.constant 1 : index
    %c0_71 = arith.constant 0 : index
    %c0_72 = arith.constant 0 : index
    %187 = vector.load %arg6[%c1_70, %c0_71, %c0_72] : memref<6x4x3xf32, #tpu.memory_space<vmem>>, vector<1x4x3xf32>
    %188 = vector.shape_cast %187 : vector<1x4x3xf32> to vector<4x3xf32>
    %189 = vector.shape_cast %186 : vector<4x3xf32> to vector<1x4x3xf32>
    tpu.vector_store %arg6[%c1_70, %c0_71, %c0_72], %189 {strides = array<i32>} : memref<6x4x3xf32, #tpu.memory_space<vmem>>, vector<1x4x3xf32>,
    %c1_73 = arith.constant 1 : index
    %c0_74 = arith.constant 0 : index
    %c0_75 = arith.constant 0 : index
    %190 = vector.load %arg1[%c1_73, %c0_74, %c0_75] : memref<5x6x6xf32, #tpu.memory_space<vmem>>, vector<1x6x6xf32>
    %191 = vector.shape_cast %190 : vector<1x6x6xf32> to vector<6x6xf32>
    %cst_76 = arith.constant dense<0.000000e+00> : vector<4x6xf32>
    %192 = tpu.matmul %96, %191, %cst_76 {dimension_numbers = #tpu.dot_dimension_numbers<[1], [0], [0], [1], [0, 0, 1, 1], [], []>} : vector<4x6xf32>, vector<6x6xf32>, vector<4x6xf32> -> vector<4x6xf32>
    %c2 = arith.constant 2 : index
    %c0_77 = arith.constant 0 : index
    %c0_78 = arith.constant 0 : index
    %193 = vector.load %arg3[%c2, %c0_77, %c0_78] : memref<6x8x32xf32, #tpu.memory_space<vmem>>, vector<1x8x32xf32>
    %194 = vector.shape_cast %193 : vector<1x8x32xf32> to vector<8x32xf32>
    %195 = vector.extract_strided_slice %194 {offsets = [0, 0], sizes = [1, 32], strides = [1, 1]} : vector<8x32xf32> to vector<1x32xf32>
    %196 = vector.extract_strided_slice %194 {offsets = [1, 0], sizes = [1, 32], strides = [1, 1]} : vector<8x32xf32> to vector<1x32xf32>
    %197 = vector.extract_strided_slice %194 {offsets = [2, 0], sizes = [1, 32], strides = [1, 1]} : vector<8x32xf32> to vector<1x32xf32>
    %198 = vector.extract_strided_slice %194 {offsets = [3, 0], sizes = [1, 32], strides = [1, 1]} : vector<8x32xf32> to vector<1x32xf32>
    %199 = vector.extract_strided_slice %194 {offsets = [4, 0], sizes = [1, 32], strides = [1, 1]} : vector<8x32xf32> to vector<1x32xf32>
    %200 = vector.extract_strided_slice %194 {offsets = [5, 0], sizes = [1, 32], strides = [1, 1]} : vector<8x32xf32> to vector<1x32xf32>
    %201 = vector.extract_strided_slice %194 {offsets = [6, 0], sizes = [1, 3], strides = [1, 1]} : vector<8x32xf32> to vector<1x3xf32>
    %c2_79 = arith.constant 2 : index
    %c0_80 = arith.constant 0 : index
    %c0_81 = arith.constant 0 : index
    %202 = vector.load %arg2[%c2_79, %c0_80, %c0_81] : memref<6x6x32xf32, #tpu.memory_space<vmem>>, vector<1x6x32xf32>
    %203 = vector.shape_cast %202 : vector<1x6x32xf32> to vector<6x32xf32>
    %cst_82 = arith.constant dense<0.000000e+00> : vector<4x32xf32>
    %204 = tpu.matmul %192, %203, %cst_82 {dimension_numbers = #tpu.dot_dimension_numbers<[1], [0], [0], [1], [0, 0, 1, 1], [], []>} : vector<4x6xf32>, vector<6x32xf32>, vector<4x32xf32> -> vector<4x32xf32>
    %205 = vector.broadcast %195 : vector<1x32xf32> to vector<4x32xf32>
    %206 = arith.addf %204, %205 : vector<4x32xf32>
    %cst_83 = arith.constant 0.000000e+00 : f32
    %207 = vector.broadcast %cst_83 : f32 to vector<4x32xf32>
    %208 = arith.cmpf ogt, %206, %207 : vector<4x32xf32>
    %cst_84 = arith.constant 0.00999999977 : f32
    %209 = vector.broadcast %cst_84 : f32 to vector<4x32xf32>
    %210 = arith.mulf %209, %206 : vector<4x32xf32>
    %211 = arith.select %208, %206, %210 : vector<4x32xi1>, vector<4x32xf32>
    %cst_85 = arith.constant dense<0.000000e+00> : vector<32xf32>
    %212 = vector.multi_reduction <add>, %211, %cst_85 [0] : vector<4x32xf32> to vector<32xf32>
    %213 = vector.shape_cast %212 : vector<32xf32> to vector<1x32xf32>
    %cst_86 = arith.constant 4.000000e+00 : f32
    %214 = vector.broadcast %cst_86 : f32 to vector<1x32xf32>
    %215 = arith.divf %213, %214 : vector<1x32xf32>
    %216 = arith.mulf %211, %211 : vector<4x32xf32>
    %cst_87 = arith.constant dense<0.000000e+00> : vector<32xf32>
    %217 = vector.multi_reduction <add>, %216, %cst_87 [0] : vector<4x32xf32> to vector<32xf32>
    %218 = vector.shape_cast %217 : vector<32xf32> to vector<1x32xf32>
    %cst_88 = arith.constant 4.000000e+00 : f32
    %219 = vector.broadcast %cst_88 : f32 to vector<1x32xf32>
    %220 = arith.divf %218, %219 : vector<1x32xf32>
    %221 = arith.mulf %215, %215 : vector<1x32xf32>
    %222 = arith.subf %220, %221 : vector<1x32xf32>
    %cst_89 = arith.constant 9.99999974E-6 : f32
    %223 = vector.broadcast %cst_89 : f32 to vector<1x32xf32>
    %224 = arith.addf %222, %223 : vector<1x32xf32>
    %225 = math.rsqrt %224 : vector<1x32xf32>
    %226 = arith.mulf %196, %225 : vector<1x32xf32>
    %227 = vector.broadcast %226 : vector<1x32xf32> to vector<4x32xf32>
    %228 = arith.mulf %211, %227 : vector<4x32xf32>
    %229 = arith.mulf %215, %226 : vector<1x32xf32>
    %230 = arith.subf %197, %229 : vector<1x32xf32>
    %231 = vector.broadcast %230 : vector<1x32xf32> to vector<4x32xf32>
    %232 = arith.addf %228, %231 : vector<4x32xf32>
    %c2_90 = arith.constant 2 : index
    %c0_91 = arith.constant 0 : index
    %c0_92 = arith.constant 0 : index
    %233 = vector.load %arg4[%c2_90, %c0_91, %c0_92] : memref<6x32x32xf32, #tpu.memory_space<vmem>>, vector<1x32x32xf32>
    %234 = vector.shape_cast %233 : vector<1x32x32xf32> to vector<32x32xf32>
    %cst_93 = arith.constant dense<0.000000e+00> : vector<4x32xf32>
    %235 = tpu.matmul %232, %234, %cst_93 {dimension_numbers = #tpu.dot_dimension_numbers<[1], [0], [0], [1], [0, 0, 1, 1], [], []>} : vector<4x32xf32>, vector<32x32xf32>, vector<4x32xf32> -> vector<4x32xf32>
    %236 = vector.broadcast %198 : vector<1x32xf32> to vector<4x32xf32>
    %237 = arith.addf %235, %236 : vector<4x32xf32>
    %cst_94 = arith.constant 0.000000e+00 : f32
    %238 = vector.broadcast %cst_94 : f32 to vector<4x32xf32>
    %239 = arith.cmpf ogt, %237, %238 : vector<4x32xf32>
    %cst_95 = arith.constant 0.00999999977 : f32
    %240 = vector.broadcast %cst_95 : f32 to vector<4x32xf32>
    %241 = arith.mulf %240, %237 : vector<4x32xf32>
    %242 = arith.select %239, %237, %241 : vector<4x32xi1>, vector<4x32xf32>
    %cst_96 = arith.constant dense<0.000000e+00> : vector<32xf32>
    %243 = vector.multi_reduction <add>, %242, %cst_96 [0] : vector<4x32xf32> to vector<32xf32>
    %244 = vector.shape_cast %243 : vector<32xf32> to vector<1x32xf32>
    %cst_97 = arith.constant 4.000000e+00 : f32
    %245 = vector.broadcast %cst_97 : f32 to vector<1x32xf32>
    %246 = arith.divf %244, %245 : vector<1x32xf32>
    %247 = arith.mulf %242, %242 : vector<4x32xf32>
    %cst_98 = arith.constant dense<0.000000e+00> : vector<32xf32>
    %248 = vector.multi_reduction <add>, %247, %cst_98 [0] : vector<4x32xf32> to vector<32xf32>
    %249 = vector.shape_cast %248 : vector<32xf32> to vector<1x32xf32>
    %cst_99 = arith.constant 4.000000e+00 : f32
    %250 = vector.broadcast %cst_99 : f32 to vector<1x32xf32>
    %251 = arith.divf %249, %250 : vector<1x32xf32>
    %252 = arith.mulf %246, %246 : vector<1x32xf32>
    %253 = arith.subf %251, %252 : vector<1x32xf32>
    %cst_100 = arith.constant 9.99999974E-6 : f32
    %254 = vector.broadcast %cst_100 : f32 to vector<1x32xf32>
    %255 = arith.addf %253, %254 : vector<1x32xf32>
    %256 = math.rsqrt %255 : vector<1x32xf32>
    %257 = arith.mulf %199, %256 : vector<1x32xf32>
    %258 = vector.broadcast %257 : vector<1x32xf32> to vector<4x32xf32>
    %259 = arith.mulf %242, %258 : vector<4x32xf32>
    %260 = arith.mulf %246, %257 : vector<1x32xf32>
    %261 = arith.subf %200, %260 : vector<1x32xf32>
    %262 = vector.broadcast %261 : vector<1x32xf32> to vector<4x32xf32>
    %263 = arith.addf %259, %262 : vector<4x32xf32>
    %c2_101 = arith.constant 2 : index
    %c0_102 = arith.constant 0 : index
    %c0_103 = arith.constant 0 : index
    %264 = vector.load %arg5[%c2_101, %c0_102, %c0_103] : memref<6x32x3xf32, #tpu.memory_space<vmem>>, vector<1x32x3xf32>
    %265 = vector.shape_cast %264 : vector<1x32x3xf32> to vector<32x3xf32>
    %cst_104 = arith.constant dense<0.000000e+00> : vector<4x3xf32>
    %266 = tpu.matmul %263, %265, %cst_104 {dimension_numbers = #tpu.dot_dimension_numbers<[1], [0], [0], [1], [0, 0, 1, 1], [], []>} : vector<4x32xf32>, vector<32x3xf32>, vector<4x3xf32> -> vector<4x3xf32>
    %267 = vector.broadcast %201 : vector<1x3xf32> to vector<4x3xf32>
    %268 = arith.addf %266, %267 : vector<4x3xf32>
    %cst_105 = arith.constant dense<0xFF800000> : vector<4xf32>
    %269 = vector.multi_reduction <maximumf>, %268, %cst_105 [1] : vector<4x3xf32> to vector<4xf32>
    %270 = vector.shape_cast %269 : vector<4xf32> to vector<4x1xf32>
    %271 = vector.broadcast %270 : vector<4x1xf32> to vector<4x3xf32>
    %272 = arith.subf %268, %271 : vector<4x3xf32>
    %273 = math.exp %272 : vector<4x3xf32>
    %cst_106 = arith.constant dense<0.000000e+00> : vector<4xf32>
    %274 = vector.multi_reduction <add>, %273, %cst_106 [1] : vector<4x3xf32> to vector<4xf32>
    %275 = vector.shape_cast %274 : vector<4xf32> to vector<4x1xf32>
    %276 = tpu.reciprocal %275 {approx = true} : vector<4x1xf32> -> vector<4x1xf32>
    %277 = arith.mulf %275, %276 : vector<4x1xf32>
    %cst_107 = arith.constant 2.000000e+00 : f32
    %278 = vector.broadcast %cst_107 : f32 to vector<4x1xf32>
    %279 = arith.subf %278, %277 : vector<4x1xf32>
    %280 = arith.mulf %276, %279 : vector<4x1xf32>
    %281 = vector.broadcast %280 : vector<4x1xf32> to vector<4x3xf32>
    %282 = arith.mulf %273, %281 : vector<4x3xf32>
    %c2_108 = arith.constant 2 : index
    %c0_109 = arith.constant 0 : index
    %c0_110 = arith.constant 0 : index
    %283 = vector.load %arg6[%c2_108, %c0_109, %c0_110] : memref<6x4x3xf32, #tpu.memory_space<vmem>>, vector<1x4x3xf32>
    %284 = vector.shape_cast %283 : vector<1x4x3xf32> to vector<4x3xf32>
    %285 = vector.shape_cast %282 : vector<4x3xf32> to vector<1x4x3xf32>
    tpu.vector_store %arg6[%c2_108, %c0_109, %c0_110], %285 {strides = array<i32>} : memref<6x4x3xf32, #tpu.memory_space<vmem>>, vector<1x4x3xf32>,
    %c2_111 = arith.constant 2 : index
    %c0_112 = arith.constant 0 : index
    %c0_113 = arith.constant 0 : index
    %286 = vector.load %arg1[%c2_111, %c0_112, %c0_113] : memref<5x6x6xf32, #tpu.memory_space<vmem>>, vector<1x6x6xf32>
    %287 = vector.shape_cast %286 : vector<1x6x6xf32> to vector<6x6xf32>
    %cst_114 = arith.constant dense<0.000000e+00> : vector<4x6xf32>
    %288 = tpu.matmul %192, %287, %cst_114 {dimension_numbers = #tpu.dot_dimension_numbers<[1], [0], [0], [1], [0, 0, 1, 1], [], []>} : vector<4x6xf32>, vector<6x6xf32>, vector<4x6xf32> -> vector<4x6xf32>
    %c3 = arith.constant 3 : index
    %c0_115 = arith.constant 0 : index
    %c0_116 = arith.constant 0 : index
    %289 = vector.load %arg3[%c3, %c0_115, %c0_116] : memref<6x8x32xf32, #tpu.memory_space<vmem>>, vector<1x8x32xf32>
    %290 = vector.shape_cast %289 : vector<1x8x32xf32> to vector<8x32xf32>
    %291 = vector.extract_strided_slice %290 {offsets = [0, 0], sizes = [1, 32], strides = [1, 1]} : vector<8x32xf32> to vector<1x32xf32>
    %292 = vector.extract_strided_slice %290 {offsets = [1, 0], sizes = [1, 32], strides = [1, 1]} : vector<8x32xf32> to vector<1x32xf32>
    %293 = vector.extract_strided_slice %290 {offsets = [2, 0], sizes = [1, 32], strides = [1, 1]} : vector<8x32xf32> to vector<1x32xf32>
    %294 = vector.extract_strided_slice %290 {offsets = [3, 0], sizes = [1, 32], strides = [1, 1]} : vector<8x32xf32> to vector<1x32xf32>
    %295 = vector.extract_strided_slice %290 {offsets = [4, 0], sizes = [1, 32], strides = [1, 1]} : vector<8x32xf32> to vector<1x32xf32>
    %296 = vector.extract_strided_slice %290 {offsets = [5, 0], sizes = [1, 32], strides = [1, 1]} : vector<8x32xf32> to vector<1x32xf32>
    %297 = vector.extract_strided_slice %290 {offsets = [6, 0], sizes = [1, 3], strides = [1, 1]} : vector<8x32xf32> to vector<1x3xf32>
    %c3_117 = arith.constant 3 : index
    %c0_118 = arith.constant 0 : index
    %c0_119 = arith.constant 0 : index
    %298 = vector.load %arg2[%c3_117, %c0_118, %c0_119] : memref<6x6x32xf32, #tpu.memory_space<vmem>>, vector<1x6x32xf32>
    %299 = vector.shape_cast %298 : vector<1x6x32xf32> to vector<6x32xf32>
    %cst_120 = arith.constant dense<0.000000e+00> : vector<4x32xf32>
    %300 = tpu.matmul %288, %299, %cst_120 {dimension_numbers = #tpu.dot_dimension_numbers<[1], [0], [0], [1], [0, 0, 1, 1], [], []>} : vector<4x6xf32>, vector<6x32xf32>, vector<4x32xf32> -> vector<4x32xf32>
    %301 = vector.broadcast %291 : vector<1x32xf32> to vector<4x32xf32>
    %302 = arith.addf %300, %301 : vector<4x32xf32>
    %cst_121 = arith.constant 0.000000e+00 : f32
    %303 = vector.broadcast %cst_121 : f32 to vector<4x32xf32>
    %304 = arith.cmpf ogt, %302, %303 : vector<4x32xf32>
    %cst_122 = arith.constant 0.00999999977 : f32
    %305 = vector.broadcast %cst_122 : f32 to vector<4x32xf32>
    %306 = arith.mulf %305, %302 : vector<4x32xf32>
    %307 = arith.select %304, %302, %306 : vector<4x32xi1>, vector<4x32xf32>
    %cst_123 = arith.constant dense<0.000000e+00> : vector<32xf32>
    %308 = vector.multi_reduction <add>, %307, %cst_123 [0] : vector<4x32xf32> to vector<32xf32>
    %309 = vector.shape_cast %308 : vector<32xf32> to vector<1x32xf32>
    %cst_124 = arith.constant 4.000000e+00 : f32
    %310 = vector.broadcast %cst_124 : f32 to vector<1x32xf32>
    %311 = arith.divf %309, %310 : vector<1x32xf32>
    %312 = arith.mulf %307, %307 : vector<4x32xf32>
    %cst_125 = arith.constant dense<0.000000e+00> : vector<32xf32>
    %313 = vector.multi_reduction <add>, %312, %cst_125 [0] : vector<4x32xf32> to vector<32xf32>
    %314 = vector.shape_cast %313 : vector<32xf32> to vector<1x32xf32>
    %cst_126 = arith.constant 4.000000e+00 : f32
    %315 = vector.broadcast %cst_126 : f32 to vector<1x32xf32>
    %316 = arith.divf %314, %315 : vector<1x32xf32>
    %317 = arith.mulf %311, %311 : vector<1x32xf32>
    %318 = arith.subf %316, %317 : vector<1x32xf32>
    %cst_127 = arith.constant 9.99999974E-6 : f32
    %319 = vector.broadcast %cst_127 : f32 to vector<1x32xf32>
    %320 = arith.addf %318, %319 : vector<1x32xf32>
    %321 = math.rsqrt %320 : vector<1x32xf32>
    %322 = arith.mulf %292, %321 : vector<1x32xf32>
    %323 = vector.broadcast %322 : vector<1x32xf32> to vector<4x32xf32>
    %324 = arith.mulf %307, %323 : vector<4x32xf32>
    %325 = arith.mulf %311, %322 : vector<1x32xf32>
    %326 = arith.subf %293, %325 : vector<1x32xf32>
    %327 = vector.broadcast %326 : vector<1x32xf32> to vector<4x32xf32>
    %328 = arith.addf %324, %327 : vector<4x32xf32>
    %c3_128 = arith.constant 3 : index
    %c0_129 = arith.constant 0 : index
    %c0_130 = arith.constant 0 : index
    %329 = vector.load %arg4[%c3_128, %c0_129, %c0_130] : memref<6x32x32xf32, #tpu.memory_space<vmem>>, vector<1x32x32xf32>
    %330 = vector.shape_cast %329 : vector<1x32x32xf32> to vector<32x32xf32>
    %cst_131 = arith.constant dense<0.000000e+00> : vector<4x32xf32>
    %331 = tpu.matmul %328, %330, %cst_131 {dimension_numbers = #tpu.dot_dimension_numbers<[1], [0], [0], [1], [0, 0, 1, 1], [], []>} : vector<4x32xf32>, vector<32x32xf32>, vector<4x32xf32> -> vector<4x32xf32>
    %332 = vector.broadcast %294 : vector<1x32xf32> to vector<4x32xf32>
    %333 = arith.addf %331, %332 : vector<4x32xf32>
    %cst_132 = arith.constant 0.000000e+00 : f32
    %334 = vector.broadcast %cst_132 : f32 to vector<4x32xf32>
    %335 = arith.cmpf ogt, %333, %334 : vector<4x32xf32>
    %cst_133 = arith.constant 0.00999999977 : f32
    %336 = vector.broadcast %cst_133 : f32 to vector<4x32xf32>
    %337 = arith.mulf %336, %333 : vector<4x32xf32>
    %338 = arith.select %335, %333, %337 : vector<4x32xi1>, vector<4x32xf32>
    %cst_134 = arith.constant dense<0.000000e+00> : vector<32xf32>
    %339 = vector.multi_reduction <add>, %338, %cst_134 [0] : vector<4x32xf32> to vector<32xf32>
    %340 = vector.shape_cast %339 : vector<32xf32> to vector<1x32xf32>
    %cst_135 = arith.constant 4.000000e+00 : f32
    %341 = vector.broadcast %cst_135 : f32 to vector<1x32xf32>
    %342 = arith.divf %340, %341 : vector<1x32xf32>
    %343 = arith.mulf %338, %338 : vector<4x32xf32>
    %cst_136 = arith.constant dense<0.000000e+00> : vector<32xf32>
    %344 = vector.multi_reduction <add>, %343, %cst_136 [0] : vector<4x32xf32> to vector<32xf32>
    %345 = vector.shape_cast %344 : vector<32xf32> to vector<1x32xf32>
    %cst_137 = arith.constant 4.000000e+00 : f32
    %346 = vector.broadcast %cst_137 : f32 to vector<1x32xf32>
    %347 = arith.divf %345, %346 : vector<1x32xf32>
    %348 = arith.mulf %342, %342 : vector<1x32xf32>
    %349 = arith.subf %347, %348 : vector<1x32xf32>
    %cst_138 = arith.constant 9.99999974E-6 : f32
    %350 = vector.broadcast %cst_138 : f32 to vector<1x32xf32>
    %351 = arith.addf %349, %350 : vector<1x32xf32>
    %352 = math.rsqrt %351 : vector<1x32xf32>
    %353 = arith.mulf %295, %352 : vector<1x32xf32>
    %354 = vector.broadcast %353 : vector<1x32xf32> to vector<4x32xf32>
    %355 = arith.mulf %338, %354 : vector<4x32xf32>
    %356 = arith.mulf %342, %353 : vector<1x32xf32>
    %357 = arith.subf %296, %356 : vector<1x32xf32>
    %358 = vector.broadcast %357 : vector<1x32xf32> to vector<4x32xf32>
    %359 = arith.addf %355, %358 : vector<4x32xf32>
    %c3_139 = arith.constant 3 : index
    %c0_140 = arith.constant 0 : index
    %c0_141 = arith.constant 0 : index
    %360 = vector.load %arg5[%c3_139, %c0_140, %c0_141] : memref<6x32x3xf32, #tpu.memory_space<vmem>>, vector<1x32x3xf32>
    %361 = vector.shape_cast %360 : vector<1x32x3xf32> to vector<32x3xf32>
    %cst_142 = arith.constant dense<0.000000e+00> : vector<4x3xf32>
    %362 = tpu.matmul %359, %361, %cst_142 {dimension_numbers = #tpu.dot_dimension_numbers<[1], [0], [0], [1], [0, 0, 1, 1], [], []>} : vector<4x32xf32>, vector<32x3xf32>, vector<4x3xf32> -> vector<4x3xf32>
    %363 = vector.broadcast %297 : vector<1x3xf32> to vector<4x3xf32>
    %364 = arith.addf %362, %363 : vector<4x3xf32>
    %cst_143 = arith.constant dense<0xFF800000> : vector<4xf32>
    %365 = vector.multi_reduction <maximumf>, %364, %cst_143 [1] : vector<4x3xf32> to vector<4xf32>
    %366 = vector.shape_cast %365 : vector<4xf32> to vector<4x1xf32>
    %367 = vector.broadcast %366 : vector<4x1xf32> to vector<4x3xf32>
    %368 = arith.subf %364, %367 : vector<4x3xf32>
    %369 = math.exp %368 : vector<4x3xf32>
    %cst_144 = arith.constant dense<0.000000e+00> : vector<4xf32>
    %370 = vector.multi_reduction <add>, %369, %cst_144 [1] : vector<4x3xf32> to vector<4xf32>
    %371 = vector.shape_cast %370 : vector<4xf32> to vector<4x1xf32>
    %372 = tpu.reciprocal %371 {approx = true} : vector<4x1xf32> -> vector<4x1xf32>
    %373 = arith.mulf %371, %372 : vector<4x1xf32>
    %cst_145 = arith.constant 2.000000e+00 : f32
    %374 = vector.broadcast %cst_145 : f32 to vector<4x1xf32>
    %375 = arith.subf %374, %373 : vector<4x1xf32>
    %376 = arith.mulf %372, %375 : vector<4x1xf32>
    %377 = vector.broadcast %376 : vector<4x1xf32> to vector<4x3xf32>
    %378 = arith.mulf %369, %377 : vector<4x3xf32>
    %c3_146 = arith.constant 3 : index
    %c0_147 = arith.constant 0 : index
    %c0_148 = arith.constant 0 : index
    %379 = vector.load %arg6[%c3_146, %c0_147, %c0_148] : memref<6x4x3xf32, #tpu.memory_space<vmem>>, vector<1x4x3xf32>
    %380 = vector.shape_cast %379 : vector<1x4x3xf32> to vector<4x3xf32>
    %381 = vector.shape_cast %378 : vector<4x3xf32> to vector<1x4x3xf32>
    tpu.vector_store %arg6[%c3_146, %c0_147, %c0_148], %381 {strides = array<i32>} : memref<6x4x3xf32, #tpu.memory_space<vmem>>, vector<1x4x3xf32>,
    %c3_149 = arith.constant 3 : index
    %c0_150 = arith.constant 0 : index
    %c0_151 = arith.constant 0 : index
    %382 = vector.load %arg1[%c3_149, %c0_150, %c0_151] : memref<5x6x6xf32, #tpu.memory_space<vmem>>, vector<1x6x6xf32>
    %383 = vector.shape_cast %382 : vector<1x6x6xf32> to vector<6x6xf32>
    %cst_152 = arith.constant dense<0.000000e+00> : vector<4x6xf32>
    %384 = tpu.matmul %288, %383, %cst_152 {dimension_numbers = #tpu.dot_dimension_numbers<[1], [0], [0], [1], [0, 0, 1, 1], [], []>} : vector<4x6xf32>, vector<6x6xf32>, vector<4x6xf32> -> vector<4x6xf32>
    %c4 = arith.constant 4 : index
    %c0_153 = arith.constant 0 : index
    %c0_154 = arith.constant 0 : index
    %385 = vector.load %arg3[%c4, %c0_153, %c0_154] : memref<6x8x32xf32, #tpu.memory_space<vmem>>, vector<1x8x32xf32>
    %386 = vector.shape_cast %385 : vector<1x8x32xf32> to vector<8x32xf32>
    %387 = vector.extract_strided_slice %386 {offsets = [0, 0], sizes = [1, 32], strides = [1, 1]} : vector<8x32xf32> to vector<1x32xf32>
    %388 = vector.extract_strided_slice %386 {offsets = [1, 0], sizes = [1, 32], strides = [1, 1]} : vector<8x32xf32> to vector<1x32xf32>
    %389 = vector.extract_strided_slice %386 {offsets = [2, 0], sizes = [1, 32], strides = [1, 1]} : vector<8x32xf32> to vector<1x32xf32>
    %390 = vector.extract_strided_slice %386 {offsets = [3, 0], sizes = [1, 32], strides = [1, 1]} : vector<8x32xf32> to vector<1x32xf32>
    %391 = vector.extract_strided_slice %386 {offsets = [4, 0], sizes = [1, 32], strides = [1, 1]} : vector<8x32xf32> to vector<1x32xf32>
    %392 = vector.extract_strided_slice %386 {offsets = [5, 0], sizes = [1, 32], strides = [1, 1]} : vector<8x32xf32> to vector<1x32xf32>
    %393 = vector.extract_strided_slice %386 {offsets = [6, 0], sizes = [1, 3], strides = [1, 1]} : vector<8x32xf32> to vector<1x3xf32>
    %c4_155 = arith.constant 4 : index
    %c0_156 = arith.constant 0 : index
    %c0_157 = arith.constant 0 : index
    %394 = vector.load %arg2[%c4_155, %c0_156, %c0_157] : memref<6x6x32xf32, #tpu.memory_space<vmem>>, vector<1x6x32xf32>
    %395 = vector.shape_cast %394 : vector<1x6x32xf32> to vector<6x32xf32>
    %cst_158 = arith.constant dense<0.000000e+00> : vector<4x32xf32>
    %396 = tpu.matmul %384, %395, %cst_158 {dimension_numbers = #tpu.dot_dimension_numbers<[1], [0], [0], [1], [0, 0, 1, 1], [], []>} : vector<4x6xf32>, vector<6x32xf32>, vector<4x32xf32> -> vector<4x32xf32>
    %397 = vector.broadcast %387 : vector<1x32xf32> to vector<4x32xf32>
    %398 = arith.addf %396, %397 : vector<4x32xf32>
    %cst_159 = arith.constant 0.000000e+00 : f32
    %399 = vector.broadcast %cst_159 : f32 to vector<4x32xf32>
    %400 = arith.cmpf ogt, %398, %399 : vector<4x32xf32>
    %cst_160 = arith.constant 0.00999999977 : f32
    %401 = vector.broadcast %cst_160 : f32 to vector<4x32xf32>
    %402 = arith.mulf %401, %398 : vector<4x32xf32>
    %403 = arith.select %400, %398, %402 : vector<4x32xi1>, vector<4x32xf32>
    %cst_161 = arith.constant dense<0.000000e+00> : vector<32xf32>
    %404 = vector.multi_reduction <add>, %403, %cst_161 [0] : vector<4x32xf32> to vector<32xf32>
    %405 = vector.shape_cast %404 : vector<32xf32> to vector<1x32xf32>
    %cst_162 = arith.constant 4.000000e+00 : f32
    %406 = vector.broadcast %cst_162 : f32 to vector<1x32xf32>
    %407 = arith.divf %405, %406 : vector<1x32xf32>
    %408 = arith.mulf %403, %403 : vector<4x32xf32>
    %cst_163 = arith.constant dense<0.000000e+00> : vector<32xf32>
    %409 = vector.multi_reduction <add>, %408, %cst_163 [0] : vector<4x32xf32> to vector<32xf32>
    %410 = vector.shape_cast %409 : vector<32xf32> to vector<1x32xf32>
    %cst_164 = arith.constant 4.000000e+00 : f32
    %411 = vector.broadcast %cst_164 : f32 to vector<1x32xf32>
    %412 = arith.divf %410, %411 : vector<1x32xf32>
    %413 = arith.mulf %407, %407 : vector<1x32xf32>
    %414 = arith.subf %412, %413 : vector<1x32xf32>
    %cst_165 = arith.constant 9.99999974E-6 : f32
    %415 = vector.broadcast %cst_165 : f32 to vector<1x32xf32>
    %416 = arith.addf %414, %415 : vector<1x32xf32>
    %417 = math.rsqrt %416 : vector<1x32xf32>
    %418 = arith.mulf %388, %417 : vector<1x32xf32>
    %419 = vector.broadcast %418 : vector<1x32xf32> to vector<4x32xf32>
    %420 = arith.mulf %403, %419 : vector<4x32xf32>
    %421 = arith.mulf %407, %418 : vector<1x32xf32>
    %422 = arith.subf %389, %421 : vector<1x32xf32>
    %423 = vector.broadcast %422 : vector<1x32xf32> to vector<4x32xf32>
    %424 = arith.addf %420, %423 : vector<4x32xf32>
    %c4_166 = arith.constant 4 : index
    %c0_167 = arith.constant 0 : index
    %c0_168 = arith.constant 0 : index
    %425 = vector.load %arg4[%c4_166, %c0_167, %c0_168] : memref<6x32x32xf32, #tpu.memory_space<vmem>>, vector<1x32x32xf32>
    %426 = vector.shape_cast %425 : vector<1x32x32xf32> to vector<32x32xf32>
    %cst_169 = arith.constant dense<0.000000e+00> : vector<4x32xf32>
    %427 = tpu.matmul %424, %426, %cst_169 {dimension_numbers = #tpu.dot_dimension_numbers<[1], [0], [0], [1], [0, 0, 1, 1], [], []>} : vector<4x32xf32>, vector<32x32xf32>, vector<4x32xf32> -> vector<4x32xf32>
    %428 = vector.broadcast %390 : vector<1x32xf32> to vector<4x32xf32>
    %429 = arith.addf %427, %428 : vector<4x32xf32>
    %cst_170 = arith.constant 0.000000e+00 : f32
    %430 = vector.broadcast %cst_170 : f32 to vector<4x32xf32>
    %431 = arith.cmpf ogt, %429, %430 : vector<4x32xf32>
    %cst_171 = arith.constant 0.00999999977 : f32
    %432 = vector.broadcast %cst_171 : f32 to vector<4x32xf32>
    %433 = arith.mulf %432, %429 : vector<4x32xf32>
    %434 = arith.select %431, %429, %433 : vector<4x32xi1>, vector<4x32xf32>
    %cst_172 = arith.constant dense<0.000000e+00> : vector<32xf32>
    %435 = vector.multi_reduction <add>, %434, %cst_172 [0] : vector<4x32xf32> to vector<32xf32>
    %436 = vector.shape_cast %435 : vector<32xf32> to vector<1x32xf32>
    %cst_173 = arith.constant 4.000000e+00 : f32
    %437 = vector.broadcast %cst_173 : f32 to vector<1x32xf32>
    %438 = arith.divf %436, %437 : vector<1x32xf32>
    %439 = arith.mulf %434, %434 : vector<4x32xf32>
    %cst_174 = arith.constant dense<0.000000e+00> : vector<32xf32>
    %440 = vector.multi_reduction <add>, %439, %cst_174 [0] : vector<4x32xf32> to vector<32xf32>
    %441 = vector.shape_cast %440 : vector<32xf32> to vector<1x32xf32>
    %cst_175 = arith.constant 4.000000e+00 : f32
    %442 = vector.broadcast %cst_175 : f32 to vector<1x32xf32>
    %443 = arith.divf %441, %442 : vector<1x32xf32>
    %444 = arith.mulf %438, %438 : vector<1x32xf32>
    %445 = arith.subf %443, %444 : vector<1x32xf32>
    %cst_176 = arith.constant 9.99999974E-6 : f32
    %446 = vector.broadcast %cst_176 : f32 to vector<1x32xf32>
    %447 = arith.addf %445, %446 : vector<1x32xf32>
    %448 = math.rsqrt %447 : vector<1x32xf32>
    %449 = arith.mulf %391, %448 : vector<1x32xf32>
    %450 = vector.broadcast %449 : vector<1x32xf32> to vector<4x32xf32>
    %451 = arith.mulf %434, %450 : vector<4x32xf32>
    %452 = arith.mulf %438, %449 : vector<1x32xf32>
    %453 = arith.subf %392, %452 : vector<1x32xf32>
    %454 = vector.broadcast %453 : vector<1x32xf32> to vector<4x32xf32>
    %455 = arith.addf %451, %454 : vector<4x32xf32>
    %c4_177 = arith.constant 4 : index
    %c0_178 = arith.constant 0 : index
    %c0_179 = arith.constant 0 : index
    %456 = vector.load %arg5[%c4_177, %c0_178, %c0_179] : memref<6x32x3xf32, #tpu.memory_space<vmem>>, vector<1x32x3xf32>
    %457 = vector.shape_cast %456 : vector<1x32x3xf32> to vector<32x3xf32>
    %cst_180 = arith.constant dense<0.000000e+00> : vector<4x3xf32>
    %458 = tpu.matmul %455, %457, %cst_180 {dimension_numbers = #tpu.dot_dimension_numbers<[1], [0], [0], [1], [0, 0, 1, 1], [], []>} : vector<4x32xf32>, vector<32x3xf32>, vector<4x3xf32> -> vector<4x3xf32>
    %459 = vector.broadcast %393 : vector<1x3xf32> to vector<4x3xf32>
    %460 = arith.addf %458, %459 : vector<4x3xf32>
    %cst_181 = arith.constant dense<0xFF800000> : vector<4xf32>
    %461 = vector.multi_reduction <maximumf>, %460, %cst_181 [1] : vector<4x3xf32> to vector<4xf32>
    %462 = vector.shape_cast %461 : vector<4xf32> to vector<4x1xf32>
    %463 = vector.broadcast %462 : vector<4x1xf32> to vector<4x3xf32>
    %464 = arith.subf %460, %463 : vector<4x3xf32>
    %465 = math.exp %464 : vector<4x3xf32>
    %cst_182 = arith.constant dense<0.000000e+00> : vector<4xf32>
    %466 = vector.multi_reduction <add>, %465, %cst_182 [1] : vector<4x3xf32> to vector<4xf32>
    %467 = vector.shape_cast %466 : vector<4xf32> to vector<4x1xf32>
    %468 = tpu.reciprocal %467 {approx = true} : vector<4x1xf32> -> vector<4x1xf32>
    %469 = arith.mulf %467, %468 : vector<4x1xf32>
    %cst_183 = arith.constant 2.000000e+00 : f32
    %470 = vector.broadcast %cst_183 : f32 to vector<4x1xf32>
    %471 = arith.subf %470, %469 : vector<4x1xf32>
    %472 = arith.mulf %468, %471 : vector<4x1xf32>
    %473 = vector.broadcast %472 : vector<4x1xf32> to vector<4x3xf32>
    %474 = arith.mulf %465, %473 : vector<4x3xf32>
    %c4_184 = arith.constant 4 : index
    %c0_185 = arith.constant 0 : index
    %c0_186 = arith.constant 0 : index
    %475 = vector.load %arg6[%c4_184, %c0_185, %c0_186] : memref<6x4x3xf32, #tpu.memory_space<vmem>>, vector<1x4x3xf32>
    %476 = vector.shape_cast %475 : vector<1x4x3xf32> to vector<4x3xf32>
    %477 = vector.shape_cast %474 : vector<4x3xf32> to vector<1x4x3xf32>
    tpu.vector_store %arg6[%c4_184, %c0_185, %c0_186], %477 {strides = array<i32>} : memref<6x4x3xf32, #tpu.memory_space<vmem>>, vector<1x4x3xf32>,
    %c4_187 = arith.constant 4 : index
    %c0_188 = arith.constant 0 : index
    %c0_189 = arith.constant 0 : index
    %478 = vector.load %arg1[%c4_187, %c0_188, %c0_189] : memref<5x6x6xf32, #tpu.memory_space<vmem>>, vector<1x6x6xf32>
    %479 = vector.shape_cast %478 : vector<1x6x6xf32> to vector<6x6xf32>
    %cst_190 = arith.constant dense<0.000000e+00> : vector<4x6xf32>
    %480 = tpu.matmul %384, %479, %cst_190 {dimension_numbers = #tpu.dot_dimension_numbers<[1], [0], [0], [1], [0, 0, 1, 1], [], []>} : vector<4x6xf32>, vector<6x6xf32>, vector<4x6xf32> -> vector<4x6xf32>
    %c5 = arith.constant 5 : index
    %c0_191 = arith.constant 0 : index
    %c0_192 = arith.constant 0 : index
    %481 = vector.load %arg3[%c5, %c0_191, %c0_192] : memref<6x8x32xf32, #tpu.memory_space<vmem>>, vector<1x8x32xf32>
    %482 = vector.shape_cast %481 : vector<1x8x32xf32> to vector<8x32xf32>
    %483 = vector.extract_strided_slice %482 {offsets = [0, 0], sizes = [1, 32], strides = [1, 1]} : vector<8x32xf32> to vector<1x32xf32>
    %484 = vector.extract_strided_slice %482 {offsets = [1, 0], sizes = [1, 32], strides = [1, 1]} : vector<8x32xf32> to vector<1x32xf32>
    %485 = vector.extract_strided_slice %482 {offsets = [2, 0], sizes = [1, 32], strides = [1, 1]} : vector<8x32xf32> to vector<1x32xf32>
    %486 = vector.extract_strided_slice %482 {offsets = [3, 0], sizes = [1, 32], strides = [1, 1]} : vector<8x32xf32> to vector<1x32xf32>
    %487 = vector.extract_strided_slice %482 {offsets = [4, 0], sizes = [1, 32], strides = [1, 1]} : vector<8x32xf32> to vector<1x32xf32>
    %488 = vector.extract_strided_slice %482 {offsets = [5, 0], sizes = [1, 32], strides = [1, 1]} : vector<8x32xf32> to vector<1x32xf32>
    %489 = vector.extract_strided_slice %482 {offsets = [6, 0], sizes = [1, 3], strides = [1, 1]} : vector<8x32xf32> to vector<1x3xf32>
    %c5_193 = arith.constant 5 : index
    %c0_194 = arith.constant 0 : index
    %c0_195 = arith.constant 0 : index
    %490 = vector.load %arg2[%c5_193, %c0_194, %c0_195] : memref<6x6x32xf32, #tpu.memory_space<vmem>>, vector<1x6x32xf32>
    %491 = vector.shape_cast %490 : vector<1x6x32xf32> to vector<6x32xf32>
    %cst_196 = arith.constant dense<0.000000e+00> : vector<4x32xf32>
    %492 = tpu.matmul %480, %491, %cst_196 {dimension_numbers = #tpu.dot_dimension_numbers<[1], [0], [0], [1], [0, 0, 1, 1], [], []>} : vector<4x6xf32>, vector<6x32xf32>, vector<4x32xf32> -> vector<4x32xf32>
    %493 = vector.broadcast %483 : vector<1x32xf32> to vector<4x32xf32>
    %494 = arith.addf %492, %493 : vector<4x32xf32>
    %cst_197 = arith.constant 0.000000e+00 : f32
    %495 = vector.broadcast %cst_197 : f32 to vector<4x32xf32>
    %496 = arith.cmpf ogt, %494, %495 : vector<4x32xf32>
    %cst_198 = arith.constant 0.00999999977 : f32
    %497 = vector.broadcast %cst_198 : f32 to vector<4x32xf32>
    %498 = arith.mulf %497, %494 : vector<4x32xf32>
    %499 = arith.select %496, %494, %498 : vector<4x32xi1>, vector<4x32xf32>
    %cst_199 = arith.constant dense<0.000000e+00> : vector<32xf32>
    %500 = vector.multi_reduction <add>, %499, %cst_199 [0] : vector<4x32xf32> to vector<32xf32>
    %501 = vector.shape_cast %500 : vector<32xf32> to vector<1x32xf32>
    %cst_200 = arith.constant 4.000000e+00 : f32
    %502 = vector.broadcast %cst_200 : f32 to vector<1x32xf32>
    %503 = arith.divf %501, %502 : vector<1x32xf32>
    %504 = arith.mulf %499, %499 : vector<4x32xf32>
    %cst_201 = arith.constant dense<0.000000e+00> : vector<32xf32>
    %505 = vector.multi_reduction <add>, %504, %cst_201 [0] : vector<4x32xf32> to vector<32xf32>
    %506 = vector.shape_cast %505 : vector<32xf32> to vector<1x32xf32>
    %cst_202 = arith.constant 4.000000e+00 : f32
    %507 = vector.broadcast %cst_202 : f32 to vector<1x32xf32>
    %508 = arith.divf %506, %507 : vector<1x32xf32>
    %509 = arith.mulf %503, %503 : vector<1x32xf32>
    %510 = arith.subf %508, %509 : vector<1x32xf32>
    %cst_203 = arith.constant 9.99999974E-6 : f32
    %511 = vector.broadcast %cst_203 : f32 to vector<1x32xf32>
    %512 = arith.addf %510, %511 : vector<1x32xf32>
    %513 = math.rsqrt %512 : vector<1x32xf32>
    %514 = arith.mulf %484, %513 : vector<1x32xf32>
    %515 = vector.broadcast %514 : vector<1x32xf32> to vector<4x32xf32>
    %516 = arith.mulf %499, %515 : vector<4x32xf32>
    %517 = arith.mulf %503, %514 : vector<1x32xf32>
    %518 = arith.subf %485, %517 : vector<1x32xf32>
    %519 = vector.broadcast %518 : vector<1x32xf32> to vector<4x32xf32>
    %520 = arith.addf %516, %519 : vector<4x32xf32>
    %c5_204 = arith.constant 5 : index
    %c0_205 = arith.constant 0 : index
    %c0_206 = arith.constant 0 : index
    %521 = vector.load %arg4[%c5_204, %c0_205, %c0_206] : memref<6x32x32xf32, #tpu.memory_space<vmem>>, vector<1x32x32xf32>
    %522 = vector.shape_cast %521 : vector<1x32x32xf32> to vector<32x32xf32>
    %cst_207 = arith.constant dense<0.000000e+00> : vector<4x32xf32>
    %523 = tpu.matmul %520, %522, %cst_207 {dimension_numbers = #tpu.dot_dimension_numbers<[1], [0], [0], [1], [0, 0, 1, 1], [], []>} : vector<4x32xf32>, vector<32x32xf32>, vector<4x32xf32> -> vector<4x32xf32>
    %524 = vector.broadcast %486 : vector<1x32xf32> to vector<4x32xf32>
    %525 = arith.addf %523, %524 : vector<4x32xf32>
    %cst_208 = arith.constant 0.000000e+00 : f32
    %526 = vector.broadcast %cst_208 : f32 to vector<4x32xf32>
    %527 = arith.cmpf ogt, %525, %526 : vector<4x32xf32>
    %cst_209 = arith.constant 0.00999999977 : f32
    %528 = vector.broadcast %cst_209 : f32 to vector<4x32xf32>
    %529 = arith.mulf %528, %525 : vector<4x32xf32>
    %530 = arith.select %527, %525, %529 : vector<4x32xi1>, vector<4x32xf32>
    %cst_210 = arith.constant dense<0.000000e+00> : vector<32xf32>
    %531 = vector.multi_reduction <add>, %530, %cst_210 [0] : vector<4x32xf32> to vector<32xf32>
    %532 = vector.shape_cast %531 : vector<32xf32> to vector<1x32xf32>
    %cst_211 = arith.constant 4.000000e+00 : f32
    %533 = vector.broadcast %cst_211 : f32 to vector<1x32xf32>
    %534 = arith.divf %532, %533 : vector<1x32xf32>
    %535 = arith.mulf %530, %530 : vector<4x32xf32>
    %cst_212 = arith.constant dense<0.000000e+00> : vector<32xf32>
    %536 = vector.multi_reduction <add>, %535, %cst_212 [0] : vector<4x32xf32> to vector<32xf32>
    %537 = vector.shape_cast %536 : vector<32xf32> to vector<1x32xf32>
    %cst_213 = arith.constant 4.000000e+00 : f32
    %538 = vector.broadcast %cst_213 : f32 to vector<1x32xf32>
    %539 = arith.divf %537, %538 : vector<1x32xf32>
    %540 = arith.mulf %534, %534 : vector<1x32xf32>
    %541 = arith.subf %539, %540 : vector<1x32xf32>
    %cst_214 = arith.constant 9.99999974E-6 : f32
    %542 = vector.broadcast %cst_214 : f32 to vector<1x32xf32>
    %543 = arith.addf %541, %542 : vector<1x32xf32>
    %544 = math.rsqrt %543 : vector<1x32xf32>
    %545 = arith.mulf %487, %544 : vector<1x32xf32>
    %546 = vector.broadcast %545 : vector<1x32xf32> to vector<4x32xf32>
    %547 = arith.mulf %530, %546 : vector<4x32xf32>
    %548 = arith.mulf %534, %545 : vector<1x32xf32>
    %549 = arith.subf %488, %548 : vector<1x32xf32>
    %550 = vector.broadcast %549 : vector<1x32xf32> to vector<4x32xf32>
    %551 = arith.addf %547, %550 : vector<4x32xf32>
    %c5_215 = arith.constant 5 : index
    %c0_216 = arith.constant 0 : index
    %c0_217 = arith.constant 0 : index
    %552 = vector.load %arg5[%c5_215, %c0_216, %c0_217] : memref<6x32x3xf32, #tpu.memory_space<vmem>>, vector<1x32x3xf32>
    %553 = vector.shape_cast %552 : vector<1x32x3xf32> to vector<32x3xf32>
    %cst_218 = arith.constant dense<0.000000e+00> : vector<4x3xf32>
    %554 = tpu.matmul %551, %553, %cst_218 {dimension_numbers = #tpu.dot_dimension_numbers<[1], [0], [0], [1], [0, 0, 1, 1], [], []>} : vector<4x32xf32>, vector<32x3xf32>, vector<4x3xf32> -> vector<4x3xf32>
    %555 = vector.broadcast %489 : vector<1x3xf32> to vector<4x3xf32>
    %556 = arith.addf %554, %555 : vector<4x3xf32>
    %cst_219 = arith.constant dense<0xFF800000> : vector<4xf32>
    %557 = vector.multi_reduction <maximumf>, %556, %cst_219 [1] : vector<4x3xf32> to vector<4xf32>
    %558 = vector.shape_cast %557 : vector<4xf32> to vector<4x1xf32>
    %559 = vector.broadcast %558 : vector<4x1xf32> to vector<4x3xf32>
    %560 = arith.subf %556, %559 : vector<4x3xf32>
    %561 = math.exp %560 : vector<4x3xf32>
    %cst_220 = arith.constant dense<0.000000e+00> : vector<4xf32>
    %562 = vector.multi_reduction <add>, %561, %cst_220 [1] : vector<4x3xf32> to vector<4xf32>
    %563 = vector.shape_cast %562 : vector<4xf32> to vector<4x1xf32>
    %564 = tpu.reciprocal %563 {approx = true} : vector<4x1xf32> -> vector<4x1xf32>
    %565 = arith.mulf %563, %564 : vector<4x1xf32>
    %cst_221 = arith.constant 2.000000e+00 : f32
    %566 = vector.broadcast %cst_221 : f32 to vector<4x1xf32>
    %567 = arith.subf %566, %565 : vector<4x1xf32>
    %568 = arith.mulf %564, %567 : vector<4x1xf32>
    %569 = vector.broadcast %568 : vector<4x1xf32> to vector<4x3xf32>
    %570 = arith.mulf %561, %569 : vector<4x3xf32>
    %c5_222 = arith.constant 5 : index
    %c0_223 = arith.constant 0 : index
    %c0_224 = arith.constant 0 : index
    %571 = vector.load %arg6[%c5_222, %c0_223, %c0_224] : memref<6x4x3xf32, #tpu.memory_space<vmem>>, vector<1x4x3xf32>
    %572 = vector.shape_cast %571 : vector<1x4x3xf32> to vector<4x3xf32>
    %573 = vector.shape_cast %570 : vector<4x3xf32> to vector<1x4x3xf32>
    tpu.vector_store %arg6[%c5_222, %c0_223, %c0_224], %573 {strides = array<i32>} : memref<6x4x3xf32, #tpu.memory_space<vmem>>, vector<1x4x3xf32>,
    return
  }
}

</mosaic_0001>

<llo_original>
// kernel: tpu_custom_call.1
$region0: #{tpu_custom_call.1}
  #allocation0 [shape = 'u32[]', space=smem, size = 0x4, offset = 0x4, fixed_abs, tag = 'smem constant byte address 0x4 - core index']
  #allocation1 [shape = 'u32[144,128]{1,0:T(1,128)}', space=vmem, size = 0x12000, scoped, tag = 'internal scratch']
  %s0 = inlined_call_operand.vmem [shape: f32[4,6], index: 0, kind: input, shape index: {}]
  %s1 = inlined_call_operand.hbm [shape: f32[5,6,6], index: 1, kind: input, shape index: {}]
  %s2 = inlined_call_operand.hbm [shape: f32[6,6,32], index: 2, kind: input, shape index: {}]
  %s3 = inlined_call_operand.hbm [shape: f32[6,8,32], index: 3, kind: input, shape index: {}]
  %s4 = inlined_call_operand.vmem [shape: f32[6,32,32], index: 4, kind: input, shape index: {}]
  %s5 = inlined_call_operand.vmem [shape: f32[6,32,3], index: 5, kind: input, shape index: {}]
  %s6 = inlined_call_operand.vmem [shape: f32[6,4,3], index: 6, kind: output, shape index: {}]
  %s7 = sld [smem:[#allocation0]]
  $region46: #{tpu_custom_call.1} parent=0
    _
  %s9 = ssub.s32 1, %s7
  %s10 = scalar_select 0, %s9, %s7
  $region1: #{tpu_custom_call.1} parent=0
    #allocation2 [shape = 'u8[20480]{0}', space=vmem, size = 0x5000, scoped, tag = 'input window, operand 1, single buffered']
    #allocation3 [shape = 's32[1]{0}', space=sflag, size = 0x4, scoped, tag = 'scoped memory for tpu_custom_call.1']
    #allocation4 [shape = 'u8[24576]{0}', space=vmem, size = 0x6000, scoped, tag = 'input window, operand 2, single buffered']
    #allocation5 [shape = 's32[1]{0}', space=sflag, size = 0x4, scoped, tag = 'scoped memory for tpu_custom_call.1']
    #allocation6 [shape = 'u8[24576]{0}', space=vmem, size = 0x6000, scoped, tag = 'input window, operand 3, single buffered']
    %11 = vsyncpa [#allocation3], 0
    %12 = vsyncpa [#allocation5], 0
    // Predicated region
    $region2: #{tpu_custom_call.1} parent=1 // pred_check
      _
    $region3: #{tpu_custom_call.1} parent=1 // pred_check_branch
      %14 = sbr.rel (0) target = $region5
    $region4: #{tpu_custom_call.1} parent=1 // pred_region
      _
    $region5: #{tpu_custom_call.1} parent=1 // pred_fallthru
      _
    // Predicated region
    $region6: #{tpu_custom_call.1} parent=1 // pred_check
      _
    $region7: #{tpu_custom_call.1} parent=1 // pred_check_branch
      %16 = sbr.rel (0) target = $region9
    $region8: #{tpu_custom_call.1} parent=1 // pred_region
      %s18 = ssub.s32 640, 640
      %19 = vsyncadd [#allocation3], %s18
      %s20 = sshll.u32 [#allocation2], 4
      %s21 = int_to_ptr.vmem [resolvable:$true] %s20
      %26 = dma.hbm_to_vmem [thread:$0]  %s1, 640, %s21, [#allocation3], 128, 128, 8
    $region9: #{tpu_custom_call.1} parent=1 // pred_fallthru
      _
    // Predicated region
    $region10: #{tpu_custom_call.1} parent=1 // pred_check
      _
    $region11: #{tpu_custom_call.1} parent=1 // pred_check_branch
      %28 = sbr.rel (0) target = $region13
    $region12: #{tpu_custom_call.1} parent=1 // pred_region
      %s30 = ssub.s32 768, 768
      %31 = vsyncadd [#allocation5], %s30
      %s32 = sshll.u32 [#allocation4], 4
      %s33 = int_to_ptr.vmem [resolvable:$true] %s32
      %38 = dma.hbm_to_vmem [thread:$0]  %s2, 768, %s33, [#allocation5], 128, 128, 8
    $region13: #{tpu_custom_call.1} parent=1 // pred_fallthru
      _
    // Predicated region
    $region14: #{tpu_custom_call.1} parent=1 // pred_check
      _
    $region15: #{tpu_custom_call.1} parent=1 // pred_check_branch
      %40 = sbr.rel (0) target = $region17
    $region16: #{tpu_custom_call.1} parent=1 // pred_region
      %s42 = ssub.s32 768, 768
      %43 = vsyncadd [#allocation5], %s42
      %s44 = sshll.u32 [#allocation6], 4
      %s45 = int_to_ptr.vmem [resolvable:$true] %s44
      %50 = dma.hbm_to_vmem [thread:$0]  %s3, 768, %s45, [#allocation5], 128, 128, 8
    $region17: #{tpu_custom_call.1} parent=1 // pred_fallthru
      _
    // Predicated region
    $region18: #{tpu_custom_call.1} parent=1 // pred_check
      _
    $region19: #{tpu_custom_call.1} parent=1 // pred_check_branch
      %52 = sbr.rel (0) target = $region21
    $region20: #{tpu_custom_call.1} parent=1 // pred_region
      _
    $region21: #{tpu_custom_call.1} parent=1 // pred_fallthru
      _
    // Predicated region
    $region22: #{tpu_custom_call.1} parent=1 // pred_check
      _
    $region23: #{tpu_custom_call.1} parent=1 // pred_check_branch
      %54 = sbr.rel (0) target = $region25
    $region24: #{tpu_custom_call.1} parent=1 // pred_region
      _
    $region25: #{tpu_custom_call.1} parent=1 // pred_fallthru
      _
    // Predicated region
    $region26: #{tpu_custom_call.1} parent=1 // pred_check
      _
    $region27: #{tpu_custom_call.1} parent=1 // pred_check_branch
      %56 = sbr.rel (0) target = $region29
    $region28: #{tpu_custom_call.1} parent=1 // pred_region
      %57 = dma.done [#allocation3], 640
    $region29: #{tpu_custom_call.1} parent=1 // pred_fallthru
      _
    // Predicated region
    $region30: #{tpu_custom_call.1} parent=1 // pred_check
      _
    $region31: #{tpu_custom_call.1} parent=1 // pred_check_branch
      %59 = sbr.rel (0) target = $region33
    $region32: #{tpu_custom_call.1} parent=1 // pred_region
      %60 = dma.done [#allocation5], 768
    $region33: #{tpu_custom_call.1} parent=1 // pred_fallthru
      _
    // Predicated region
    $region34: #{tpu_custom_call.1} parent=1 // pred_check
      _
    $region35: #{tpu_custom_call.1} parent=1 // pred_check_branch
      %62 = sbr.rel (0) target = $region37
    $region36: #{tpu_custom_call.1} parent=1 // pred_region
      %63 = dma.done [#allocation5], 768
    $region37: #{tpu_custom_call.1} parent=1 // pred_fallthru
      _
    %v64 = vld [vmem:[%s0] sm:$0xf]
    %v65 = vld [vmem:[#allocation6] sm:$0xff]
    %v66 = vld [vmem:[#allocation4] sm:$0x3f]
    %v67 = vlaneseq
    %v68 = vshrl.u32 %v67, 7
    %v69 = vsub.s32 0, %v68
    %v70 = vrot.slane %v65, %v69
    %vm71 = vcmask 48128
    %v73 = vsel %vm71, %v64, 0
    %vm75 = vcmask 1045504
    %v77 = vsel %vm75, %v66, 0
    %79 = vmatprep.subr.mxu0 0.0
    %80 = vmatpush1.msra.mxu0 %v77
    %81 = vmatprep.subr.mxu0 0.0
    %82 = vmatpush1.msra.mxu0 0.0
    %83 = vmatprep.subr.mxu0 0.0
    %84 = vmatpush1.msra.mxu0 0.0
    %85 = vmatprep.subr.mxu0 0.0
    %86 = vmatpush1.msra.mxu0 0.0
    %87 = vmatprep.subr.mxu0 0.0
    %88 = vmatpush1.msra.mxu0 0.0
    %89 = vmatprep.subr.mxu0 0.0
    %90 = vmatpush1.msra.mxu0 0.0
    %91 = vmatprep.subr.mxu0 0.0
    %92 = vmatpush1.msra.mxu0 0.0
    %93 = vmatprep.subr.mxu0 0.0
    %94 = vmatpush1.msra.mxu0 0.0
    %95 = vmatprep.subr.mxu0 0.0
    %96 = vmatpush1.msra.mxu0 0.0
    %97 = vmatprep.subr.mxu0 0.0
    %98 = vmatpush1.msra.mxu0 0.0
    %99 = vmatprep.subr.mxu0 0.0
    %100 = vmatpush1.msra.mxu0 0.0
    %101 = vmatprep.subr.mxu0 0.0
    %102 = vmatpush1.msra.mxu0 0.0
    %103 = vmatprep.subr.mxu0 0.0
    %104 = vmatpush1.msra.mxu0 0.0
    %105 = vmatprep.subr.mxu0 0.0
    %106 = vmatpush1.msra.mxu0 0.0
    %107 = vmatprep.subr.mxu0 0.0
    %108 = vmatpush1.msra.mxu0 0.0
    %109 = vmatprep.subr.mxu0 0.0
    %110 = vmatpush1.msra.mxu0 0.0
    %111 = vmatprep.subr.mxu0 0.0
    %112 = vmatpush1.msra.mxu0 0.0
    %113 = vmatprep.subr.mxu0 0.0
    %114 = vmatpush1.msra.mxu0 0.0
    %115 = vmatprep.subr.mxu0 0.0
    %116 = vmatpush1.msra.mxu0 0.0
    %117 = vmatprep.subr.mxu0 0.0
    %118 = vmatpush1.msra.mxu0 0.0
    %119 = vmatprep.subr.mxu0 0.0
    %120 = vmatpush1.msra.mxu0 0.0
    %121 = vmatprep.subr.mxu0 0.0
    %122 = vmatpush1.msra.mxu0 0.0
    %123 = vmatprep.subr.mxu0 0.0
    %124 = vmatpush1.msra.mxu0 0.0
    %125 = vmatprep.subr.mxu0 0.0
    %126 = vmatpush1.msra.mxu0 0.0
    %127 = vmatprep.subr.mxu0 0.0
    %128 = vmatpush1.msra.mxu0 0.0
    %129 = vmatprep.subr.mxu0 0.0
    %130 = vmatpush1.msra.mxu0 0.0
    %131 = vmatprep.subr.mxu0 0.0
    %132 = vmatpush1.msra.mxu0 0.0
    %133 = vmatprep.subr.mxu0 0.0
    %134 = vmatpush1.msra.mxu0 0.0
    %135 = vmatprep.subr.mxu0 0.0
    %136 = vmatpush1.msra.mxu0 0.0
    %137 = vmatprep.subr.mxu0 0.0
    %138 = vmatpush1.msra.mxu0 0.0
    %139 = vmatprep.subr.mxu0 0.0
    %140 = vmatpush1.msra.mxu0 0.0
    %141 = vmatprep.subr.mxu0 0.0
    %142 = vmatpush1.msra.mxu0 0.0
    %143 = vmatprep.mubr.f32.mxu0 0.0
    %144 = vmatmul.mubr.f32.gmra.mrb[0].mxu0 %v73
    %v145 = vpop.f32.mrb[0].mxu0
    %v146 = vadd.f32 %v70, %v145
    %v147 = vpop.f32.mrb[0].mxu0
    %148 = vdwg.mxu0
    %vm149 = vcmp.gt.f32.partialorder %v146, 0.0
    %v150 = vmul.f32 %v146, 0.01
    %v151 = vsel %vm149, %v146, %v150
    %vm152 = vcmask 257024
    %v153 = vsel %vm152, %v151, 0.0
    %v154 = vrot.slane %v153, 4
    %v155 = vadd.f32 %v153, %v154
    %v156 = vrot.slane %v155, 2
    %v157 = vadd.f32 %v155, %v156
    %v158 = vrot.slane %v157, 1
    %v159 = vadd.f32 %v157, %v158
    %v160 = vrcp.pop 4.0
    %v161 = vmul.f32 %v159, %v160
    %v162 = vmul.f32 %v151, %v151
    %v163 = vsel %vm152, %v162, 0.0
    %v164 = vrot.slane %v163, 4
    %v165 = vadd.f32 %v163, %v164
    %v166 = vrot.slane %v165, 2
    %v167 = vadd.f32 %v165, %v166
    %v168 = vrot.slane %v167, 1
    %v169 = vadd.f32 %v167, %v168
    %v170 = vmul.f32 %v169, %v160
    %v171 = vmul.f32 %v161, %v161
    %v172 = vsub.f32 %v170, %v171
    %v173 = vadd.f32 %v172, 1e-05
    %v174 = vrsqrt.pop %v173
    %v175 = vmul.f32 %v65, %v174
    %v176 = vlaneseq
    %v177 = vshrl.u32 %v176, 7
    %v178 = vsub.s32 1, %v177
    %v179 = vrot.slane %v175, %v178
    %v180 = vmul.f32 %v151, %v179
    %v181 = vmul.f32 %v161, %v175
    %v183 = vrot.slane %v181, 7
    %v185 = vsub.f32 %v65, %v183
    %v186 = vlaneseq
    %v187 = vshrl.u32 %v186, 7
    %v188 = vsub.s32 2, %v187
    %v189 = vrot.slane %v185, %v188
    %v190 = vadd.f32 %v180, %v189
    %v191 = vld [vmem:[%s4] sm:$0xff]
    %v192 = vld [vmem:[%s4 + $0x8] sm:$0xff]
    %v193 = vld [vmem:[%s4 + $0x10] sm:$0xff]
    %v194 = vld [vmem:[%s4 + $0x18] sm:$0xff]
    %v195 = vlaneseq
    %v196 = vshrl.u32 %v195, 7
    %v197 = vsub.s32 3, %v196
    %v198 = vrot.slane %v65, %v197
    %vm199 = vcmask 261120
    %v201 = vsel %vm199, %v190, 0
    %203 = vmatprep.subr.mxu0 0.0
    %204 = vmatpush1.msra.mxu0 %v191
    %205 = vmatprep.subr.mxu0 0.0
    %206 = vmatpush1.msra.mxu0 %v192
    %207 = vmatprep.subr.mxu0 0.0
    %208 = vmatpush1.msra.mxu0 %v193
    %209 = vmatprep.subr.mxu0 0.0
    %210 = vmatpush1.msra.mxu0 %v194
    %211 = vmatprep.subr.mxu0 0.0
    %212 = vmatpush1.msra.mxu0 0.0
    %213 = vmatprep.subr.mxu0 0.0
    %214 = vmatpush1.msra.mxu0 0.0
    %215 = vmatprep.subr.mxu0 0.0
    %216 = vmatpush1.msra.mxu0 0.0
    %217 = vmatprep.subr.mxu0 0.0
    %218 = vmatpush1.msra.mxu0 0.0
    %219 = vmatprep.subr.mxu0 0.0
    %220 = vmatpush1.msra.mxu0 0.0
    %221 = vmatprep.subr.mxu0 0.0
    %222 = vmatpush1.msra.mxu0 0.0
    %223 = vmatprep.subr.mxu0 0.0
    %224 = vmatpush1.msra.mxu0 0.0
    %225 = vmatprep.subr.mxu0 0.0
    %226 = vmatpush1.msra.mxu0 0.0
    %227 = vmatprep.subr.mxu0 0.0
    %228 = vmatpush1.msra.mxu0 0.0
    %229 = vmatprep.subr.mxu0 0.0
    %230 = vmatpush1.msra.mxu0 0.0
    %231 = vmatprep.subr.mxu0 0.0
    %232 = vmatpush1.msra.mxu0 0.0
    %233 = vmatprep.subr.mxu0 0.0
    %234 = vmatpush1.msra.mxu0 0.0
    %235 = vmatprep.subr.mxu0 0.0
    %236 = vmatpush1.msra.mxu0 0.0
    %237 = vmatprep.subr.mxu0 0.0
    %238 = vmatpush1.msra.mxu0 0.0
    %239 = vmatprep.subr.mxu0 0.0
    %240 = vmatpush1.msra.mxu0 0.0
    %241 = vmatprep.subr.mxu0 0.0
    %242 = vmatpush1.msra.mxu0 0.0
    %243 = vmatprep.subr.mxu0 0.0
    %244 = vmatpush1.msra.mxu0 0.0
    %245 = vmatprep.subr.mxu0 0.0
    %246 = vmatpush1.msra.mxu0 0.0
    %247 = vmatprep.subr.mxu0 0.0
    %248 = vmatpush1.msra.mxu0 0.0
    %249 = vmatprep.subr.mxu0 0.0
    %250 = vmatpush1.msra.mxu0 0.0
    %251 = vmatprep.subr.mxu0 0.0
    %252 = vmatpush1.msra.mxu0 0.0
    %253 = vmatprep.subr.mxu0 0.0
    %254 = vmatpush1.msra.mxu0 0.0
    %255 = vmatprep.subr.mxu0 0.0
    %256 = vmatpush1.msra.mxu0 0.0
    %257 = vmatprep.subr.mxu0 0.0
    %258 = vmatpush1.msra.mxu0 0.0
    %259 = vmatprep.subr.mxu0 0.0
    %260 = vmatpush1.msra.mxu0 0.0
    %261 = vmatprep.subr.mxu0 0.0
    %262 = vmatpush1.msra.mxu0 0.0
    %263 = vmatprep.subr.mxu0 0.0
    %264 = vmatpush1.msra.mxu0 0.0
    %265 = vmatprep.subr.mxu0 0.0
    %266 = vmatpush1.msra.mxu0 0.0
    %267 = vmatprep.mubr.f32.mxu0 0.0
    %268 = vmatmul.mubr.f32.gmra.mrb[0].mxu0 %v201
    %v269 = vpop.f32.mrb[0].mxu0
    %v270 = vadd.f32 %v198, %v269
    %v271 = vpop.f32.mrb[0].mxu0
    %272 = vdwg.mxu0
    %vm273 = vcmp.gt.f32.partialorder %v270, 0.0
    %v274 = vmul.f32 %v270, 0.01
    %v275 = vsel %vm273, %v270, %v274
    %v276 = vsel %vm152, %v275, 0.0
    %v277 = vrot.slane %v276, 4
    %v278 = vadd.f32 %v276, %v277
    %v279 = vrot.slane %v278, 2
    %v280 = vadd.f32 %v278, %v279
    %v281 = vrot.slane %v280, 1
    %v282 = vadd.f32 %v280, %v281
    %v283 = vmul.f32 %v282, %v160
    %v284 = vmul.f32 %v275, %v275
    %v285 = vsel %vm152, %v284, 0.0
    %v286 = vrot.slane %v285, 4
    %v287 = vadd.f32 %v285, %v286
    %v288 = vrot.slane %v287, 2
    %v289 = vadd.f32 %v287, %v288
    %v290 = vrot.slane %v289, 1
    %v291 = vadd.f32 %v289, %v290
    %v292 = vmul.f32 %v291, %v160
    %v293 = vmul.f32 %v283, %v283
    %v294 = vsub.f32 %v292, %v293
    %v295 = vadd.f32 %v294, 1e-05
    %v296 = vrsqrt.pop %v295
    %v297 = vmul.f32 %v65, %v296
    %v298 = vlaneseq
    %v299 = vshrl.u32 %v298, 7
    %v300 = vsub.s32 4, %v299
    %v301 = vrot.slane %v297, %v300
    %v302 = vmul.f32 %v275, %v301
    %v303 = vmul.f32 %v283, %v297
    %v305 = vrot.slane %v303, 7
    %v307 = vsub.f32 %v65, %v305
    %v308 = vlaneseq
    %v309 = vshrl.u32 %v308, 7
    %v310 = vsub.s32 5, %v309
    %v311 = vrot.slane %v307, %v310
    %v312 = vadd.f32 %v302, %v311
    %v313 = vld [vmem:[%s5] sm:$0xff]
    %v314 = vld [vmem:[%s5 + $0x8] sm:$0xff]
    %v315 = vld [vmem:[%s5 + $0x10] sm:$0xff]
    %v316 = vld [vmem:[%s5 + $0x18] sm:$0xff]
    %v317 = vlaneseq
    %v318 = vshrl.u32 %v317, 7
    %v319 = vsub.s32 6, %v318
    %v320 = vrot.slane %v65, %v319
    %v322 = vsel %vm199, %v312, 0
    %324 = vmatprep.subr.mxu0 0.0
    %325 = vmatpush1.msra.mxu0 %v313
    %326 = vmatprep.subr.mxu0 0.0
    %327 = vmatpush1.msra.mxu0 %v314
    %328 = vmatprep.subr.mxu0 0.0
    %329 = vmatpush1.msra.mxu0 %v315
    %330 = vmatprep.subr.mxu0 0.0
    %331 = vmatpush1.msra.mxu0 %v316
    %332 = vmatprep.subr.mxu0 0.0
    %333 = vmatpush1.msra.mxu0 0.0
    %334 = vmatprep.subr.mxu0 0.0
    %335 = vmatpush1.msra.mxu0 0.0
    %336 = vmatprep.subr.mxu0 0.0
    %337 = vmatpush1.msra.mxu0 0.0
    %338 = vmatprep.subr.mxu0 0.0
    %339 = vmatpush1.msra.mxu0 0.0
    %340 = vmatprep.subr.mxu0 0.0
    %341 = vmatpush1.msra.mxu0 0.0
    %342 = vmatprep.subr.mxu0 0.0
    %343 = vmatpush1.msra.mxu0 0.0
    %344 = vmatprep.subr.mxu0 0.0
    %345 = vmatpush1.msra.mxu0 0.0
    %346 = vmatprep.subr.mxu0 0.0
    %347 = vmatpush1.msra.mxu0 0.0
    %348 = vmatprep.subr.mxu0 0.0
    %349 = vmatpush1.msra.mxu0 0.0
    %350 = vmatprep.subr.mxu0 0.0
    %351 = vmatpush1.msra.mxu0 0.0
    %352 = vmatprep.subr.mxu0 0.0
    %353 = vmatpush1.msra.mxu0 0.0
    %354 = vmatprep.subr.mxu0 0.0
    %355 = vmatpush1.msra.mxu0 0.0
    %356 = vmatprep.subr.mxu0 0.0
    %357 = vmatpush1.msra.mxu0 0.0
    %358 = vmatprep.subr.mxu0 0.0
    %359 = vmatpush1.msra.mxu0 0.0
    %360 = vmatprep.subr.mxu0 0.0
    %361 = vmatpush1.msra.mxu0 0.0
    %362 = vmatprep.subr.mxu0 0.0
    %363 = vmatpush1.msra.mxu0 0.0
    %364 = vmatprep.subr.mxu0 0.0
    %365 = vmatpush1.msra.mxu0 0.0
    %366 = vmatprep.subr.mxu0 0.0
    %367 = vmatpush1.msra.mxu0 0.0
    %368 = vmatprep.subr.mxu0 0.0
    %369 = vmatpush1.msra.mxu0 0.0
    %370 = vmatprep.subr.mxu0 0.0
    %371 = vmatpush1.msra.mxu0 0.0
    %372 = vmatprep.subr.mxu0 0.0
    %373 = vmatpush1.msra.mxu0 0.0
    %374 = vmatprep.subr.mxu0 0.0
    %375 = vmatpush1.msra.mxu0 0.0
    %376 = vmatprep.subr.mxu0 0.0
    %377 = vmatpush1.msra.mxu0 0.0
    %378 = vmatprep.subr.mxu0 0.0
    %379 = vmatpush1.msra.mxu0 0.0
    %380 = vmatprep.subr.mxu0 0.0
    %381 = vmatpush1.msra.mxu0 0.0
    %382 = vmatprep.subr.mxu0 0.0
    %383 = vmatpush1.msra.mxu0 0.0
    %384 = vmatprep.subr.mxu0 0.0
    %385 = vmatpush1.msra.mxu0 0.0
    %386 = vmatprep.subr.mxu0 0.0
    %387 = vmatpush1.msra.mxu0 0.0
    %388 = vmatprep.mubr.f32.mxu0 0.0
    %389 = vmatmul.mubr.f32.gmra.mrb[0].mxu0 %v322
    %v390 = vpop.f32.mrb[0].mxu0
    %v391 = vadd.f32 %v320, %v390
    %v392 = vpop.f32.mrb[0].mxu0
    %393 = vdwg.mxu0
    %vm394 = vcmask 19456
    %v395 = vsel %vm394, %v391, -inf
    %396 = vmax.xlane.f32.xlu0 %v395
    %v397 = vpop.xlane.xlu0 %396
    %v398 = vsub.f32 %v391, %v397
    %v399 = vmul.f32 %v398, 1.442695
    %v400 = vpow.pop %v399
    %v401 = vsel %vm394, %v400, 0.0
    %402 = vadd.xlane.f32.xlu0 %v401
    %v403 = vpop.xlane.xlu0 %402
    %v404 = vrcp.pop %v403
    %v405 = vmul.f32 %v403, %v404
    %v406 = vsub.f32 2.0, %v405
    %v407 = vmul.f32 %v404, %v406
    %v408 = vmul.f32 %v400, %v407
    %409 = vst.msk [vmem:[%s6] sm:$0xf] %vm394, %v408
    %v410 = vld [vmem:[#allocation2] sm:$0x3f]
    %v412 = vsel %vm75, %v410, 0
    %414 = vmatprep.subr.mxu0 0.0
    %415 = vmatpush1.msra.mxu0 %v412
    %416 = vmatprep.subr.mxu0 0.0
    %417 = vmatpush1.msra.mxu0 0.0
    %418 = vmatprep.subr.mxu0 0.0
    %419 = vmatpush1.msra.mxu0 0.0
    %420 = vmatprep.subr.mxu0 0.0
    %421 = vmatpush1.msra.mxu0 0.0
    %422 = vmatprep.subr.mxu0 0.0
    %423 = vmatpush1.msra.mxu0 0.0
    %424 = vmatprep.subr.mxu0 0.0
    %425 = vmatpush1.msra.mxu0 0.0
    %426 = vmatprep.subr.mxu0 0.0
    %427 = vmatpush1.msra.mxu0 0.0
    %428 = vmatprep.subr.mxu0 0.0
    %429 = vmatpush1.msra.mxu0 0.0
    %430 = vmatprep.subr.mxu0 0.0
    %431 = vmatpush1.msra.mxu0 0.0
    %432 = vmatprep.subr.mxu0 0.0
    %433 = vmatpush1.msra.mxu0 0.0
    %434 = vmatprep.subr.mxu0 0.0
    %435 = vmatpush1.msra.mxu0 0.0
    %436 = vmatprep.subr.mxu0 0.0
    %437 = vmatpush1.msra.mxu0 0.0
    %438 = vmatprep.subr.mxu0 0.0
    %439 = vmatpush1.msra.mxu0 0.0
    %440 = vmatprep.subr.mxu0 0.0
    %441 = vmatpush1.msra.mxu0 0.0
    %442 = vmatprep.subr.mxu0 0.0
    %443 = vmatpush1.msra.mxu0 0.0
    %444 = vmatprep.subr.mxu0 0.0
    %445 = vmatpush1.msra.mxu0 0.0
    %446 = vmatprep.subr.mxu0 0.0
    %447 = vmatpush1.msra.mxu0 0.0
    %448 = vmatprep.subr.mxu0 0.0
    %449 = vmatpush1.msra.mxu0 0.0
    %450 = vmatprep.subr.mxu0 0.0
    %451 = vmatpush1.msra.mxu0 0.0
    %452 = vmatprep.subr.mxu0 0.0
    %453 = vmatpush1.msra.mxu0 0.0
    %454 = vmatprep.subr.mxu0 0.0
    %455 = vmatpush1.msra.mxu0 0.0
    %456 = vmatprep.subr.mxu0 0.0
    %457 = vmatpush1.msra.mxu0 0.0
    %458 = vmatprep.subr.mxu0 0.0
    %459 = vmatpush1.msra.mxu0 0.0
    %460 = vmatprep.subr.mxu0 0.0
    %461 = vmatpush1.msra.mxu0 0.0
    %462 = vmatprep.subr.mxu0 0.0
    %463 = vmatpush1.msra.mxu0 0.0
    %464 = vmatprep.subr.mxu0 0.0
    %465 = vmatpush1.msra.mxu0 0.0
    %466 = vmatprep.subr.mxu0 0.0
    %467 = vmatpush1.msra.mxu0 0.0
    %468 = vmatprep.subr.mxu0 0.0
    %469 = vmatpush1.msra.mxu0 0.0
    %470 = vmatprep.subr.mxu0 0.0
    %471 = vmatpush1.msra.mxu0 0.0
    %472 = vmatprep.subr.mxu0 0.0
    %473 = vmatpush1.msra.mxu0 0.0
    %474 = vmatprep.subr.mxu0 0.0
    %475 = vmatpush1.msra.mxu0 0.0
    %476 = vmatprep.subr.mxu0 0.0
    %477 = vmatpush1.msra.mxu0 0.0
    %478 = vmatprep.mubr.f32.mxu0 0.0
    %479 = vmatmul.mubr.f32.gmra.mrb[0].mxu0 %v73
    %v480 = vpop.f32.mrb[0].mxu0
    %v481 = vadd.f32 0.0, %v480
    %v482 = vpop.f32.mrb[0].mxu0
    %483 = vdwg.mxu0
    %s484 = scalar_lea.vmem [#allocation6], 8
    %v485 = vld [vmem:[%s484] sm:$0xff]
    %s486 = scalar_lea.vmem [#allocation4], 8
    %v487 = vld [vmem:[%s486] sm:$0x3f]
    %v488 = vlaneseq
    %v489 = vshrl.u32 %v488, 7
    %v490 = vsub.s32 0, %v489
    %v491 = vrot.slane %v485, %v490
    %v493 = vsel %vm71, %v481, 0
    %v496 = vsel %vm75, %v487, 0
    %498 = vmatprep.subr.mxu0 0.0
    %499 = vmatpush1.msra.mxu0 %v496
    %500 = vmatprep.subr.mxu0 0.0
    %501 = vmatpush1.msra.mxu0 0.0
    %502 = vmatprep.subr.mxu0 0.0
    %503 = vmatpush1.msra.mxu0 0.0
    %504 = vmatprep.subr.mxu0 0.0
    %505 = vmatpush1.msra.mxu0 0.0
    %506 = vmatprep.subr.mxu0 0.0
    %507 = vmatpush1.msra.mxu0 0.0
    %508 = vmatprep.subr.mxu0 0.0
    %509 = vmatpush1.msra.mxu0 0.0
    %510 = vmatprep.subr.mxu0 0.0
    %511 = vmatpush1.msra.mxu0 0.0
    %512 = vmatprep.subr.mxu0 0.0
    %513 = vmatpush1.msra.mxu0 0.0
    %514 = vmatprep.subr.mxu0 0.0
    %515 = vmatpush1.msra.mxu0 0.0
    %516 = vmatprep.subr.mxu0 0.0
    %517 = vmatpush1.msra.mxu0 0.0
    %518 = vmatprep.subr.mxu0 0.0
    %519 = vmatpush1.msra.mxu0 0.0
    %520 = vmatprep.subr.mxu0 0.0
    %521 = vmatpush1.msra.mxu0 0.0
    %522 = vmatprep.subr.mxu0 0.0
    %523 = vmatpush1.msra.mxu0 0.0
    %524 = vmatprep.subr.mxu0 0.0
    %525 = vmatpush1.msra.mxu0 0.0
    %526 = vmatprep.subr.mxu0 0.0
    %527 = vmatpush1.msra.mxu0 0.0
    %528 = vmatprep.subr.mxu0 0.0
    %529 = vmatpush1.msra.mxu0 0.0
    %530 = vmatprep.subr.mxu0 0.0
    %531 = vmatpush1.msra.mxu0 0.0
    %532 = vmatprep.subr.mxu0 0.0
    %533 = vmatpush1.msra.mxu0 0.0
    %534 = vmatprep.subr.mxu0 0.0
    %535 = vmatpush1.msra.mxu0 0.0
    %536 = vmatprep.subr.mxu0 0.0
    %537 = vmatpush1.msra.mxu0 0.0
    %538 = vmatprep.subr.mxu0 0.0
    %539 = vmatpush1.msra.mxu0 0.0
    %540 = vmatprep.subr.mxu0 0.0
    %541 = vmatpush1.msra.mxu0 0.0
    %542 = vmatprep.subr.mxu0 0.0
    %543 = vmatpush1.msra.mxu0 0.0
    %544 = vmatprep.subr.mxu0 0.0
    %545 = vmatpush1.msra.mxu0 0.0
    %546 = vmatprep.subr.mxu0 0.0
    %547 = vmatpush1.msra.mxu0 0.0
    %548 = vmatprep.subr.mxu0 0.0
    %549 = vmatpush1.msra.mxu0 0.0
    %550 = vmatprep.subr.mxu0 0.0
    %551 = vmatpush1.msra.mxu0 0.0
    %552 = vmatprep.subr.mxu0 0.0
    %553 = vmatpush1.msra.mxu0 0.0
    %554 = vmatprep.subr.mxu0 0.0
    %555 = vmatpush1.msra.mxu0 0.0
    %556 = vmatprep.subr.mxu0 0.0
    %557 = vmatpush1.msra.mxu0 0.0
    %558 = vmatprep.subr.mxu0 0.0
    %559 = vmatpush1.msra.mxu0 0.0
    %560 = vmatprep.subr.mxu0 0.0
    %561 = vmatpush1.msra.mxu0 0.0
    %562 = vmatprep.mubr.f32.mxu0 0.0
    %563 = vmatmul.mubr.f32.gmra.mrb[0].mxu0 %v493
    %v564 = vpop.f32.mrb[0].mxu0
    %v565 = vadd.f32 %v491, %v564
    %v566 = vpop.f32.mrb[0].mxu0
    %567 = vdwg.mxu0
    %vm568 = vcmp.gt.f32.partialorder %v565, 0.0
    %v569 = vmul.f32 %v565, 0.01
    %v570 = vsel %vm568, %v565, %v569
    %v571 = vsel %vm152, %v570, 0.0
    %v572 = vrot.slane %v571, 4
    %v573 = vadd.f32 %v571, %v572
    %v574 = vrot.slane %v573, 2
    %v575 = vadd.f32 %v573, %v574
    %v576 = vrot.slane %v575, 1
    %v577 = vadd.f32 %v575, %v576
    %v578 = vmul.f32 %v577, %v160
    %v579 = vmul.f32 %v570, %v570
    %v580 = vsel %vm152, %v579, 0.0
    %v581 = vrot.slane %v580, 4
    %v582 = vadd.f32 %v580, %v581
    %v583 = vrot.slane %v582, 2
    %v584 = vadd.f32 %v582, %v583
    %v585 = vrot.slane %v584, 1
    %v586 = vadd.f32 %v584, %v585
    %v587 = vmul.f32 %v586, %v160
    %v588 = vmul.f32 %v578, %v578
    %v589 = vsub.f32 %v587, %v588
    %v590 = vadd.f32 %v589, 1e-05
    %v591 = vrsqrt.pop %v590
    %v592 = vmul.f32 %v485, %v591
    %v593 = vlaneseq
    %v594 = vshrl.u32 %v593, 7
    %v595 = vsub.s32 1, %v594
    %v596 = vrot.slane %v592, %v595
    %v597 = vmul.f32 %v570, %v596
    %v598 = vmul.f32 %v578, %v592
    %v600 = vrot.slane %v598, 7
    %v602 = vsub.f32 %v485, %v600
    %v603 = vlaneseq
    %v604 = vshrl.u32 %v603, 7
    %v605 = vsub.s32 2, %v604
    %v606 = vrot.slane %v602, %v605
    %v607 = vadd.f32 %v597, %v606
    %s608 = scalar_lea.vmem %s4, 32
    %v609 = vld [vmem:[%s608] sm:$0xff]
    %v610 = vld [vmem:[%s608 + $0x8] sm:$0xff]
    %v611 = vld [vmem:[%s608 + $0x10] sm:$0xff]
    %v612 = vld [vmem:[%s608 + $0x18] sm:$0xff]
    %v613 = vlaneseq
    %v614 = vshrl.u32 %v613, 7
    %v615 = vsub.s32 3, %v614
    %v616 = vrot.slane %v485, %v615
    %v618 = vsel %vm199, %v607, 0
    %620 = vmatprep.subr.mxu0 0.0
    %621 = vmatpush1.msra.mxu0 %v609
    %622 = vmatprep.subr.mxu0 0.0
    %623 = vmatpush1.msra.mxu0 %v610
    %624 = vmatprep.subr.mxu0 0.0
    %625 = vmatpush1.msra.mxu0 %v611
    %626 = vmatprep.subr.mxu0 0.0
    %627 = vmatpush1.msra.mxu0 %v612
    %628 = vmatprep.subr.mxu0 0.0
    %629 = vmatpush1.msra.mxu0 0.0
    %630 = vmatprep.subr.mxu0 0.0
    %631 = vmatpush1.msra.mxu0 0.0
    %632 = vmatprep.subr.mxu0 0.0
    %633 = vmatpush1.msra.mxu0 0.0
    %634 = vmatprep.subr.mxu0 0.0
    %635 = vmatpush1.msra.mxu0 0.0
    %636 = vmatprep.subr.mxu0 0.0
    %637 = vmatpush1.msra.mxu0 0.0
    %638 = vmatprep.subr.mxu0 0.0
    %639 = vmatpush1.msra.mxu0 0.0
    %640 = vmatprep.subr.mxu0 0.0
    %641 = vmatpush1.msra.mxu0 0.0
    %642 = vmatprep.subr.mxu0 0.0
    %643 = vmatpush1.msra.mxu0 0.0
    %644 = vmatprep.subr.mxu0 0.0
    %645 = vmatpush1.msra.mxu0 0.0
    %646 = vmatprep.subr.mxu0 0.0
    %647 = vmatpush1.msra.mxu0 0.0
    %648 = vmatprep.subr.mxu0 0.0
    %649 = vmatpush1.msra.mxu0 0.0
    %650 = vmatprep.subr.mxu0 0.0
    %651 = vmatpush1.msra.mxu0 0.0
    %652 = vmatprep.subr.mxu0 0.0
    %653 = vmatpush1.msra.mxu0 0.0
    %654 = vmatprep.subr.mxu0 0.0
    %655 = vmatpush1.msra.mxu0 0.0
    %656 = vmatprep.subr.mxu0 0.0
    %657 = vmatpush1.msra.mxu0 0.0
    %658 = vmatprep.subr.mxu0 0.0
    %659 = vmatpush1.msra.mxu0 0.0
    %660 = vmatprep.subr.mxu0 0.0
    %661 = vmatpush1.msra.mxu0 0.0
    %662 = vmatprep.subr.mxu0 0.0
    %663 = vmatpush1.msra.mxu0 0.0
    %664 = vmatprep.subr.mxu0 0.0
    %665 = vmatpush1.msra.mxu0 0.0
    %666 = vmatprep.subr.mxu0 0.0
    %667 = vmatpush1.msra.mxu0 0.0
    %668 = vmatprep.subr.mxu0 0.0
    %669 = vmatpush1.msra.mxu0 0.0
    %670 = vmatprep.subr.mxu0 0.0
    %671 = vmatpush1.msra.mxu0 0.0
    %672 = vmatprep.subr.mxu0 0.0
    %673 = vmatpush1.msra.mxu0 0.0
    %674 = vmatprep.subr.mxu0 0.0
    %675 = vmatpush1.msra.mxu0 0.0
    %676 = vmatprep.subr.mxu0 0.0
    %677 = vmatpush1.msra.mxu0 0.0
    %678 = vmatprep.subr.mxu0 0.0
    %679 = vmatpush1.msra.mxu0 0.0
    %680 = vmatprep.subr.mxu0 0.0
    %681 = vmatpush1.msra.mxu0 0.0
    %682 = vmatprep.subr.mxu0 0.0
    %683 = vmatpush1.msra.mxu0 0.0
    %684 = vmatprep.mubr.f32.mxu0 0.0
    %685 = vmatmul.mubr.f32.gmra.mrb[0].mxu0 %v618
    %v686 = vpop.f32.mrb[0].mxu0
    %v687 = vadd.f32 %v616, %v686
    %v688 = vpop.f32.mrb[0].mxu0
    %689 = vdwg.mxu0
    %vm690 = vcmp.gt.f32.partialorder %v687, 0.0
    %v691 = vmul.f32 %v687, 0.01
    %v692 = vsel %vm690, %v687, %v691
    %v693 = vsel %vm152, %v692, 0.0
    %v694 = vrot.slane %v693, 4
    %v695 = vadd.f32 %v693, %v694
    %v696 = vrot.slane %v695, 2
    %v697 = vadd.f32 %v695, %v696
    %v698 = vrot.slane %v697, 1
    %v699 = vadd.f32 %v697, %v698
    %v700 = vmul.f32 %v699, %v160
    %v701 = vmul.f32 %v692, %v692
    %v702 = vsel %vm152, %v701, 0.0
    %v703 = vrot.slane %v702, 4
    %v704 = vadd.f32 %v702, %v703
    %v705 = vrot.slane %v704, 2
    %v706 = vadd.f32 %v704, %v705
    %v707 = vrot.slane %v706, 1
    %v708 = vadd.f32 %v706, %v707
    %v709 = vmul.f32 %v708, %v160
    %v710 = vmul.f32 %v700, %v700
    %v711 = vsub.f32 %v709, %v710
    %v712 = vadd.f32 %v711, 1e-05
    %v713 = vrsqrt.pop %v712
    %v714 = vmul.f32 %v485, %v713
    %v715 = vlaneseq
    %v716 = vshrl.u32 %v715, 7
    %v717 = vsub.s32 4, %v716
    %v718 = vrot.slane %v714, %v717
    %v719 = vmul.f32 %v692, %v718
    %v720 = vmul.f32 %v700, %v714
    %v722 = vrot.slane %v720, 7
    %v724 = vsub.f32 %v485, %v722
    %v725 = vlaneseq
    %v726 = vshrl.u32 %v725, 7
    %v727 = vsub.s32 5, %v726
    %v728 = vrot.slane %v724, %v727
    %v729 = vadd.f32 %v719, %v728
    %s730 = scalar_lea.vmem %s5, 32
    %v731 = vld [vmem:[%s730] sm:$0xff]
    %v732 = vld [vmem:[%s730 + $0x8] sm:$0xff]
    %v733 = vld [vmem:[%s730 + $0x10] sm:$0xff]
    %v734 = vld [vmem:[%s730 + $0x18] sm:$0xff]
    %v735 = vlaneseq
    %v736 = vshrl.u32 %v735, 7
    %v737 = vsub.s32 6, %v736
    %v738 = vrot.slane %v485, %v737
    %v740 = vsel %vm199, %v729, 0
    %742 = vmatprep.subr.mxu0 0.0
    %743 = vmatpush1.msra.mxu0 %v731
    %744 = vmatprep.subr.mxu0 0.0
    %745 = vmatpush1.msra.mxu0 %v732
    %746 = vmatprep.subr.mxu0 0.0
    %747 = vmatpush1.msra.mxu0 %v733
    %748 = vmatprep.subr.mxu0 0.0
    %749 = vmatpush1.msra.mxu0 %v734
    %750 = vmatprep.subr.mxu0 0.0
    %751 = vmatpush1.msra.mxu0 0.0
    %752 = vmatprep.subr.mxu0 0.0
    %753 = vmatpush1.msra.mxu0 0.0
    %754 = vmatprep.subr.mxu0 0.0
    %755 = vmatpush1.msra.mxu0 0.0
    %756 = vmatprep.subr.mxu0 0.0
    %757 = vmatpush1.msra.mxu0 0.0
    %758 = vmatprep.subr.mxu0 0.0
    %759 = vmatpush1.msra.mxu0 0.0
    %760 = vmatprep.subr.mxu0 0.0
    %761 = vmatpush1.msra.mxu0 0.0
    %762 = vmatprep.subr.mxu0 0.0
    %763 = vmatpush1.msra.mxu0 0.0
    %764 = vmatprep.subr.mxu0 0.0
    %765 = vmatpush1.msra.mxu0 0.0
    %766 = vmatprep.subr.mxu0 0.0
    %767 = vmatpush1.msra.mxu0 0.0
    %768 = vmatprep.subr.mxu0 0.0
    %769 = vmatpush1.msra.mxu0 0.0
    %770 = vmatprep.subr.mxu0 0.0
    %771 = vmatpush1.msra.mxu0 0.0
    %772 = vmatprep.subr.mxu0 0.0
    %773 = vmatpush1.msra.mxu0 0.0
    %774 = vmatprep.subr.mxu0 0.0
    %775 = vmatpush1.msra.mxu0 0.0
    %776 = vmatprep.subr.mxu0 0.0
    %777 = vmatpush1.msra.mxu0 0.0
    %778 = vmatprep.subr.mxu0 0.0
    %779 = vmatpush1.msra.mxu0 0.0
    %780 = vmatprep.subr.mxu0 0.0
    %781 = vmatpush1.msra.mxu0 0.0
    %782 = vmatprep.subr.mxu0 0.0
    %783 = vmatpush1.msra.mxu0 0.0
    %784 = vmatprep.subr.mxu0 0.0
    %785 = vmatpush1.msra.mxu0 0.0
    %786 = vmatprep.subr.mxu0 0.0
    %787 = vmatpush1.msra.mxu0 0.0
    %788 = vmatprep.subr.mxu0 0.0
    %789 = vmatpush1.msra.mxu0 0.0
    %790 = vmatprep.subr.mxu0 0.0
    %791 = vmatpush1.msra.mxu0 0.0
    %792 = vmatprep.subr.mxu0 0.0
    %793 = vmatpush1.msra.mxu0 0.0
    %794 = vmatprep.subr.mxu0 0.0
    %795 = vmatpush1.msra.mxu0 0.0
    %796 = vmatprep.subr.mxu0 0.0
    %797 = vmatpush1.msra.mxu0 0.0
    %798 = vmatprep.subr.mxu0 0.0
    %799 = vmatpush1.msra.mxu0 0.0
    %800 = vmatprep.subr.mxu0 0.0
    %801 = vmatpush1.msra.mxu0 0.0
    %802 = vmatprep.subr.mxu0 0.0
    %803 = vmatpush1.msra.mxu0 0.0
    %804 = vmatprep.subr.mxu0 0.0
    %805 = vmatpush1.msra.mxu0 0.0
    %806 = vmatprep.mubr.f32.mxu0 0.0
    %807 = vmatmul.mubr.f32.gmra.mrb[0].mxu0 %v740
    %v808 = vpop.f32.mrb[0].mxu0
    %v809 = vadd.f32 %v738, %v808
    %v810 = vpop.f32.mrb[0].mxu0
    %811 = vdwg.mxu0
    %v812 = vsel %vm394, %v809, -inf
    %813 = vmax.xlane.f32.xlu0 %v812
    %v814 = vpop.xlane.xlu0 %813
    %v815 = vsub.f32 %v809, %v814
    %v816 = vmul.f32 %v815, 1.442695
    %v817 = vpow.pop %v816
    %v818 = vsel %vm394, %v817, 0.0
    %819 = vadd.xlane.f32.xlu0 %v818
    %v820 = vpop.xlane.xlu0 %819
    %v821 = vrcp.pop %v820
    %v822 = vmul.f32 %v820, %v821
    %v823 = vsub.f32 2.0, %v822
    %v824 = vmul.f32 %v821, %v823
    %v825 = vmul.f32 %v817, %v824
    %s826 = scalar_lea.vmem %s6, 4
    %827 = vst.msk [vmem:[%s826] sm:$0xf] %vm394, %v825
    %s828 = scalar_lea.vmem [#allocation2], 8
    %v829 = vld [vmem:[%s828] sm:$0x3f]
    %v831 = vsel %vm75, %v829, 0
    %833 = vmatprep.subr.mxu0 0.0
    %834 = vmatpush1.msra.mxu0 %v831
    %835 = vmatprep.subr.mxu0 0.0
    %836 = vmatpush1.msra.mxu0 0.0
    %837 = vmatprep.subr.mxu0 0.0
    %838 = vmatpush1.msra.mxu0 0.0
    %839 = vmatprep.subr.mxu0 0.0
    %840 = vmatpush1.msra.mxu0 0.0
    %841 = vmatprep.subr.mxu0 0.0
    %842 = vmatpush1.msra.mxu0 0.0
    %843 = vmatprep.subr.mxu0 0.0
    %844 = vmatpush1.msra.mxu0 0.0
    %845 = vmatprep.subr.mxu0 0.0
    %846 = vmatpush1.msra.mxu0 0.0
    %847 = vmatprep.subr.mxu0 0.0
    %848 = vmatpush1.msra.mxu0 0.0
    %849 = vmatprep.subr.mxu0 0.0
    %850 = vmatpush1.msra.mxu0 0.0
    %851 = vmatprep.subr.mxu0 0.0
    %852 = vmatpush1.msra.mxu0 0.0
    %853 = vmatprep.subr.mxu0 0.0
    %854 = vmatpush1.msra.mxu0 0.0
    %855 = vmatprep.subr.mxu0 0.0
    %856 = vmatpush1.msra.mxu0 0.0
    %857 = vmatprep.subr.mxu0 0.0
    %858 = vmatpush1.msra.mxu0 0.0
    %859 = vmatprep.subr.mxu0 0.0
    %860 = vmatpush1.msra.mxu0 0.0
    %861 = vmatprep.subr.mxu0 0.0
    %862 = vmatpush1.msra.mxu0 0.0
    %863 = vmatprep.subr.mxu0 0.0
    %864 = vmatpush1.msra.mxu0 0.0
    %865 = vmatprep.subr.mxu0 0.0
    %866 = vmatpush1.msra.mxu0 0.0
    %867 = vmatprep.subr.mxu0 0.0
    %868 = vmatpush1.msra.mxu0 0.0
    %869 = vmatprep.subr.mxu0 0.0
    %870 = vmatpush1.msra.mxu0 0.0
    %871 = vmatprep.subr.mxu0 0.0
    %872 = vmatpush1.msra.mxu0 0.0
    %873 = vmatprep.subr.mxu0 0.0
    %874 = vmatpush1.msra.mxu0 0.0
    %875 = vmatprep.subr.mxu0 0.0
    %876 = vmatpush1.msra.mxu0 0.0
    %877 = vmatprep.subr.mxu0 0.0
    %878 = vmatpush1.msra.mxu0 0.0
    %879 = vmatprep.subr.mxu0 0.0
    %880 = vmatpush1.msra.mxu0 0.0
    %881 = vmatprep.subr.mxu0 0.0
    %882 = vmatpush1.msra.mxu0 0.0
    %883 = vmatprep.subr.mxu0 0.0
    %884 = vmatpush1.msra.mxu0 0.0
    %885 = vmatprep.subr.mxu0 0.0
    %886 = vmatpush1.msra.mxu0 0.0
    %887 = vmatprep.subr.mxu0 0.0
    %888 = vmatpush1.msra.mxu0 0.0
    %889 = vmatprep.subr.mxu0 0.0
    %890 = vmatpush1.msra.mxu0 0.0
    %891 = vmatprep.subr.mxu0 0.0
    %892 = vmatpush1.msra.mxu0 0.0
    %893 = vmatprep.subr.mxu0 0.0
    %894 = vmatpush1.msra.mxu0 0.0
    %895 = vmatprep.subr.mxu0 0.0
    %896 = vmatpush1.msra.mxu0 0.0
    %897 = vmatprep.mubr.f32.mxu0 0.0
    %898 = vmatmul.mubr.f32.gmra.mrb[0].mxu0 %v493
    %v899 = vpop.f32.mrb[0].mxu0
    %v900 = vadd.f32 0.0, %v899
    %v901 = vpop.f32.mrb[0].mxu0
    %902 = vdwg.mxu0
    %s903 = scalar_lea.vmem [#allocation6], 16
    %v904 = vld [vmem:[%s903] sm:$0xff]
    %s905 = scalar_lea.vmem [#allocation4], 16
    %v906 = vld [vmem:[%s905] sm:$0x3f]
    %v907 = vlaneseq
    %v908 = vshrl.u32 %v907, 7
    %v909 = vsub.s32 0, %v908
    %v910 = vrot.slane %v904, %v909
    %v912 = vsel %vm71, %v900, 0
    %v915 = vsel %vm75, %v906, 0
    %917 = vmatprep.subr.mxu0 0.0
    %918 = vmatpush1.msra.mxu0 %v915
    %919 = vmatprep.subr.mxu0 0.0
    %920 = vmatpush1.msra.mxu0 0.0
    %921 = vmatprep.subr.mxu0 0.0
    %922 = vmatpush1.msra.mxu0 0.0
    %923 = vmatprep.subr.mxu0 0.0
    %924 = vmatpush1.msra.mxu0 0.0
    %925 = vmatprep.subr.mxu0 0.0
    %926 = vmatpush1.msra.mxu0 0.0
    %927 = vmatprep.subr.mxu0 0.0
    %928 = vmatpush1.msra.mxu0 0.0
    %929 = vmatprep.subr.mxu0 0.0
    %930 = vmatpush1.msra.mxu0 0.0
    %931 = vmatprep.subr.mxu0 0.0
    %932 = vmatpush1.msra.mxu0 0.0
    %933 = vmatprep.subr.mxu0 0.0
    %934 = vmatpush1.msra.mxu0 0.0
    %935 = vmatprep.subr.mxu0 0.0
    %936 = vmatpush1.msra.mxu0 0.0
    %937 = vmatprep.subr.mxu0 0.0
    %938 = vmatpush1.msra.mxu0 0.0
    %939 = vmatprep.subr.mxu0 0.0
    %940 = vmatpush1.msra.mxu0 0.0
    %941 = vmatprep.subr.mxu0 0.0
    %942 = vmatpush1.msra.mxu0 0.0
    %943 = vmatprep.subr.mxu0 0.0
    %944 = vmatpush1.msra.mxu0 0.0
    %945 = vmatprep.subr.mxu0 0.0
    %946 = vmatpush1.msra.mxu0 0.0
    %947 = vmatprep.subr.mxu0 0.0
    %948 = vmatpush1.msra.mxu0 0.0
    %949 = vmatprep.subr.mxu0 0.0
    %950 = vmatpush1.msra.mxu0 0.0
    %951 = vmatprep.subr.mxu0 0.0
    %952 = vmatpush1.msra.mxu0 0.0
    %953 = vmatprep.subr.mxu0 0.0
    %954 = vmatpush1.msra.mxu0 0.0
    %955 = vmatprep.subr.mxu0 0.0
    %956 = vmatpush1.msra.mxu0 0.0
    %957 = vmatprep.subr.mxu0 0.0
    %958 = vmatpush1.msra.mxu0 0.0
    %959 = vmatprep.subr.mxu0 0.0
    %960 = vmatpush1.msra.mxu0 0.0
    %961 = vmatprep.subr.mxu0 0.0
    %962 = vmatpush1.msra.mxu0 0.0
    %963 = vmatprep.subr.mxu0 0.0
    %964 = vmatpush1.msra.mxu0 0.0
    %965 = vmatprep.subr.mxu0 0.0
    %966 = vmatpush1.msra.mxu0 0.0
    %967 = vmatprep.subr.mxu0 0.0
    %968 = vmatpush1.msra.mxu0 0.0
    %969 = vmatprep.subr.mxu0 0.0
    %970 = vmatpush1.msra.mxu0 0.0
    %971 = vmatprep.subr.mxu0 0.0
    %972 = vmatpush1.msra.mxu0 0.0
    %973 = vmatprep.subr.mxu0 0.0
    %974 = vmatpush1.msra.mxu0 0.0
    %975 = vmatprep.subr.mxu0 0.0
    %976 = vmatpush1.msra.mxu0 0.0
    %977 = vmatprep.subr.mxu0 0.0
    %978 = vmatpush1.msra.mxu0 0.0
    %979 = vmatprep.subr.mxu0 0.0
    %980 = vmatpush1.msra.mxu0 0.0
    %981 = vmatprep.mubr.f32.mxu0 0.0
    %982 = vmatmul.mubr.f32.gmra.mrb[0].mxu0 %v912
    %v983 = vpop.f32.mrb[0].mxu0
    %v984 = vadd.f32 %v910, %v983
    %v985 = vpop.f32.mrb[0].mxu0
    %986 = vdwg.mxu0
    %vm987 = vcmp.gt.f32.partialorder %v984, 0.0
    %v988 = vmul.f32 %v984, 0.01
    %v989 = vsel %vm987, %v984, %v988
    %v990 = vsel %vm152, %v989, 0.0
    %v991 = vrot.slane %v990, 4
    %v992 = vadd.f32 %v990, %v991
    %v993 = vrot.slane %v992, 2
    %v994 = vadd.f32 %v992, %v993
    %v995 = vrot.slane %v994, 1
    %v996 = vadd.f32 %v994, %v995
    %v997 = vmul.f32 %v996, %v160
    %v998 = vmul.f32 %v989, %v989
    %v999 = vsel %vm152, %v998, 0.0
    %v1000 = vrot.slane %v999, 4
    %v1001 = vadd.f32 %v999, %v1000
    %v1002 = vrot.slane %v1001, 2
    %v1003 = vadd.f32 %v1001, %v1002
    %v1004 = vrot.slane %v1003, 1
    %v1005 = vadd.f32 %v1003, %v1004
    %v1006 = vmul.f32 %v1005, %v160
    %v1007 = vmul.f32 %v997, %v997
    %v1008 = vsub.f32 %v1006, %v1007
    %v1009 = vadd.f32 %v1008, 1e-05
    %v1010 = vrsqrt.pop %v1009
    %v1011 = vmul.f32 %v904, %v1010
    %v1012 = vlaneseq
    %v1013 = vshrl.u32 %v1012, 7
    %v1014 = vsub.s32 1, %v1013
    %v1015 = vrot.slane %v1011, %v1014
    %v1016 = vmul.f32 %v989, %v1015
    %v1017 = vmul.f32 %v997, %v1011
    %v1019 = vrot.slane %v1017, 7
    %v1021 = vsub.f32 %v904, %v1019
    %v1022 = vlaneseq
    %v1023 = vshrl.u32 %v1022, 7
    %v1024 = vsub.s32 2, %v1023
    %v1025 = vrot.slane %v1021, %v1024
    %v1026 = vadd.f32 %v1016, %v1025
    %s1027 = scalar_lea.vmem %s4, 64
    %v1028 = vld [vmem:[%s1027] sm:$0xff]
    %v1029 = vld [vmem:[%s1027 + $0x8] sm:$0xff]
    %v1030 = vld [vmem:[%s1027 + $0x10] sm:$0xff]
    %v1031 = vld [vmem:[%s1027 + $0x18] sm:$0xff]
    %v1032 = vlaneseq
    %v1033 = vshrl.u32 %v1032, 7
    %v1034 = vsub.s32 3, %v1033
    %v1035 = vrot.slane %v904, %v1034
    %v1037 = vsel %vm199, %v1026, 0
    %1039 = vmatprep.subr.mxu0 0.0
    %1040 = vmatpush1.msra.mxu0 %v1028
    %1041 = vmatprep.subr.mxu0 0.0
    %1042 = vmatpush1.msra.mxu0 %v1029
    %1043 = vmatprep.subr.mxu0 0.0
    %1044 = vmatpush1.msra.mxu0 %v1030
    %1045 = vmatprep.subr.mxu0 0.0
    %1046 = vmatpush1.msra.mxu0 %v1031
    %1047 = vmatprep.subr.mxu0 0.0
    %1048 = vmatpush1.msra.mxu0 0.0
    %1049 = vmatprep.subr.mxu0 0.0
    %1050 = vmatpush1.msra.mxu0 0.0
    %1051 = vmatprep.subr.mxu0 0.0
    %1052 = vmatpush1.msra.mxu0 0.0
    %1053 = vmatprep.subr.mxu0 0.0
    %1054 = vmatpush1.msra.mxu0 0.0
    %1055 = vmatprep.subr.mxu0 0.0
    %1056 = vmatpush1.msra.mxu0 0.0
    %1057 = vmatprep.subr.mxu0 0.0
    %1058 = vmatpush1.msra.mxu0 0.0
    %1059 = vmatprep.subr.mxu0 0.0
    %1060 = vmatpush1.msra.mxu0 0.0
    %1061 = vmatprep.subr.mxu0 0.0
    %1062 = vmatpush1.msra.mxu0 0.0
    %1063 = vmatprep.subr.mxu0 0.0
    %1064 = vmatpush1.msra.mxu0 0.0
    %1065 = vmatprep.subr.mxu0 0.0
    %1066 = vmatpush1.msra.mxu0 0.0
    %1067 = vmatprep.subr.mxu0 0.0
    %1068 = vmatpush1.msra.mxu0 0.0
    %1069 = vmatprep.subr.mxu0 0.0
    %1070 = vmatpush1.msra.mxu0 0.0
    %1071 = vmatprep.subr.mxu0 0.0
    %1072 = vmatpush1.msra.mxu0 0.0
    %1073 = vmatprep.subr.mxu0 0.0
    %1074 = vmatpush1.msra.mxu0 0.0
    %1075 = vmatprep.subr.mxu0 0.0
    %1076 = vmatpush1.msra.mxu0 0.0
    %1077 = vmatprep.subr.mxu0 0.0
    %1078 = vmatpush1.msra.mxu0 0.0
    %1079 = vmatprep.subr.mxu0 0.0
    %1080 = vmatpush1.msra.mxu0 0.0
    %1081 = vmatprep.subr.mxu0 0.0
    %1082 = vmatpush1.msra.mxu0 0.0
    %1083 = vmatprep.subr.mxu0 0.0
    %1084 = vmatpush1.msra.mxu0 0.0
    %1085 = vmatprep.subr.mxu0 0.0
    %1086 = vmatpush1.msra.mxu0 0.0
    %1087 = vmatprep.subr.mxu0 0.0
    %1088 = vmatpush1.msra.mxu0 0.0
    %1089 = vmatprep.subr.mxu0 0.0
    %1090 = vmatpush1.msra.mxu0 0.0
    %1091 = vmatprep.subr.mxu0 0.0
    %1092 = vmatpush1.msra.mxu0 0.0
    %1093 = vmatprep.subr.mxu0 0.0
    %1094 = vmatpush1.msra.mxu0 0.0
    %1095 = vmatprep.subr.mxu0 0.0
    %1096 = vmatpush1.msra.mxu0 0.0
    %1097 = vmatprep.subr.mxu0 0.0
    %1098 = vmatpush1.msra.mxu0 0.0
    %1099 = vmatprep.subr.mxu0 0.0
    %1100 = vmatpush1.msra.mxu0 0.0
    %1101 = vmatprep.subr.mxu0 0.0
    %1102 = vmatpush1.msra.mxu0 0.0
    %1103 = vmatprep.mubr.f32.mxu0 0.0
    %1104 = vmatmul.mubr.f32.gmra.mrb[0].mxu0 %v1037
    %v1105 = vpop.f32.mrb[0].mxu0
    %v1106 = vadd.f32 %v1035, %v1105
    %v1107 = vpop.f32.mrb[0].mxu0
    %1108 = vdwg.mxu0
    %vm1109 = vcmp.gt.f32.partialorder %v1106, 0.0
    %v1110 = vmul.f32 %v1106, 0.01
    %v1111 = vsel %vm1109, %v1106, %v1110
    %v1112 = vsel %vm152, %v1111, 0.0
    %v1113 = vrot.slane %v1112, 4
    %v1114 = vadd.f32 %v1112, %v1113
    %v1115 = vrot.slane %v1114, 2
    %v1116 = vadd.f32 %v1114, %v1115
    %v1117 = vrot.slane %v1116, 1
    %v1118 = vadd.f32 %v1116, %v1117
    %v1119 = vmul.f32 %v1118, %v160
    %v1120 = vmul.f32 %v1111, %v1111
    %v1121 = vsel %vm152, %v1120, 0.0
    %v1122 = vrot.slane %v1121, 4
    %v1123 = vadd.f32 %v1121, %v1122
    %v1124 = vrot.slane %v1123, 2
    %v1125 = vadd.f32 %v1123, %v1124
    %v1126 = vrot.slane %v1125, 1
    %v1127 = vadd.f32 %v1125, %v1126
    %v1128 = vmul.f32 %v1127, %v160
    %v1129 = vmul.f32 %v1119, %v1119
    %v1130 = vsub.f32 %v1128, %v1129
    %v1131 = vadd.f32 %v1130, 1e-05
    %v1132 = vrsqrt.pop %v1131
    %v1133 = vmul.f32 %v904, %v1132
    %v1134 = vlaneseq
    %v1135 = vshrl.u32 %v1134, 7
    %v1136 = vsub.s32 4, %v1135
    %v1137 = vrot.slane %v1133, %v1136
    %v1138 = vmul.f32 %v1111, %v1137
    %v1139 = vmul.f32 %v1119, %v1133
    %v1141 = vrot.slane %v1139, 7
    %v1143 = vsub.f32 %v904, %v1141
    %v1144 = vlaneseq
    %v1145 = vshrl.u32 %v1144, 7
    %v1146 = vsub.s32 5, %v1145
    %v1147 = vrot.slane %v1143, %v1146
    %v1148 = vadd.f32 %v1138, %v1147
    %s1149 = scalar_lea.vmem %s5, 64
    %v1150 = vld [vmem:[%s1149] sm:$0xff]
    %v1151 = vld [vmem:[%s1149 + $0x8] sm:$0xff]
    %v1152 = vld [vmem:[%s1149 + $0x10] sm:$0xff]
    %v1153 = vld [vmem:[%s1149 + $0x18] sm:$0xff]
    %v1154 = vlaneseq
    %v1155 = vshrl.u32 %v1154, 7
    %v1156 = vsub.s32 6, %v1155
    %v1157 = vrot.slane %v904, %v1156
    %v1159 = vsel %vm199, %v1148, 0
    %1161 = vmatprep.subr.mxu0 0.0
    %1162 = vmatpush1.msra.mxu0 %v1150
    %1163 = vmatprep.subr.mxu0 0.0
    %1164 = vmatpush1.msra.mxu0 %v1151
    %1165 = vmatprep.subr.mxu0 0.0
    %1166 = vmatpush1.msra.mxu0 %v1152
    %1167 = vmatprep.subr.mxu0 0.0
    %1168 = vmatpush1.msra.mxu0 %v1153
    %1169 = vmatprep.subr.mxu0 0.0
    %1170 = vmatpush1.msra.mxu0 0.0
    %1171 = vmatprep.subr.mxu0 0.0
    %1172 = vmatpush1.msra.mxu0 0.0
    %1173 = vmatprep.subr.mxu0 0.0
    %1174 = vmatpush1.msra.mxu0 0.0
    %1175 = vmatprep.subr.mxu0 0.0
    %1176 = vmatpush1.msra.mxu0 0.0
    %1177 = vmatprep.subr.mxu0 0.0
    %1178 = vmatpush1.msra.mxu0 0.0
    %1179 = vmatprep.subr.mxu0 0.0
    %1180 = vmatpush1.msra.mxu0 0.0
    %1181 = vmatprep.subr.mxu0 0.0
    %1182 = vmatpush1.msra.mxu0 0.0
    %1183 = vmatprep.subr.mxu0 0.0
    %1184 = vmatpush1.msra.mxu0 0.0
    %1185 = vmatprep.subr.mxu0 0.0
    %1186 = vmatpush1.msra.mxu0 0.0
    %1187 = vmatprep.subr.mxu0 0.0
    %1188 = vmatpush1.msra.mxu0 0.0
    %1189 = vmatprep.subr.mxu0 0.0
    %1190 = vmatpush1.msra.mxu0 0.0
    %1191 = vmatprep.subr.mxu0 0.0
    %1192 = vmatpush1.msra.mxu0 0.0
    %1193 = vmatprep.subr.mxu0 0.0
    %1194 = vmatpush1.msra.mxu0 0.0
    %1195 = vmatprep.subr.mxu0 0.0
    %1196 = vmatpush1.msra.mxu0 0.0
    %1197 = vmatprep.subr.mxu0 0.0
    %1198 = vmatpush1.msra.mxu0 0.0
    %1199 = vmatprep.subr.mxu0 0.0
    %1200 = vmatpush1.msra.mxu0 0.0
    %1201 = vmatprep.subr.mxu0 0.0
    %1202 = vmatpush1.msra.mxu0 0.0
    %1203 = vmatprep.subr.mxu0 0.0
    %1204 = vmatpush1.msra.mxu0 0.0
    %1205 = vmatprep.subr.mxu0 0.0
    %1206 = vmatpush1.msra.mxu0 0.0
    %1207 = vmatprep.subr.mxu0 0.0
    %1208 = vmatpush1.msra.mxu0 0.0
    %1209 = vmatprep.subr.mxu0 0.0
    %1210 = vmatpush1.msra.mxu0 0.0
    %1211 = vmatprep.subr.mxu0 0.0
    %1212 = vmatpush1.msra.mxu0 0.0
    %1213 = vmatprep.subr.mxu0 0.0
    %1214 = vmatpush1.msra.mxu0 0.0
    %1215 = vmatprep.subr.mxu0 0.0
    %1216 = vmatpush1.msra.mxu0 0.0
    %1217 = vmatprep.subr.mxu0 0.0
    %1218 = vmatpush1.msra.mxu0 0.0
    %1219 = vmatprep.subr.mxu0 0.0
    %1220 = vmatpush1.msra.mxu0 0.0
    %1221 = vmatprep.subr.mxu0 0.0
    %1222 = vmatpush1.msra.mxu0 0.0
    %1223 = vmatprep.subr.mxu0 0.0
    %1224 = vmatpush1.msra.mxu0 0.0
    %1225 = vmatprep.mubr.f32.mxu0 0.0
    %1226 = vmatmul.mubr.f32.gmra.mrb[0].mxu0 %v1159
    %v1227 = vpop.f32.mrb[0].mxu0
    %v1228 = vadd.f32 %v1157, %v1227
    %v1229 = vpop.f32.mrb[0].mxu0
    %1230 = vdwg.mxu0
    %v1231 = vsel %vm394, %v1228, -inf
    %1232 = vmax.xlane.f32.xlu0 %v1231
    %v1233 = vpop.xlane.xlu0 %1232
    %v1234 = vsub.f32 %v1228, %v1233
    %v1235 = vmul.f32 %v1234, 1.442695
    %v1236 = vpow.pop %v1235
    %v1237 = vsel %vm394, %v1236, 0.0
    %1238 = vadd.xlane.f32.xlu0 %v1237
    %v1239 = vpop.xlane.xlu0 %1238
    %v1240 = vrcp.pop %v1239
    %v1241 = vmul.f32 %v1239, %v1240
    %v1242 = vsub.f32 2.0, %v1241
    %v1243 = vmul.f32 %v1240, %v1242
    %v1244 = vmul.f32 %v1236, %v1243
    %s1245 = scalar_lea.vmem %s6, 8
    %1246 = vst.msk [vmem:[%s1245] sm:$0xf] %vm394, %v1244
    %s1247 = scalar_lea.vmem [#allocation2], 16
    %v1248 = vld [vmem:[%s1247] sm:$0x3f]
    %v1250 = vsel %vm75, %v1248, 0
    %1252 = vmatprep.subr.mxu0 0.0
    %1253 = vmatpush1.msra.mxu0 %v1250
    %1254 = vmatprep.subr.mxu0 0.0
    %1255 = vmatpush1.msra.mxu0 0.0
    %1256 = vmatprep.subr.mxu0 0.0
    %1257 = vmatpush1.msra.mxu0 0.0
    %1258 = vmatprep.subr.mxu0 0.0
    %1259 = vmatpush1.msra.mxu0 0.0
    %1260 = vmatprep.subr.mxu0 0.0
    %1261 = vmatpush1.msra.mxu0 0.0
    %1262 = vmatprep.subr.mxu0 0.0
    %1263 = vmatpush1.msra.mxu0 0.0
    %1264 = vmatprep.subr.mxu0 0.0
    %1265 = vmatpush1.msra.mxu0 0.0
    %1266 = vmatprep.subr.mxu0 0.0
    %1267 = vmatpush1.msra.mxu0 0.0
    %1268 = vmatprep.subr.mxu0 0.0
    %1269 = vmatpush1.msra.mxu0 0.0
    %1270 = vmatprep.subr.mxu0 0.0
    %1271 = vmatpush1.msra.mxu0 0.0
    %1272 = vmatprep.subr.mxu0 0.0
    %1273 = vmatpush1.msra.mxu0 0.0
    %1274 = vmatprep.subr.mxu0 0.0
    %1275 = vmatpush1.msra.mxu0 0.0
    %1276 = vmatprep.subr.mxu0 0.0
    %1277 = vmatpush1.msra.mxu0 0.0
    %1278 = vmatprep.subr.mxu0 0.0
    %1279 = vmatpush1.msra.mxu0 0.0
    %1280 = vmatprep.subr.mxu0 0.0
    %1281 = vmatpush1.msra.mxu0 0.0
    %1282 = vmatprep.subr.mxu0 0.0
    %1283 = vmatpush1.msra.mxu0 0.0
    %1284 = vmatprep.subr.mxu0 0.0
    %1285 = vmatpush1.msra.mxu0 0.0
    %1286 = vmatprep.subr.mxu0 0.0
    %1287 = vmatpush1.msra.mxu0 0.0
    %1288 = vmatprep.subr.mxu0 0.0
    %1289 = vmatpush1.msra.mxu0 0.0
    %1290 = vmatprep.subr.mxu0 0.0
    %1291 = vmatpush1.msra.mxu0 0.0
    %1292 = vmatprep.subr.mxu0 0.0
    %1293 = vmatpush1.msra.mxu0 0.0
    %1294 = vmatprep.subr.mxu0 0.0
    %1295 = vmatpush1.msra.mxu0 0.0
    %1296 = vmatprep.subr.mxu0 0.0
    %1297 = vmatpush1.msra.mxu0 0.0
    %1298 = vmatprep.subr.mxu0 0.0
    %1299 = vmatpush1.msra.mxu0 0.0
    %1300 = vmatprep.subr.mxu0 0.0
    %1301 = vmatpush1.msra.mxu0 0.0
    %1302 = vmatprep.subr.mxu0 0.0
    %1303 = vmatpush1.msra.mxu0 0.0
    %1304 = vmatprep.subr.mxu0 0.0
    %1305 = vmatpush1.msra.mxu0 0.0
    %1306 = vmatprep.subr.mxu0 0.0
    %1307 = vmatpush1.msra.mxu0 0.0
    %1308 = vmatprep.subr.mxu0 0.0
    %1309 = vmatpush1.msra.mxu0 0.0
    %1310 = vmatprep.subr.mxu0 0.0
    %1311 = vmatpush1.msra.mxu0 0.0
    %1312 = vmatprep.subr.mxu0 0.0
    %1313 = vmatpush1.msra.mxu0 0.0
    %1314 = vmatprep.subr.mxu0 0.0
    %1315 = vmatpush1.msra.mxu0 0.0
    %1316 = vmatprep.mubr.f32.mxu0 0.0
    %1317 = vmatmul.mubr.f32.gmra.mrb[0].mxu0 %v912
    %v1318 = vpop.f32.mrb[0].mxu0
    %v1319 = vadd.f32 0.0, %v1318
    %v1320 = vpop.f32.mrb[0].mxu0
    %1321 = vdwg.mxu0
    %s1322 = scalar_lea.vmem [#allocation6], 24
    %v1323 = vld [vmem:[%s1322] sm:$0xff]
    %s1324 = scalar_lea.vmem [#allocation4], 24
    %v1325 = vld [vmem:[%s1324] sm:$0x3f]
    %v1326 = vlaneseq
    %v1327 = vshrl.u32 %v1326, 7
    %v1328 = vsub.s32 0, %v1327
    %v1329 = vrot.slane %v1323, %v1328
    %v1331 = vsel %vm71, %v1319, 0
    %v1334 = vsel %vm75, %v1325, 0
    %1336 = vmatprep.subr.mxu0 0.0
    %1337 = vmatpush1.msra.mxu0 %v1334
    %1338 = vmatprep.subr.mxu0 0.0
    %1339 = vmatpush1.msra.mxu0 0.0
    %1340 = vmatprep.subr.mxu0 0.0
    %1341 = vmatpush1.msra.mxu0 0.0
    %1342 = vmatprep.subr.mxu0 0.0
    %1343 = vmatpush1.msra.mxu0 0.0
    %1344 = vmatprep.subr.mxu0 0.0
    %1345 = vmatpush1.msra.mxu0 0.0
    %1346 = vmatprep.subr.mxu0 0.0
    %1347 = vmatpush1.msra.mxu0 0.0
    %1348 = vmatprep.subr.mxu0 0.0
    %1349 = vmatpush1.msra.mxu0 0.0
    %1350 = vmatprep.subr.mxu0 0.0
    %1351 = vmatpush1.msra.mxu0 0.0
    %1352 = vmatprep.subr.mxu0 0.0
    %1353 = vmatpush1.msra.mxu0 0.0
    %1354 = vmatprep.subr.mxu0 0.0
    %1355 = vmatpush1.msra.mxu0 0.0
    %1356 = vmatprep.subr.mxu0 0.0
    %1357 = vmatpush1.msra.mxu0 0.0
    %1358 = vmatprep.subr.mxu0 0.0
    %1359 = vmatpush1.msra.mxu0 0.0
    %1360 = vmatprep.subr.mxu0 0.0
    %1361 = vmatpush1.msra.mxu0 0.0
    %1362 = vmatprep.subr.mxu0 0.0
    %1363 = vmatpush1.msra.mxu0 0.0
    %1364 = vmatprep.subr.mxu0 0.0
    %1365 = vmatpush1.msra.mxu0 0.0
    %1366 = vmatprep.subr.mxu0 0.0
    %1367 = vmatpush1.msra.mxu0 0.0
    %1368 = vmatprep.subr.mxu0 0.0
    %1369 = vmatpush1.msra.mxu0 0.0
    %1370 = vmatprep.subr.mxu0 0.0
    %1371 = vmatpush1.msra.mxu0 0.0
    %1372 = vmatprep.subr.mxu0 0.0
    %1373 = vmatpush1.msra.mxu0 0.0
    %1374 = vmatprep.subr.mxu0 0.0
    %1375 = vmatpush1.msra.mxu0 0.0
    %1376 = vmatprep.subr.mxu0 0.0
    %1377 = vmatpush1.msra.mxu0 0.0
    %1378 = vmatprep.subr.mxu0 0.0
    %1379 = vmatpush1.msra.mxu0 0.0
    %1380 = vmatprep.subr.mxu0 0.0
    %1381 = vmatpush1.msra.mxu0 0.0
    %1382 = vmatprep.subr.mxu0 0.0
    %1383 = vmatpush1.msra.mxu0 0.0
    %1384 = vmatprep.subr.mxu0 0.0
    %1385 = vmatpush1.msra.mxu0 0.0
    %1386 = vmatprep.subr.mxu0 0.0
    %1387 = vmatpush1.msra.mxu0 0.0
    %1388 = vmatprep.subr.mxu0 0.0
    %1389 = vmatpush1.msra.mxu0 0.0
    %1390 = vmatprep.subr.mxu0 0.0
    %1391 = vmatpush1.msra.mxu0 0.0
    %1392 = vmatprep.subr.mxu0 0.0
    %1393 = vmatpush1.msra.mxu0 0.0
    %1394 = vmatprep.subr.mxu0 0.0
    %1395 = vmatpush1.msra.mxu0 0.0
    %1396 = vmatprep.subr.mxu0 0.0
    %1397 = vmatpush1.msra.mxu0 0.0
    %1398 = vmatprep.subr.mxu0 0.0
    %1399 = vmatpush1.msra.mxu0 0.0
    %1400 = vmatprep.mubr.f32.mxu0 0.0
    %1401 = vmatmul.mubr.f32.gmra.mrb[0].mxu0 %v1331
    %v1402 = vpop.f32.mrb[0].mxu0
    %v1403 = vadd.f32 %v1329, %v1402
    %v1404 = vpop.f32.mrb[0].mxu0
    %1405 = vdwg.mxu0
    %vm1406 = vcmp.gt.f32.partialorder %v1403, 0.0
    %v1407 = vmul.f32 %v1403, 0.01
    %v1408 = vsel %vm1406, %v1403, %v1407
    %v1409 = vsel %vm152, %v1408, 0.0
    %v1410 = vrot.slane %v1409, 4
    %v1411 = vadd.f32 %v1409, %v1410
    %v1412 = vrot.slane %v1411, 2
    %v1413 = vadd.f32 %v1411, %v1412
    %v1414 = vrot.slane %v1413, 1
    %v1415 = vadd.f32 %v1413, %v1414
    %v1416 = vmul.f32 %v1415, %v160
    %v1417 = vmul.f32 %v1408, %v1408
    %v1418 = vsel %vm152, %v1417, 0.0
    %v1419 = vrot.slane %v1418, 4
    %v1420 = vadd.f32 %v1418, %v1419
    %v1421 = vrot.slane %v1420, 2
    %v1422 = vadd.f32 %v1420, %v1421
    %v1423 = vrot.slane %v1422, 1
    %v1424 = vadd.f32 %v1422, %v1423
    %v1425 = vmul.f32 %v1424, %v160
    %v1426 = vmul.f32 %v1416, %v1416
    %v1427 = vsub.f32 %v1425, %v1426
    %v1428 = vadd.f32 %v1427, 1e-05
    %v1429 = vrsqrt.pop %v1428
    %v1430 = vmul.f32 %v1323, %v1429
    %v1431 = vlaneseq
    %v1432 = vshrl.u32 %v1431, 7
    %v1433 = vsub.s32 1, %v1432
    %v1434 = vrot.slane %v1430, %v1433
    %v1435 = vmul.f32 %v1408, %v1434
    %v1436 = vmul.f32 %v1416, %v1430
    %v1438 = vrot.slane %v1436, 7
    %v1440 = vsub.f32 %v1323, %v1438
    %v1441 = vlaneseq
    %v1442 = vshrl.u32 %v1441, 7
    %v1443 = vsub.s32 2, %v1442
    %v1444 = vrot.slane %v1440, %v1443
    %v1445 = vadd.f32 %v1435, %v1444
    %s1446 = scalar_lea.vmem %s4, 96
    %v1447 = vld [vmem:[%s1446] sm:$0xff]
    %v1448 = vld [vmem:[%s1446 + $0x8] sm:$0xff]
    %v1449 = vld [vmem:[%s1446 + $0x10] sm:$0xff]
    %v1450 = vld [vmem:[%s1446 + $0x18] sm:$0xff]
    %v1451 = vlaneseq
    %v1452 = vshrl.u32 %v1451, 7
    %v1453 = vsub.s32 3, %v1452
    %v1454 = vrot.slane %v1323, %v1453
    %v1456 = vsel %vm199, %v1445, 0
    %1458 = vmatprep.subr.mxu0 0.0
    %1459 = vmatpush1.msra.mxu0 %v1447
    %1460 = vmatprep.subr.mxu0 0.0
    %1461 = vmatpush1.msra.mxu0 %v1448
    %1462 = vmatprep.subr.mxu0 0.0
    %1463 = vmatpush1.msra.mxu0 %v1449
    %1464 = vmatprep.subr.mxu0 0.0
    %1465 = vmatpush1.msra.mxu0 %v1450
    %1466 = vmatprep.subr.mxu0 0.0
    %1467 = vmatpush1.msra.mxu0 0.0
    %1468 = vmatprep.subr.mxu0 0.0
    %1469 = vmatpush1.msra.mxu0 0.0
    %1470 = vmatprep.subr.mxu0 0.0
    %1471 = vmatpush1.msra.mxu0 0.0
    %1472 = vmatprep.subr.mxu0 0.0
    %1473 = vmatpush1.msra.mxu0 0.0
    %1474 = vmatprep.subr.mxu0 0.0
    %1475 = vmatpush1.msra.mxu0 0.0
    %1476 = vmatprep.subr.mxu0 0.0
    %1477 = vmatpush1.msra.mxu0 0.0
    %1478 = vmatprep.subr.mxu0 0.0
    %1479 = vmatpush1.msra.mxu0 0.0
    %1480 = vmatprep.subr.mxu0 0.0
    %1481 = vmatpush1.msra.mxu0 0.0
    %1482 = vmatprep.subr.mxu0 0.0
    %1483 = vmatpush1.msra.mxu0 0.0
    %1484 = vmatprep.subr.mxu0 0.0
    %1485 = vmatpush1.msra.mxu0 0.0
    %1486 = vmatprep.subr.mxu0 0.0
    %1487 = vmatpush1.msra.mxu0 0.0
    %1488 = vmatprep.subr.mxu0 0.0
    %1489 = vmatpush1.msra.mxu0 0.0
    %1490 = vmatprep.subr.mxu0 0.0
    %1491 = vmatpush1.msra.mxu0 0.0
    %1492 = vmatprep.subr.mxu0 0.0
    %1493 = vmatpush1.msra.mxu0 0.0
    %1494 = vmatprep.subr.mxu0 0.0
    %1495 = vmatpush1.msra.mxu0 0.0
    %1496 = vmatprep.subr.mxu0 0.0
    %1497 = vmatpush1.msra.mxu0 0.0
    %1498 = vmatprep.subr.mxu0 0.0
    %1499 = vmatpush1.msra.mxu0 0.0
    %1500 = vmatprep.subr.mxu0 0.0
    %1501 = vmatpush1.msra.mxu0 0.0
    %1502 = vmatprep.subr.mxu0 0.0
    %1503 = vmatpush1.msra.mxu0 0.0
    %1504 = vmatprep.subr.mxu0 0.0
    %1505 = vmatpush1.msra.mxu0 0.0
    %1506 = vmatprep.subr.mxu0 0.0
    %1507 = vmatpush1.msra.mxu0 0.0
    %1508 = vmatprep.subr.mxu0 0.0
    %1509 = vmatpush1.msra.mxu0 0.0
    %1510 = vmatprep.subr.mxu0 0.0
    %1511 = vmatpush1.msra.mxu0 0.0
    %1512 = vmatprep.subr.mxu0 0.0
    %1513 = vmatpush1.msra.mxu0 0.0
    %1514 = vmatprep.subr.mxu0 0.0
    %1515 = vmatpush1.msra.mxu0 0.0
    %1516 = vmatprep.subr.mxu0 0.0
    %1517 = vmatpush1.msra.mxu0 0.0
    %1518 = vmatprep.subr.mxu0 0.0
    %1519 = vmatpush1.msra.mxu0 0.0
    %1520 = vmatprep.subr.mxu0 0.0
    %1521 = vmatpush1.msra.mxu0 0.0
    %1522 = vmatprep.mubr.f32.mxu0 0.0
    %1523 = vmatmul.mubr.f32.gmra.mrb[0].mxu0 %v1456
    %v1524 = vpop.f32.mrb[0].mxu0
    %v1525 = vadd.f32 %v1454, %v1524
    %v1526 = vpop.f32.mrb[0].mxu0
    %1527 = vdwg.mxu0
    %vm1528 = vcmp.gt.f32.partialorder %v1525, 0.0
    %v1529 = vmul.f32 %v1525, 0.01
    %v1530 = vsel %vm1528, %v1525, %v1529
    %v1531 = vsel %vm152, %v1530, 0.0
    %v1532 = vrot.slane %v1531, 4
    %v1533 = vadd.f32 %v1531, %v1532
    %v1534 = vrot.slane %v1533, 2
    %v1535 = vadd.f32 %v1533, %v1534
    %v1536 = vrot.slane %v1535, 1
    %v1537 = vadd.f32 %v1535, %v1536
    %v1538 = vmul.f32 %v1537, %v160
    %v1539 = vmul.f32 %v1530, %v1530
    %v1540 = vsel %vm152, %v1539, 0.0
    %v1541 = vrot.slane %v1540, 4
    %v1542 = vadd.f32 %v1540, %v1541
    %v1543 = vrot.slane %v1542, 2
    %v1544 = vadd.f32 %v1542, %v1543
    %v1545 = vrot.slane %v1544, 1
    %v1546 = vadd.f32 %v1544, %v1545
    %v1547 = vmul.f32 %v1546, %v160
    %v1548 = vmul.f32 %v1538, %v1538
    %v1549 = vsub.f32 %v1547, %v1548
    %v1550 = vadd.f32 %v1549, 1e-05
    %v1551 = vrsqrt.pop %v1550
    %v1552 = vmul.f32 %v1323, %v1551
    %v1553 = vlaneseq
    %v1554 = vshrl.u32 %v1553, 7
    %v1555 = vsub.s32 4, %v1554
    %v1556 = vrot.slane %v1552, %v1555
    %v1557 = vmul.f32 %v1530, %v1556
    %v1558 = vmul.f32 %v1538, %v1552
    %v1560 = vrot.slane %v1558, 7
    %v1562 = vsub.f32 %v1323, %v1560
    %v1563 = vlaneseq
    %v1564 = vshrl.u32 %v1563, 7
    %v1565 = vsub.s32 5, %v1564
    %v1566 = vrot.slane %v1562, %v1565
    %v1567 = vadd.f32 %v1557, %v1566
    %s1568 = scalar_lea.vmem %s5, 96
    %v1569 = vld [vmem:[%s1568] sm:$0xff]
    %v1570 = vld [vmem:[%s1568 + $0x8] sm:$0xff]
    %v1571 = vld [vmem:[%s1568 + $0x10] sm:$0xff]
    %v1572 = vld [vmem:[%s1568 + $0x18] sm:$0xff]
    %v1573 = vlaneseq
    %v1574 = vshrl.u32 %v1573, 7
    %v1575 = vsub.s32 6, %v1574
    %v1576 = vrot.slane %v1323, %v1575
    %v1578 = vsel %vm199, %v1567, 0
    %1580 = vmatprep.subr.mxu0 0.0
    %1581 = vmatpush1.msra.mxu0 %v1569
    %1582 = vmatprep.subr.mxu0 0.0
    %1583 = vmatpush1.msra.mxu0 %v1570
    %1584 = vmatprep.subr.mxu0 0.0
    %1585 = vmatpush1.msra.mxu0 %v1571
    %1586 = vmatprep.subr.mxu0 0.0
    %1587 = vmatpush1.msra.mxu0 %v1572
    %1588 = vmatprep.subr.mxu0 0.0
    %1589 = vmatpush1.msra.mxu0 0.0
    %1590 = vmatprep.subr.mxu0 0.0
    %1591 = vmatpush1.msra.mxu0 0.0
    %1592 = vmatprep.subr.mxu0 0.0
    %1593 = vmatpush1.msra.mxu0 0.0
    %1594 = vmatprep.subr.mxu0 0.0
    %1595 = vmatpush1.msra.mxu0 0.0
    %1596 = vmatprep.subr.mxu0 0.0
    %1597 = vmatpush1.msra.mxu0 0.0
    %1598 = vmatprep.subr.mxu0 0.0
    %1599 = vmatpush1.msra.mxu0 0.0
    %1600 = vmatprep.subr.mxu0 0.0
    %1601 = vmatpush1.msra.mxu0 0.0
    %1602 = vmatprep.subr.mxu0 0.0
    %1603 = vmatpush1.msra.mxu0 0.0
    %1604 = vmatprep.subr.mxu0 0.0
    %1605 = vmatpush1.msra.mxu0 0.0
    %1606 = vmatprep.subr.mxu0 0.0
    %1607 = vmatpush1.msra.mxu0 0.0
    %1608 = vmatprep.subr.mxu0 0.0
    %1609 = vmatpush1.msra.mxu0 0.0
    %1610 = vmatprep.subr.mxu0 0.0
    %1611 = vmatpush1.msra.mxu0 0.0
    %1612 = vmatprep.subr.mxu0 0.0
    %1613 = vmatpush1.msra.mxu0 0.0
    %1614 = vmatprep.subr.mxu0 0.0
    %1615 = vmatpush1.msra.mxu0 0.0
    %1616 = vmatprep.subr.mxu0 0.0
    %1617 = vmatpush1.msra.mxu0 0.0
    %1618 = vmatprep.subr.mxu0 0.0
    %1619 = vmatpush1.msra.mxu0 0.0
    %1620 = vmatprep.subr.mxu0 0.0
    %1621 = vmatpush1.msra.mxu0 0.0
    %1622 = vmatprep.subr.mxu0 0.0
    %1623 = vmatpush1.msra.mxu0 0.0
    %1624 = vmatprep.subr.mxu0 0.0
    %1625 = vmatpush1.msra.mxu0 0.0
    %1626 = vmatprep.subr.mxu0 0.0
    %1627 = vmatpush1.msra.mxu0 0.0
    %1628 = vmatprep.subr.mxu0 0.0
    %1629 = vmatpush1.msra.mxu0 0.0
    %1630 = vmatprep.subr.mxu0 0.0
    %1631 = vmatpush1.msra.mxu0 0.0
    %1632 = vmatprep.subr.mxu0 0.0
    %1633 = vmatpush1.msra.mxu0 0.0
    %1634 = vmatprep.subr.mxu0 0.0
    %1635 = vmatpush1.msra.mxu0 0.0
    %1636 = vmatprep.subr.mxu0 0.0
    %1637 = vmatpush1.msra.mxu0 0.0
    %1638 = vmatprep.subr.mxu0 0.0
    %1639 = vmatpush1.msra.mxu0 0.0
    %1640 = vmatprep.subr.mxu0 0.0
    %1641 = vmatpush1.msra.mxu0 0.0
    %1642 = vmatprep.subr.mxu0 0.0
    %1643 = vmatpush1.msra.mxu0 0.0
    %1644 = vmatprep.mubr.f32.mxu0 0.0
    %1645 = vmatmul.mubr.f32.gmra.mrb[0].mxu0 %v1578
    %v1646 = vpop.f32.mrb[0].mxu0
    %v1647 = vadd.f32 %v1576, %v1646
    %v1648 = vpop.f32.mrb[0].mxu0
    %1649 = vdwg.mxu0
    %v1650 = vsel %vm394, %v1647, -inf
    %1651 = vmax.xlane.f32.xlu0 %v1650
    %v1652 = vpop.xlane.xlu0 %1651
    %v1653 = vsub.f32 %v1647, %v1652
    %v1654 = vmul.f32 %v1653, 1.442695
    %v1655 = vpow.pop %v1654
    %v1656 = vsel %vm394, %v1655, 0.0
    %1657 = vadd.xlane.f32.xlu0 %v1656
    %v1658 = vpop.xlane.xlu0 %1657
    %v1659 = vrcp.pop %v1658
    %v1660 = vmul.f32 %v1658, %v1659
    %v1661 = vsub.f32 2.0, %v1660
    %v1662 = vmul.f32 %v1659, %v1661
    %v1663 = vmul.f32 %v1655, %v1662
    %s1664 = scalar_lea.vmem %s6, 12
    %1665 = vst.msk [vmem:[%s1664] sm:$0xf] %vm394, %v1663
    %s1666 = scalar_lea.vmem [#allocation2], 24
    %v1667 = vld [vmem:[%s1666] sm:$0x3f]
    %v1669 = vsel %vm75, %v1667, 0
    %1671 = vmatprep.subr.mxu0 0.0
    %1672 = vmatpush1.msra.mxu0 %v1669
    %1673 = vmatprep.subr.mxu0 0.0
    %1674 = vmatpush1.msra.mxu0 0.0
    %1675 = vmatprep.subr.mxu0 0.0
    %1676 = vmatpush1.msra.mxu0 0.0
    %1677 = vmatprep.subr.mxu0 0.0
    %1678 = vmatpush1.msra.mxu0 0.0
    %1679 = vmatprep.subr.mxu0 0.0
    %1680 = vmatpush1.msra.mxu0 0.0
    %1681 = vmatprep.subr.mxu0 0.0
    %1682 = vmatpush1.msra.mxu0 0.0
    %1683 = vmatprep.subr.mxu0 0.0
    %1684 = vmatpush1.msra.mxu0 0.0
    %1685 = vmatprep.subr.mxu0 0.0
    %1686 = vmatpush1.msra.mxu0 0.0
    %1687 = vmatprep.subr.mxu0 0.0
    %1688 = vmatpush1.msra.mxu0 0.0
    %1689 = vmatprep.subr.mxu0 0.0
    %1690 = vmatpush1.msra.mxu0 0.0
    %1691 = vmatprep.subr.mxu0 0.0
    %1692 = vmatpush1.msra.mxu0 0.0
    %1693 = vmatprep.subr.mxu0 0.0
    %1694 = vmatpush1.msra.mxu0 0.0
    %1695 = vmatprep.subr.mxu0 0.0
    %1696 = vmatpush1.msra.mxu0 0.0
    %1697 = vmatprep.subr.mxu0 0.0
    %1698 = vmatpush1.msra.mxu0 0.0
    %1699 = vmatprep.subr.mxu0 0.0
    %1700 = vmatpush1.msra.mxu0 0.0
    %1701 = vmatprep.subr.mxu0 0.0
    %1702 = vmatpush1.msra.mxu0 0.0
    %1703 = vmatprep.subr.mxu0 0.0
    %1704 = vmatpush1.msra.mxu0 0.0
    %1705 = vmatprep.subr.mxu0 0.0
    %1706 = vmatpush1.msra.mxu0 0.0
    %1707 = vmatprep.subr.mxu0 0.0
    %1708 = vmatpush1.msra.mxu0 0.0
    %1709 = vmatprep.subr.mxu0 0.0
    %1710 = vmatpush1.msra.mxu0 0.0
    %1711 = vmatprep.subr.mxu0 0.0
    %1712 = vmatpush1.msra.mxu0 0.0
    %1713 = vmatprep.subr.mxu0 0.0
    %1714 = vmatpush1.msra.mxu0 0.0
    %1715 = vmatprep.subr.mxu0 0.0
    %1716 = vmatpush1.msra.mxu0 0.0
    %1717 = vmatprep.subr.mxu0 0.0
    %1718 = vmatpush1.msra.mxu0 0.0
    %1719 = vmatprep.subr.mxu0 0.0
    %1720 = vmatpush1.msra.mxu0 0.0
    %1721 = vmatprep.subr.mxu0 0.0
    %1722 = vmatpush1.msra.mxu0 0.0
    %1723 = vmatprep.subr.mxu0 0.0
    %1724 = vmatpush1.msra.mxu0 0.0
    %1725 = vmatprep.subr.mxu0 0.0
    %1726 = vmatpush1.msra.mxu0 0.0
    %1727 = vmatprep.subr.mxu0 0.0
    %1728 = vmatpush1.msra.mxu0 0.0
    %1729 = vmatprep.subr.mxu0 0.0
    %1730 = vmatpush1.msra.mxu0 0.0
    %1731 = vmatprep.subr.mxu0 0.0
    %1732 = vmatpush1.msra.mxu0 0.0
    %1733 = vmatprep.subr.mxu0 0.0
    %1734 = vmatpush1.msra.mxu0 0.0
    %1735 = vmatprep.mubr.f32.mxu0 0.0
    %1736 = vmatmul.mubr.f32.gmra.mrb[0].mxu0 %v1331
    %v1737 = vpop.f32.mrb[0].mxu0
    %v1738 = vadd.f32 0.0, %v1737
    %v1739 = vpop.f32.mrb[0].mxu0
    %1740 = vdwg.mxu0
    %s1741 = scalar_lea.vmem [#allocation6], 32
    %v1742 = vld [vmem:[%s1741] sm:$0xff]
    %s1743 = scalar_lea.vmem [#allocation4], 32
    %v1744 = vld [vmem:[%s1743] sm:$0x3f]
    %v1745 = vlaneseq
    %v1746 = vshrl.u32 %v1745, 7
    %v1747 = vsub.s32 0, %v1746
    %v1748 = vrot.slane %v1742, %v1747
    %v1750 = vsel %vm71, %v1738, 0
    %v1753 = vsel %vm75, %v1744, 0
    %1755 = vmatprep.subr.mxu0 0.0
    %1756 = vmatpush1.msra.mxu0 %v1753
    %1757 = vmatprep.subr.mxu0 0.0
    %1758 = vmatpush1.msra.mxu0 0.0
    %1759 = vmatprep.subr.mxu0 0.0
    %1760 = vmatpush1.msra.mxu0 0.0
    %1761 = vmatprep.subr.mxu0 0.0
    %1762 = vmatpush1.msra.mxu0 0.0
    %1763 = vmatprep.subr.mxu0 0.0
    %1764 = vmatpush1.msra.mxu0 0.0
    %1765 = vmatprep.subr.mxu0 0.0
    %1766 = vmatpush1.msra.mxu0 0.0
    %1767 = vmatprep.subr.mxu0 0.0
    %1768 = vmatpush1.msra.mxu0 0.0
    %1769 = vmatprep.subr.mxu0 0.0
    %1770 = vmatpush1.msra.mxu0 0.0
    %1771 = vmatprep.subr.mxu0 0.0
    %1772 = vmatpush1.msra.mxu0 0.0
    %1773 = vmatprep.subr.mxu0 0.0
    %1774 = vmatpush1.msra.mxu0 0.0
    %1775 = vmatprep.subr.mxu0 0.0
    %1776 = vmatpush1.msra.mxu0 0.0
    %1777 = vmatprep.subr.mxu0 0.0
    %1778 = vmatpush1.msra.mxu0 0.0
    %1779 = vmatprep.subr.mxu0 0.0
    %1780 = vmatpush1.msra.mxu0 0.0
    %1781 = vmatprep.subr.mxu0 0.0
    %1782 = vmatpush1.msra.mxu0 0.0
    %1783 = vmatprep.subr.mxu0 0.0
    %1784 = vmatpush1.msra.mxu0 0.0
    %1785 = vmatprep.subr.mxu0 0.0
    %1786 = vmatpush1.msra.mxu0 0.0
    %1787 = vmatprep.subr.mxu0 0.0
    %1788 = vmatpush1.msra.mxu0 0.0
    %1789 = vmatprep.subr.mxu0 0.0
    %1790 = vmatpush1.msra.mxu0 0.0
    %1791 = vmatprep.subr.mxu0 0.0
    %1792 = vmatpush1.msra.mxu0 0.0
    %1793 = vmatprep.subr.mxu0 0.0
    %1794 = vmatpush1.msra.mxu0 0.0
    %1795 = vmatprep.subr.mxu0 0.0
    %1796 = vmatpush1.msra.mxu0 0.0
    %1797 = vmatprep.subr.mxu0 0.0
    %1798 = vmatpush1.msra.mxu0 0.0
    %1799 = vmatprep.subr.mxu0 0.0
    %1800 = vmatpush1.msra.mxu0 0.0
    %1801 = vmatprep.subr.mxu0 0.0
    %1802 = vmatpush1.msra.mxu0 0.0
    %1803 = vmatprep.subr.mxu0 0.0
    %1804 = vmatpush1.msra.mxu0 0.0
    %1805 = vmatprep.subr.mxu0 0.0
    %1806 = vmatpush1.msra.mxu0 0.0
    %1807 = vmatprep.subr.mxu0 0.0
    %1808 = vmatpush1.msra.mxu0 0.0
    %1809 = vmatprep.subr.mxu0 0.0
    %1810 = vmatpush1.msra.mxu0 0.0
    %1811 = vmatprep.subr.mxu0 0.0
    %1812 = vmatpush1.msra.mxu0 0.0
    %1813 = vmatprep.subr.mxu0 0.0
    %1814 = vmatpush1.msra.mxu0 0.0
    %1815 = vmatprep.subr.mxu0 0.0
    %1816 = vmatpush1.msra.mxu0 0.0
    %1817 = vmatprep.subr.mxu0 0.0
    %1818 = vmatpush1.msra.mxu0 0.0
    %1819 = vmatprep.mubr.f32.mxu0 0.0
    %1820 = vmatmul.mubr.f32.gmra.mrb[0].mxu0 %v1750
    %v1821 = vpop.f32.mrb[0].mxu0
    %v1822 = vadd.f32 %v1748, %v1821
    %v1823 = vpop.f32.mrb[0].mxu0
    %1824 = vdwg.mxu0
    %vm1825 = vcmp.gt.f32.partialorder %v1822, 0.0
    %v1826 = vmul.f32 %v1822, 0.01
    %v1827 = vsel %vm1825, %v1822, %v1826
    %v1828 = vsel %vm152, %v1827, 0.0
    %v1829 = vrot.slane %v1828, 4
    %v1830 = vadd.f32 %v1828, %v1829
    %v1831 = vrot.slane %v1830, 2
    %v1832 = vadd.f32 %v1830, %v1831
    %v1833 = vrot.slane %v1832, 1
    %v1834 = vadd.f32 %v1832, %v1833
    %v1835 = vmul.f32 %v1834, %v160
    %v1836 = vmul.f32 %v1827, %v1827
    %v1837 = vsel %vm152, %v1836, 0.0
    %v1838 = vrot.slane %v1837, 4
    %v1839 = vadd.f32 %v1837, %v1838
    %v1840 = vrot.slane %v1839, 2
    %v1841 = vadd.f32 %v1839, %v1840
    %v1842 = vrot.slane %v1841, 1
    %v1843 = vadd.f32 %v1841, %v1842
    %v1844 = vmul.f32 %v1843, %v160
    %v1845 = vmul.f32 %v1835, %v1835
    %v1846 = vsub.f32 %v1844, %v1845
    %v1847 = vadd.f32 %v1846, 1e-05
    %v1848 = vrsqrt.pop %v1847
    %v1849 = vmul.f32 %v1742, %v1848
    %v1850 = vlaneseq
    %v1851 = vshrl.u32 %v1850, 7
    %v1852 = vsub.s32 1, %v1851
    %v1853 = vrot.slane %v1849, %v1852
    %v1854 = vmul.f32 %v1827, %v1853
    %v1855 = vmul.f32 %v1835, %v1849
    %v1857 = vrot.slane %v1855, 7
    %v1859 = vsub.f32 %v1742, %v1857
    %v1860 = vlaneseq
    %v1861 = vshrl.u32 %v1860, 7
    %v1862 = vsub.s32 2, %v1861
    %v1863 = vrot.slane %v1859, %v1862
    %v1864 = vadd.f32 %v1854, %v1863
    %s1865 = scalar_lea.vmem %s4, 128
    %v1866 = vld [vmem:[%s1865] sm:$0xff]
    %v1867 = vld [vmem:[%s1865 + $0x8] sm:$0xff]
    %v1868 = vld [vmem:[%s1865 + $0x10] sm:$0xff]
    %v1869 = vld [vmem:[%s1865 + $0x18] sm:$0xff]
    %v1870 = vlaneseq
    %v1871 = vshrl.u32 %v1870, 7
    %v1872 = vsub.s32 3, %v1871
    %v1873 = vrot.slane %v1742, %v1872
    %v1875 = vsel %vm199, %v1864, 0
    %1877 = vmatprep.subr.mxu0 0.0
    %1878 = vmatpush1.msra.mxu0 %v1866
    %1879 = vmatprep.subr.mxu0 0.0
    %1880 = vmatpush1.msra.mxu0 %v1867
    %1881 = vmatprep.subr.mxu0 0.0
    %1882 = vmatpush1.msra.mxu0 %v1868
    %1883 = vmatprep.subr.mxu0 0.0
    %1884 = vmatpush1.msra.mxu0 %v1869
    %1885 = vmatprep.subr.mxu0 0.0
    %1886 = vmatpush1.msra.mxu0 0.0
    %1887 = vmatprep.subr.mxu0 0.0
    %1888 = vmatpush1.msra.mxu0 0.0
    %1889 = vmatprep.subr.mxu0 0.0
    %1890 = vmatpush1.msra.mxu0 0.0
    %1891 = vmatprep.subr.mxu0 0.0
    %1892 = vmatpush1.msra.mxu0 0.0
    %1893 = vmatprep.subr.mxu0 0.0
    %1894 = vmatpush1.msra.mxu0 0.0
    %1895 = vmatprep.subr.mxu0 0.0
    %1896 = vmatpush1.msra.mxu0 0.0
    %1897 = vmatprep.subr.mxu0 0.0
    %1898 = vmatpush1.msra.mxu0 0.0
    %1899 = vmatprep.subr.mxu0 0.0
    %1900 = vmatpush1.msra.mxu0 0.0
    %1901 = vmatprep.subr.mxu0 0.0
    %1902 = vmatpush1.msra.mxu0 0.0
    %1903 = vmatprep.subr.mxu0 0.0
    %1904 = vmatpush1.msra.mxu0 0.0
    %1905 = vmatprep.subr.mxu0 0.0
    %1906 = vmatpush1.msra.mxu0 0.0
    %1907 = vmatprep.subr.mxu0 0.0
    %1908 = vmatpush1.msra.mxu0 0.0
    %1909 = vmatprep.subr.mxu0 0.0
    %1910 = vmatpush1.msra.mxu0 0.0
    %1911 = vmatprep.subr.mxu0 0.0
    %1912 = vmatpush1.msra.mxu0 0.0
    %1913 = vmatprep.subr.mxu0 0.0
    %1914 = vmatpush1.msra.mxu0 0.0
    %1915 = vmatprep.subr.mxu0 0.0
    %1916 = vmatpush1.msra.mxu0 0.0
    %1917 = vmatprep.subr.mxu0 0.0
    %1918 = vmatpush1.msra.mxu0 0.0
    %1919 = vmatprep.subr.mxu0 0.0
    %1920 = vmatpush1.msra.mxu0 0.0
    %1921 = vmatprep.subr.mxu0 0.0
    %1922 = vmatpush1.msra.mxu0 0.0
    %1923 = vmatprep.subr.mxu0 0.0
    %1924 = vmatpush1.msra.mxu0 0.0
    %1925 = vmatprep.subr.mxu0 0.0
    %1926 = vmatpush1.msra.mxu0 0.0
    %1927 = vmatprep.subr.mxu0 0.0
    %1928 = vmatpush1.msra.mxu0 0.0
    %1929 = vmatprep.subr.mxu0 0.0
    %1930 = vmatpush1.msra.mxu0 0.0
    %1931 = vmatprep.subr.mxu0 0.0
    %1932 = vmatpush1.msra.mxu0 0.0
    %1933 = vmatprep.subr.mxu0 0.0
    %1934 = vmatpush1.msra.mxu0 0.0
    %1935 = vmatprep.subr.mxu0 0.0
    %1936 = vmatpush1.msra.mxu0 0.0
    %1937 = vmatprep.subr.mxu0 0.0
    %1938 = vmatpush1.msra.mxu0 0.0
    %1939 = vmatprep.subr.mxu0 0.0
    %1940 = vmatpush1.msra.mxu0 0.0
    %1941 = vmatprep.mubr.f32.mxu0 0.0
    %1942 = vmatmul.mubr.f32.gmra.mrb[0].mxu0 %v1875
    %v1943 = vpop.f32.mrb[0].mxu0
    %v1944 = vadd.f32 %v1873, %v1943
    %v1945 = vpop.f32.mrb[0].mxu0
    %1946 = vdwg.mxu0
    %vm1947 = vcmp.gt.f32.partialorder %v1944, 0.0
    %v1948 = vmul.f32 %v1944, 0.01
    %v1949 = vsel %vm1947, %v1944, %v1948
    %v1950 = vsel %vm152, %v1949, 0.0
    %v1951 = vrot.slane %v1950, 4
    %v1952 = vadd.f32 %v1950, %v1951
    %v1953 = vrot.slane %v1952, 2
    %v1954 = vadd.f32 %v1952, %v1953
    %v1955 = vrot.slane %v1954, 1
    %v1956 = vadd.f32 %v1954, %v1955
    %v1957 = vmul.f32 %v1956, %v160
    %v1958 = vmul.f32 %v1949, %v1949
    %v1959 = vsel %vm152, %v1958, 0.0
    %v1960 = vrot.slane %v1959, 4
    %v1961 = vadd.f32 %v1959, %v1960
    %v1962 = vrot.slane %v1961, 2
    %v1963 = vadd.f32 %v1961, %v1962
    %v1964 = vrot.slane %v1963, 1
    %v1965 = vadd.f32 %v1963, %v1964
    %v1966 = vmul.f32 %v1965, %v160
    %v1967 = vmul.f32 %v1957, %v1957
    %v1968 = vsub.f32 %v1966, %v1967
    %v1969 = vadd.f32 %v1968, 1e-05
    %v1970 = vrsqrt.pop %v1969
    %v1971 = vmul.f32 %v1742, %v1970
    %v1972 = vlaneseq
    %v1973 = vshrl.u32 %v1972, 7
    %v1974 = vsub.s32 4, %v1973
    %v1975 = vrot.slane %v1971, %v1974
    %v1976 = vmul.f32 %v1949, %v1975
    %v1977 = vmul.f32 %v1957, %v1971
    %v1979 = vrot.slane %v1977, 7
    %v1981 = vsub.f32 %v1742, %v1979
    %v1982 = vlaneseq
    %v1983 = vshrl.u32 %v1982, 7
    %v1984 = vsub.s32 5, %v1983
    %v1985 = vrot.slane %v1981, %v1984
    %v1986 = vadd.f32 %v1976, %v1985
    %s1987 = scalar_lea.vmem %s5, 128
    %v1988 = vld [vmem:[%s1987] sm:$0xff]
    %v1989 = vld [vmem:[%s1987 + $0x8] sm:$0xff]
    %v1990 = vld [vmem:[%s1987 + $0x10] sm:$0xff]
    %v1991 = vld [vmem:[%s1987 + $0x18] sm:$0xff]
    %v1992 = vlaneseq
    %v1993 = vshrl.u32 %v1992, 7
    %v1994 = vsub.s32 6, %v1993
    %v1995 = vrot.slane %v1742, %v1994
    %v1997 = vsel %vm199, %v1986, 0
    %1999 = vmatprep.subr.mxu0 0.0
    %2000 = vmatpush1.msra.mxu0 %v1988
    %2001 = vmatprep.subr.mxu0 0.0
    %2002 = vmatpush1.msra.mxu0 %v1989
    %2003 = vmatprep.subr.mxu0 0.0
    %2004 = vmatpush1.msra.mxu0 %v1990
    %2005 = vmatprep.subr.mxu0 0.0
    %2006 = vmatpush1.msra.mxu0 %v1991
    %2007 = vmatprep.subr.mxu0 0.0
    %2008 = vmatpush1.msra.mxu0 0.0
    %2009 = vmatprep.subr.mxu0 0.0
    %2010 = vmatpush1.msra.mxu0 0.0
    %2011 = vmatprep.subr.mxu0 0.0
    %2012 = vmatpush1.msra.mxu0 0.0
    %2013 = vmatprep.subr.mxu0 0.0
    %2014 = vmatpush1.msra.mxu0 0.0
    %2015 = vmatprep.subr.mxu0 0.0
    %2016 = vmatpush1.msra.mxu0 0.0
    %2017 = vmatprep.subr.mxu0 0.0
    %2018 = vmatpush1.msra.mxu0 0.0
    %2019 = vmatprep.subr.mxu0 0.0
    %2020 = vmatpush1.msra.mxu0 0.0
    %2021 = vmatprep.subr.mxu0 0.0
    %2022 = vmatpush1.msra.mxu0 0.0
    %2023 = vmatprep.subr.mxu0 0.0
    %2024 = vmatpush1.msra.mxu0 0.0
    %2025 = vmatprep.subr.mxu0 0.0
    %2026 = vmatpush1.msra.mxu0 0.0
    %2027 = vmatprep.subr.mxu0 0.0
    %2028 = vmatpush1.msra.mxu0 0.0
    %2029 = vmatprep.subr.mxu0 0.0
    %2030 = vmatpush1.msra.mxu0 0.0
    %2031 = vmatprep.subr.mxu0 0.0
    %2032 = vmatpush1.msra.mxu0 0.0
    %2033 = vmatprep.subr.mxu0 0.0
    %2034 = vmatpush1.msra.mxu0 0.0
    %2035 = vmatprep.subr.mxu0 0.0
    %2036 = vmatpush1.msra.mxu0 0.0
    %2037 = vmatprep.subr.mxu0 0.0
    %2038 = vmatpush1.msra.mxu0 0.0
    %2039 = vmatprep.subr.mxu0 0.0
    %2040 = vmatpush1.msra.mxu0 0.0
    %2041 = vmatprep.subr.mxu0 0.0
    %2042 = vmatpush1.msra.mxu0 0.0
    %2043 = vmatprep.subr.mxu0 0.0
    %2044 = vmatpush1.msra.mxu0 0.0
    %2045 = vmatprep.subr.mxu0 0.0
    %2046 = vmatpush1.msra.mxu0 0.0
    %2047 = vmatprep.subr.mxu0 0.0
    %2048 = vmatpush1.msra.mxu0 0.0
    %2049 = vmatprep.subr.mxu0 0.0
    %2050 = vmatpush1.msra.mxu0 0.0
    %2051 = vmatprep.subr.mxu0 0.0
    %2052 = vmatpush1.msra.mxu0 0.0
    %2053 = vmatprep.subr.mxu0 0.0
    %2054 = vmatpush1.msra.mxu0 0.0
    %2055 = vmatprep.subr.mxu0 0.0
    %2056 = vmatpush1.msra.mxu0 0.0
    %2057 = vmatprep.subr.mxu0 0.0
    %2058 = vmatpush1.msra.mxu0 0.0
    %2059 = vmatprep.subr.mxu0 0.0
    %2060 = vmatpush1.msra.mxu0 0.0
    %2061 = vmatprep.subr.mxu0 0.0
    %2062 = vmatpush1.msra.mxu0 0.0
    %2063 = vmatprep.mubr.f32.mxu0 0.0
    %2064 = vmatmul.mubr.f32.gmra.mrb[0].mxu0 %v1997
    %v2065 = vpop.f32.mrb[0].mxu0
    %v2066 = vadd.f32 %v1995, %v2065
    %v2067 = vpop.f32.mrb[0].mxu0
    %2068 = vdwg.mxu0
    %v2069 = vsel %vm394, %v2066, -inf
    %2070 = vmax.xlane.f32.xlu0 %v2069
    %v2071 = vpop.xlane.xlu0 %2070
    %v2072 = vsub.f32 %v2066, %v2071
    %v2073 = vmul.f32 %v2072, 1.442695
    %v2074 = vpow.pop %v2073
    %v2075 = vsel %vm394, %v2074, 0.0
    %2076 = vadd.xlane.f32.xlu0 %v2075
    %v2077 = vpop.xlane.xlu0 %2076
    %v2078 = vrcp.pop %v2077
    %v2079 = vmul.f32 %v2077, %v2078
    %v2080 = vsub.f32 2.0, %v2079
    %v2081 = vmul.f32 %v2078, %v2080
    %v2082 = vmul.f32 %v2074, %v2081
    %s2083 = scalar_lea.vmem %s6, 16
    %2084 = vst.msk [vmem:[%s2083] sm:$0xf] %vm394, %v2082
    %s2085 = scalar_lea.vmem [#allocation2], 32
    %v2086 = vld [vmem:[%s2085] sm:$0x3f]
    %v2088 = vsel %vm75, %v2086, 0
    %2090 = vmatprep.subr.mxu0 0.0
    %2091 = vmatpush1.msra.mxu0 %v2088
    %2092 = vmatprep.subr.mxu0 0.0
    %2093 = vmatpush1.msra.mxu0 0.0
    %2094 = vmatprep.subr.mxu0 0.0
    %2095 = vmatpush1.msra.mxu0 0.0
    %2096 = vmatprep.subr.mxu0 0.0
    %2097 = vmatpush1.msra.mxu0 0.0
    %2098 = vmatprep.subr.mxu0 0.0
    %2099 = vmatpush1.msra.mxu0 0.0
    %2100 = vmatprep.subr.mxu0 0.0
    %2101 = vmatpush1.msra.mxu0 0.0
    %2102 = vmatprep.subr.mxu0 0.0
    %2103 = vmatpush1.msra.mxu0 0.0
    %2104 = vmatprep.subr.mxu0 0.0
    %2105 = vmatpush1.msra.mxu0 0.0
    %2106 = vmatprep.subr.mxu0 0.0
    %2107 = vmatpush1.msra.mxu0 0.0
    %2108 = vmatprep.subr.mxu0 0.0
    %2109 = vmatpush1.msra.mxu0 0.0
    %2110 = vmatprep.subr.mxu0 0.0
    %2111 = vmatpush1.msra.mxu0 0.0
    %2112 = vmatprep.subr.mxu0 0.0
    %2113 = vmatpush1.msra.mxu0 0.0
    %2114 = vmatprep.subr.mxu0 0.0
    %2115 = vmatpush1.msra.mxu0 0.0
    %2116 = vmatprep.subr.mxu0 0.0
    %2117 = vmatpush1.msra.mxu0 0.0
    %2118 = vmatprep.subr.mxu0 0.0
    %2119 = vmatpush1.msra.mxu0 0.0
    %2120 = vmatprep.subr.mxu0 0.0
    %2121 = vmatpush1.msra.mxu0 0.0
    %2122 = vmatprep.subr.mxu0 0.0
    %2123 = vmatpush1.msra.mxu0 0.0
    %2124 = vmatprep.subr.mxu0 0.0
    %2125 = vmatpush1.msra.mxu0 0.0
    %2126 = vmatprep.subr.mxu0 0.0
    %2127 = vmatpush1.msra.mxu0 0.0
    %2128 = vmatprep.subr.mxu0 0.0
    %2129 = vmatpush1.msra.mxu0 0.0
    %2130 = vmatprep.subr.mxu0 0.0
    %2131 = vmatpush1.msra.mxu0 0.0
    %2132 = vmatprep.subr.mxu0 0.0
    %2133 = vmatpush1.msra.mxu0 0.0
    %2134 = vmatprep.subr.mxu0 0.0
    %2135 = vmatpush1.msra.mxu0 0.0
    %2136 = vmatprep.subr.mxu0 0.0
    %2137 = vmatpush1.msra.mxu0 0.0
    %2138 = vmatprep.subr.mxu0 0.0
    %2139 = vmatpush1.msra.mxu0 0.0
    %2140 = vmatprep.subr.mxu0 0.0
    %2141 = vmatpush1.msra.mxu0 0.0
    %2142 = vmatprep.subr.mxu0 0.0
    %2143 = vmatpush1.msra.mxu0 0.0
    %2144 = vmatprep.subr.mxu0 0.0
    %2145 = vmatpush1.msra.mxu0 0.0
    %2146 = vmatprep.subr.mxu0 0.0
    %2147 = vmatpush1.msra.mxu0 0.0
    %2148 = vmatprep.subr.mxu0 0.0
    %2149 = vmatpush1.msra.mxu0 0.0
    %2150 = vmatprep.subr.mxu0 0.0
    %2151 = vmatpush1.msra.mxu0 0.0
    %2152 = vmatprep.subr.mxu0 0.0
    %2153 = vmatpush1.msra.mxu0 0.0
    %2154 = vmatprep.mubr.f32.mxu0 0.0
    %2155 = vmatmul.mubr.f32.gmra.mrb[0].mxu0 %v1750
    %v2156 = vpop.f32.mrb[0].mxu0
    %v2157 = vadd.f32 0.0, %v2156
    %v2158 = vpop.f32.mrb[0].mxu0
    %2159 = vdwg.mxu0
    %s2160 = scalar_lea.vmem [#allocation6], 40
    %v2161 = vld [vmem:[%s2160] sm:$0xff]
    %s2162 = scalar_lea.vmem [#allocation4], 40
    %v2163 = vld [vmem:[%s2162] sm:$0x3f]
    %v2164 = vlaneseq
    %v2165 = vshrl.u32 %v2164, 7
    %v2166 = vsub.s32 0, %v2165
    %v2167 = vrot.slane %v2161, %v2166
    %v2169 = vsel %vm71, %v2157, 0
    %v2172 = vsel %vm75, %v2163, 0
    %2174 = vmatprep.subr.mxu0 0.0
    %2175 = vmatpush1.msra.mxu0 %v2172
    %2176 = vmatprep.subr.mxu0 0.0
    %2177 = vmatpush1.msra.mxu0 0.0
    %2178 = vmatprep.subr.mxu0 0.0
    %2179 = vmatpush1.msra.mxu0 0.0
    %2180 = vmatprep.subr.mxu0 0.0
    %2181 = vmatpush1.msra.mxu0 0.0
    %2182 = vmatprep.subr.mxu0 0.0
    %2183 = vmatpush1.msra.mxu0 0.0
    %2184 = vmatprep.subr.mxu0 0.0
    %2185 = vmatpush1.msra.mxu0 0.0
    %2186 = vmatprep.subr.mxu0 0.0
    %2187 = vmatpush1.msra.mxu0 0.0
    %2188 = vmatprep.subr.mxu0 0.0
    %2189 = vmatpush1.msra.mxu0 0.0
    %2190 = vmatprep.subr.mxu0 0.0
    %2191 = vmatpush1.msra.mxu0 0.0
    %2192 = vmatprep.subr.mxu0 0.0
    %2193 = vmatpush1.msra.mxu0 0.0
    %2194 = vmatprep.subr.mxu0 0.0
    %2195 = vmatpush1.msra.mxu0 0.0
    %2196 = vmatprep.subr.mxu0 0.0
    %2197 = vmatpush1.msra.mxu0 0.0
    %2198 = vmatprep.subr.mxu0 0.0
    %2199 = vmatpush1.msra.mxu0 0.0
    %2200 = vmatprep.subr.mxu0 0.0
    %2201 = vmatpush1.msra.mxu0 0.0
    %2202 = vmatprep.subr.mxu0 0.0
    %2203 = vmatpush1.msra.mxu0 0.0
    %2204 = vmatprep.subr.mxu0 0.0
    %2205 = vmatpush1.msra.mxu0 0.0
    %2206 = vmatprep.subr.mxu0 0.0
    %2207 = vmatpush1.msra.mxu0 0.0
    %2208 = vmatprep.subr.mxu0 0.0
    %2209 = vmatpush1.msra.mxu0 0.0
    %2210 = vmatprep.subr.mxu0 0.0
    %2211 = vmatpush1.msra.mxu0 0.0
    %2212 = vmatprep.subr.mxu0 0.0
    %2213 = vmatpush1.msra.mxu0 0.0
    %2214 = vmatprep.subr.mxu0 0.0
    %2215 = vmatpush1.msra.mxu0 0.0
    %2216 = vmatprep.subr.mxu0 0.0
    %2217 = vmatpush1.msra.mxu0 0.0
    %2218 = vmatprep.subr.mxu0 0.0
    %2219 = vmatpush1.msra.mxu0 0.0
    %2220 = vmatprep.subr.mxu0 0.0
    %2221 = vmatpush1.msra.mxu0 0.0
    %2222 = vmatprep.subr.mxu0 0.0
    %2223 = vmatpush1.msra.mxu0 0.0
    %2224 = vmatprep.subr.mxu0 0.0
    %2225 = vmatpush1.msra.mxu0 0.0
    %2226 = vmatprep.subr.mxu0 0.0
    %2227 = vmatpush1.msra.mxu0 0.0
    %2228 = vmatprep.subr.mxu0 0.0
    %2229 = vmatpush1.msra.mxu0 0.0
    %2230 = vmatprep.subr.mxu0 0.0
    %2231 = vmatpush1.msra.mxu0 0.0
    %2232 = vmatprep.subr.mxu0 0.0
    %2233 = vmatpush1.msra.mxu0 0.0
    %2234 = vmatprep.subr.mxu0 0.0
    %2235 = vmatpush1.msra.mxu0 0.0
    %2236 = vmatprep.subr.mxu0 0.0
    %2237 = vmatpush1.msra.mxu0 0.0
    %2238 = vmatprep.mubr.f32.mxu0 0.0
    %2239 = vmatmul.mubr.f32.gmra.mrb[0].mxu0 %v2169
    %v2240 = vpop.f32.mrb[0].mxu0
    %v2241 = vadd.f32 %v2167, %v2240
    %v2242 = vpop.f32.mrb[0].mxu0
    %2243 = vdwg.mxu0
    %vm2244 = vcmp.gt.f32.partialorder %v2241, 0.0
    %v2245 = vmul.f32 %v2241, 0.01
    %v2246 = vsel %vm2244, %v2241, %v2245
    %v2247 = vsel %vm152, %v2246, 0.0
    %v2248 = vrot.slane %v2247, 4
    %v2249 = vadd.f32 %v2247, %v2248
    %v2250 = vrot.slane %v2249, 2
    %v2251 = vadd.f32 %v2249, %v2250
    %v2252 = vrot.slane %v2251, 1
    %v2253 = vadd.f32 %v2251, %v2252
    %v2254 = vmul.f32 %v2253, %v160
    %v2255 = vmul.f32 %v2246, %v2246
    %v2256 = vsel %vm152, %v2255, 0.0
    %v2257 = vrot.slane %v2256, 4
    %v2258 = vadd.f32 %v2256, %v2257
    %v2259 = vrot.slane %v2258, 2
    %v2260 = vadd.f32 %v2258, %v2259
    %v2261 = vrot.slane %v2260, 1
    %v2262 = vadd.f32 %v2260, %v2261
    %v2263 = vmul.f32 %v2262, %v160
    %v2264 = vmul.f32 %v2254, %v2254
    %v2265 = vsub.f32 %v2263, %v2264
    %v2266 = vadd.f32 %v2265, 1e-05
    %v2267 = vrsqrt.pop %v2266
    %v2268 = vmul.f32 %v2161, %v2267
    %v2269 = vlaneseq
    %v2270 = vshrl.u32 %v2269, 7
    %v2271 = vsub.s32 1, %v2270
    %v2272 = vrot.slane %v2268, %v2271
    %v2273 = vmul.f32 %v2246, %v2272
    %v2274 = vmul.f32 %v2254, %v2268
    %v2276 = vrot.slane %v2274, 7
    %v2278 = vsub.f32 %v2161, %v2276
    %v2279 = vlaneseq
    %v2280 = vshrl.u32 %v2279, 7
    %v2281 = vsub.s32 2, %v2280
    %v2282 = vrot.slane %v2278, %v2281
    %v2283 = vadd.f32 %v2273, %v2282
    %s2284 = scalar_lea.vmem %s4, 160
    %v2285 = vld [vmem:[%s2284] sm:$0xff]
    %v2286 = vld [vmem:[%s2284 + $0x8] sm:$0xff]
    %v2287 = vld [vmem:[%s2284 + $0x10] sm:$0xff]
    %v2288 = vld [vmem:[%s2284 + $0x18] sm:$0xff]
    %v2289 = vlaneseq
    %v2290 = vshrl.u32 %v2289, 7
    %v2291 = vsub.s32 3, %v2290
    %v2292 = vrot.slane %v2161, %v2291
    %v2294 = vsel %vm199, %v2283, 0
    %2296 = vmatprep.subr.mxu0 0.0
    %2297 = vmatpush1.msra.mxu0 %v2285
    %2298 = vmatprep.subr.mxu0 0.0
    %2299 = vmatpush1.msra.mxu0 %v2286
    %2300 = vmatprep.subr.mxu0 0.0
    %2301 = vmatpush1.msra.mxu0 %v2287
    %2302 = vmatprep.subr.mxu0 0.0
    %2303 = vmatpush1.msra.mxu0 %v2288
    %2304 = vmatprep.subr.mxu0 0.0
    %2305 = vmatpush1.msra.mxu0 0.0
    %2306 = vmatprep.subr.mxu0 0.0
    %2307 = vmatpush1.msra.mxu0 0.0
    %2308 = vmatprep.subr.mxu0 0.0
    %2309 = vmatpush1.msra.mxu0 0.0
    %2310 = vmatprep.subr.mxu0 0.0
    %2311 = vmatpush1.msra.mxu0 0.0
    %2312 = vmatprep.subr.mxu0 0.0
    %2313 = vmatpush1.msra.mxu0 0.0
    %2314 = vmatprep.subr.mxu0 0.0
    %2315 = vmatpush1.msra.mxu0 0.0
    %2316 = vmatprep.subr.mxu0 0.0
    %2317 = vmatpush1.msra.mxu0 0.0
    %2318 = vmatprep.subr.mxu0 0.0
    %2319 = vmatpush1.msra.mxu0 0.0
    %2320 = vmatprep.subr.mxu0 0.0
    %2321 = vmatpush1.msra.mxu0 0.0
    %2322 = vmatprep.subr.mxu0 0.0
    %2323 = vmatpush1.msra.mxu0 0.0
    %2324 = vmatprep.subr.mxu0 0.0
    %2325 = vmatpush1.msra.mxu0 0.0
    %2326 = vmatprep.subr.mxu0 0.0
    %2327 = vmatpush1.msra.mxu0 0.0
    %2328 = vmatprep.subr.mxu0 0.0
    %2329 = vmatpush1.msra.mxu0 0.0
    %2330 = vmatprep.subr.mxu0 0.0
    %2331 = vmatpush1.msra.mxu0 0.0
    %2332 = vmatprep.subr.mxu0 0.0
    %2333 = vmatpush1.msra.mxu0 0.0
    %2334 = vmatprep.subr.mxu0 0.0
    %2335 = vmatpush1.msra.mxu0 0.0
    %2336 = vmatprep.subr.mxu0 0.0
    %2337 = vmatpush1.msra.mxu0 0.0
    %2338 = vmatprep.subr.mxu0 0.0
    %2339 = vmatpush1.msra.mxu0 0.0
    %2340 = vmatprep.subr.mxu0 0.0
    %2341 = vmatpush1.msra.mxu0 0.0
    %2342 = vmatprep.subr.mxu0 0.0
    %2343 = vmatpush1.msra.mxu0 0.0
    %2344 = vmatprep.subr.mxu0 0.0
    %2345 = vmatpush1.msra.mxu0 0.0
    %2346 = vmatprep.subr.mxu0 0.0
    %2347 = vmatpush1.msra.mxu0 0.0
    %2348 = vmatprep.subr.mxu0 0.0
    %2349 = vmatpush1.msra.mxu0 0.0
    %2350 = vmatprep.subr.mxu0 0.0
    %2351 = vmatpush1.msra.mxu0 0.0
    %2352 = vmatprep.subr.mxu0 0.0
    %2353 = vmatpush1.msra.mxu0 0.0
    %2354 = vmatprep.subr.mxu0 0.0
    %2355 = vmatpush1.msra.mxu0 0.0
    %2356 = vmatprep.subr.mxu0 0.0
    %2357 = vmatpush1.msra.mxu0 0.0
    %2358 = vmatprep.subr.mxu0 0.0
    %2359 = vmatpush1.msra.mxu0 0.0
    %2360 = vmatprep.mubr.f32.mxu0 0.0
    %2361 = vmatmul.mubr.f32.gmra.mrb[0].mxu0 %v2294
    %v2362 = vpop.f32.mrb[0].mxu0
    %v2363 = vadd.f32 %v2292, %v2362
    %v2364 = vpop.f32.mrb[0].mxu0
    %2365 = vdwg.mxu0
    %vm2366 = vcmp.gt.f32.partialorder %v2363, 0.0
    %v2367 = vmul.f32 %v2363, 0.01
    %v2368 = vsel %vm2366, %v2363, %v2367
    %v2369 = vsel %vm152, %v2368, 0.0
    %v2370 = vrot.slane %v2369, 4
    %v2371 = vadd.f32 %v2369, %v2370
    %v2372 = vrot.slane %v2371, 2
    %v2373 = vadd.f32 %v2371, %v2372
    %v2374 = vrot.slane %v2373, 1
    %v2375 = vadd.f32 %v2373, %v2374
    %v2376 = vmul.f32 %v2375, %v160
    %v2377 = vmul.f32 %v2368, %v2368
    %v2378 = vsel %vm152, %v2377, 0.0
    %v2379 = vrot.slane %v2378, 4
    %v2380 = vadd.f32 %v2378, %v2379
    %v2381 = vrot.slane %v2380, 2
    %v2382 = vadd.f32 %v2380, %v2381
    %v2383 = vrot.slane %v2382, 1
    %v2384 = vadd.f32 %v2382, %v2383
    %v2385 = vmul.f32 %v2384, %v160
    %v2386 = vmul.f32 %v2376, %v2376
    %v2387 = vsub.f32 %v2385, %v2386
    %v2388 = vadd.f32 %v2387, 1e-05
    %v2389 = vrsqrt.pop %v2388
    %v2390 = vmul.f32 %v2161, %v2389
    %v2391 = vlaneseq
    %v2392 = vshrl.u32 %v2391, 7
    %v2393 = vsub.s32 4, %v2392
    %v2394 = vrot.slane %v2390, %v2393
    %v2395 = vmul.f32 %v2368, %v2394
    %v2396 = vmul.f32 %v2376, %v2390
    %v2398 = vrot.slane %v2396, 7
    %v2400 = vsub.f32 %v2161, %v2398
    %v2401 = vlaneseq
    %v2402 = vshrl.u32 %v2401, 7
    %v2403 = vsub.s32 5, %v2402
    %v2404 = vrot.slane %v2400, %v2403
    %v2405 = vadd.f32 %v2395, %v2404
    %s2406 = scalar_lea.vmem %s5, 160
    %v2407 = vld [vmem:[%s2406] sm:$0xff]
    %v2408 = vld [vmem:[%s2406 + $0x8] sm:$0xff]
    %v2409 = vld [vmem:[%s2406 + $0x10] sm:$0xff]
    %v2410 = vld [vmem:[%s2406 + $0x18] sm:$0xff]
    %v2411 = vlaneseq
    %v2412 = vshrl.u32 %v2411, 7
    %v2413 = vsub.s32 6, %v2412
    %v2414 = vrot.slane %v2161, %v2413
    %v2416 = vsel %vm199, %v2405, 0
    %2418 = vmatprep.subr.mxu0 0.0
    %2419 = vmatpush1.msra.mxu0 %v2407
    %2420 = vmatprep.subr.mxu0 0.0
    %2421 = vmatpush1.msra.mxu0 %v2408
    %2422 = vmatprep.subr.mxu0 0.0
    %2423 = vmatpush1.msra.mxu0 %v2409
    %2424 = vmatprep.subr.mxu0 0.0
    %2425 = vmatpush1.msra.mxu0 %v2410
    %2426 = vmatprep.subr.mxu0 0.0
    %2427 = vmatpush1.msra.mxu0 0.0
    %2428 = vmatprep.subr.mxu0 0.0
    %2429 = vmatpush1.msra.mxu0 0.0
    %2430 = vmatprep.subr.mxu0 0.0
    %2431 = vmatpush1.msra.mxu0 0.0
    %2432 = vmatprep.subr.mxu0 0.0
    %2433 = vmatpush1.msra.mxu0 0.0
    %2434 = vmatprep.subr.mxu0 0.0
    %2435 = vmatpush1.msra.mxu0 0.0
    %2436 = vmatprep.subr.mxu0 0.0
    %2437 = vmatpush1.msra.mxu0 0.0
    %2438 = vmatprep.subr.mxu0 0.0
    %2439 = vmatpush1.msra.mxu0 0.0
    %2440 = vmatprep.subr.mxu0 0.0
    %2441 = vmatpush1.msra.mxu0 0.0
    %2442 = vmatprep.subr.mxu0 0.0
    %2443 = vmatpush1.msra.mxu0 0.0
    %2444 = vmatprep.subr.mxu0 0.0
    %2445 = vmatpush1.msra.mxu0 0.0
    %2446 = vmatprep.subr.mxu0 0.0
    %2447 = vmatpush1.msra.mxu0 0.0
    %2448 = vmatprep.subr.mxu0 0.0
    %2449 = vmatpush1.msra.mxu0 0.0
    %2450 = vmatprep.subr.mxu0 0.0
    %2451 = vmatpush1.msra.mxu0 0.0
    %2452 = vmatprep.subr.mxu0 0.0
    %2453 = vmatpush1.msra.mxu0 0.0
    %2454 = vmatprep.subr.mxu0 0.0
    %2455 = vmatpush1.msra.mxu0 0.0
    %2456 = vmatprep.subr.mxu0 0.0
    %2457 = vmatpush1.msra.mxu0 0.0
    %2458 = vmatprep.subr.mxu0 0.0
    %2459 = vmatpush1.msra.mxu0 0.0
    %2460 = vmatprep.subr.mxu0 0.0
    %2461 = vmatpush1.msra.mxu0 0.0
    %2462 = vmatprep.subr.mxu0 0.0
    %2463 = vmatpush1.msra.mxu0 0.0
    %2464 = vmatprep.subr.mxu0 0.0
    %2465 = vmatpush1.msra.mxu0 0.0
    %2466 = vmatprep.subr.mxu0 0.0
    %2467 = vmatpush1.msra.mxu0 0.0
    %2468 = vmatprep.subr.mxu0 0.0
    %2469 = vmatpush1.msra.mxu0 0.0
    %2470 = vmatprep.subr.mxu0 0.0
    %2471 = vmatpush1.msra.mxu0 0.0
    %2472 = vmatprep.subr.mxu0 0.0
    %2473 = vmatpush1.msra.mxu0 0.0
    %2474 = vmatprep.subr.mxu0 0.0
    %2475 = vmatpush1.msra.mxu0 0.0
    %2476 = vmatprep.subr.mxu0 0.0
    %2477 = vmatpush1.msra.mxu0 0.0
    %2478 = vmatprep.subr.mxu0 0.0
    %2479 = vmatpush1.msra.mxu0 0.0
    %2480 = vmatprep.subr.mxu0 0.0
    %2481 = vmatpush1.msra.mxu0 0.0
    %2482 = vmatprep.mubr.f32.mxu0 0.0
    %2483 = vmatmul.mubr.f32.gmra.mrb[0].mxu0 %v2416
    %v2484 = vpop.f32.mrb[0].mxu0
    %v2485 = vadd.f32 %v2414, %v2484
    %v2486 = vpop.f32.mrb[0].mxu0
    %2487 = vdwg.mxu0
    %v2488 = vsel %vm394, %v2485, -inf
    %2489 = vmax.xlane.f32.xlu0 %v2488
    %v2490 = vpop.xlane.xlu0 %2489
    %v2491 = vsub.f32 %v2485, %v2490
    %v2492 = vmul.f32 %v2491, 1.442695
    %v2493 = vpow.pop %v2492
    %v2494 = vsel %vm394, %v2493, 0.0
    %2495 = vadd.xlane.f32.xlu0 %v2494
    %v2496 = vpop.xlane.xlu0 %2495
    %v2497 = vrcp.pop %v2496
    %v2498 = vmul.f32 %v2496, %v2497
    %v2499 = vsub.f32 2.0, %v2498
    %v2500 = vmul.f32 %v2497, %v2499
    %v2501 = vmul.f32 %v2493, %v2500
    %s2502 = scalar_lea.vmem %s6, 20
    %2503 = vst.msk [vmem:[%s2502] sm:$0xf] %vm394, %v2501
    // Predicated region
    $region38: #{tpu_custom_call.1} parent=1 // pred_check
      _
    $region39: #{tpu_custom_call.1} parent=1 // pred_check_branch
      %2505 = sbr.rel (0) target = $region41
    $region40: #{tpu_custom_call.1} parent=1 // pred_region
      _
    $region41: #{tpu_custom_call.1} parent=1 // pred_fallthru
      _
    // Predicated region
    $region42: #{tpu_custom_call.1} parent=1 // pred_check
      _
    $region43: #{tpu_custom_call.1} parent=1 // pred_check_branch
      %2507 = sbr.rel (0) target = $region45
    $region44: #{tpu_custom_call.1} parent=1 // pred_region
      _
    $region45: #{tpu_custom_call.1} parent=1 // pred_fallthru
      _
    %2508 = vsyncpa [#allocation3], 1
    %2509 = vsyncpa [#allocation5], 1

</llo_original>
